<compile_context>
chip_gen: v5e
topology: v5e:2x2
jax: 0.10.0
libtpu: 0.0.40
codegen_flags: <defaults>
</compile_context>

<pallas_src>
import functools

import jax
import jax.numpy as jnp
import numpy as np
from jax.experimental import pallas as pl
from jax.experimental.pallas import tpu as pltpu


def _round_up(x, m):
    return (x + m - 1) // m * m


# ----------------------------------------------------------------------------
# Pallas kernel: the whole ShuffleNetUnitA forward for Nb images, fused.
# ----------------------------------------------------------------------------
def shufflenet_a_kernel(x_ref, w1_ref, s1_ref, b1_ref, wd_ref, b4_ref,
                        w5_ref, s6_ref, b6_ref, o_ref, *, Nb, H, W, C):
    """x_ref: (Nb*H*W, Cp) bf16; o_ref: (Nb*H*W, Cp) f32.

    C is the padded bottleneck width (Cbp); all channel dims are padded to
    multiples of 128 so loads/stores are lane-dense.
    """
    M = Nb * H * W

    # --- stage 1: 1x1 group conv (block-diag dense, shuffle folded into the
    #     output-channel order) + bn2 + relu.  bf16 MXU, f32 accumulate.
    t = jnp.dot(x_ref[...], w1_ref[...],
                preferred_element_type=jnp.float32)            # (M, Cbp)
    y = jnp.maximum(t * s1_ref[...] + b1_ref[...], 0.0)

    # --- stage 2: 3x3 depthwise conv (padding=1) on the flat layout.
    # tap(dh, dw)[i] = y[i + dh*W + dw] via a circular sublane roll; boundary
    # masks (built per-image, hoisted out of the tap loop) zero out positions
    # whose shifted (h, w) falls outside their own image — this also kills the
    # roll wrap-around between adjacent images inside the Nb-block.
    hi = jax.lax.broadcasted_iota(jnp.int32, (Nb, H, W, C), 1).reshape(M, C)
    wi = jax.lax.broadcasted_iota(jnp.int32, (Nb, H, W, C), 2).reshape(M, C)
    h_mask = {-1: hi >= 1, 0: None, 1: hi < H - 1}
    w_mask = {-1: wi >= 1, 0: None, 1: wi < W - 1}

    acc = None
    for kh in range(3):
        for kw in range(3):
            dh, dw = kh - 1, kw - 1
            shift = (-(dh * W + dw)) % M
            tap = pltpu.roll(y, shift, 0) if shift else y
            m = h_mask[dh]
            wm = w_mask[dw]
            if m is None:
                m = wm
            elif wm is not None:
                m = jnp.logical_and(m, wm)
            if m is not None:
                tap = jnp.where(m, tap, 0.0)
            k = kh * 3 + kw
            term = tap * wd_ref[k:k + 1, :]                    # bn4 scale folded
            acc = term if acc is None else acc + term
    z = acc + b4_ref[...]                                      # dw bias + bn4 shift

    # --- stage 3: 1x1 group conv (block-diag dense) + bn6 + residual + relu.
    u = jnp.dot(z.astype(jnp.bfloat16), w5_ref[...],
                preferred_element_type=jnp.float32)            # (M, Cp)
    u = u * s6_ref[...] + b6_ref[...]
    # Re-read the residual from VMEM (cheap vld) instead of keeping a wide f32
    # copy of x live across the whole body.
    o_ref[...] = jnp.maximum(x_ref[...].astype(jnp.float32) + u, 0.0)


# ----------------------------------------------------------------------------
# Offline parameter folding: grouped convs -> block-diagonal dense matrices,
# conv biases + BN -> per-channel affines, channel shuffle -> column perm of
# stage-1 weights, bn4 scale -> depthwise weights.  Everything zero-padded to
# lane-friendly channel counts.
# ----------------------------------------------------------------------------
def build_kernel_params(p, groups, Cin, Cb, Cp, Cbp, eps=1e-5):
    cin_g = Cin // groups
    cb_g = Cb // groups
    cout_g = Cin // groups        # Cout == Cin for unit A

    # stage 1: dense (Cp, Cbp) block-diagonal weight for group_conv1
    w1 = np.asarray(p['w1'], np.float32)              # (Cb, cin_g, 1, 1)
    W1d = np.zeros((Cp, Cbp), np.float32)
    for g in range(groups):
        W1d[g * cin_g:(g + 1) * cin_g, g * cb_g:(g + 1) * cb_g] = \
            w1[g * cb_g:(g + 1) * cb_g, :, 0, 0].T
    g2, be2, m2, v2 = [np.asarray(a, np.float32) for a in p['bn2']]
    s2 = g2 / np.sqrt(v2 + eps)
    scale1 = s2
    shift1 = (np.asarray(p['b1'], np.float32) - m2) * s2 + be2

    # channel shuffle folded as a permutation of the stage-1 output channels
    perm = np.array([(j % groups) * cb_g + (j // groups) for j in range(Cb)],
                    np.int32)
    W1d[:, :Cb] = W1d[:, :Cb][:, perm]
    sc1 = np.zeros((Cbp,), np.float32); sc1[:Cb] = scale1[perm]
    sh1 = np.zeros((Cbp,), np.float32); sh1[:Cb] = shift1[perm]

    # stage 2: depthwise weights (Cb,1,3,3) -> (9, Cbp), k = kh*3 + kw,
    # with the bn4 scale folded in; shift collects bias + bn4 offset.
    g4, be4, m4, v4 = [np.asarray(a, np.float32) for a in p['bn4']]
    s4 = g4 / np.sqrt(v4 + eps)
    wd = np.asarray(p['wd'], np.float32)[:, 0, :, :]          # (Cb, 3, 3)
    wdf = np.transpose(wd, (1, 2, 0)).reshape(9, Cb) * s4[None, :]
    wdp = np.zeros((9, Cbp), np.float32); wdp[:, :Cb] = wdf
    sh4 = np.zeros((Cbp,), np.float32)
    sh4[:Cb] = (np.asarray(p['bd'], np.float32) - m4) * s4 + be4

    # stage 3: dense (Cbp, Cp) block-diagonal weight for group_conv5
    w5 = np.asarray(p['w5'], np.float32)              # (Cin, cb_g, 1, 1)
    W5d = np.zeros((Cbp, Cp), np.float32)
    for g in range(groups):
        W5d[g * cb_g:(g + 1) * cb_g, g * cout_g:(g + 1) * cout_g] = \
            w5[g * cout_g:(g + 1) * cout_g, :, 0, 0].T
    g6, be6, m6, v6 = [np.asarray(a, np.float32) for a in p['bn6']]
    s6 = g6 / np.sqrt(v6 + eps)
    sc6 = np.zeros((Cp,), np.float32); sc6[:Cin] = s6
    sh6 = np.zeros((Cp,), np.float32)
    sh6[:Cin] = (np.asarray(p['b5'], np.float32) - m6) * s6 + be6

    return (jnp.asarray(W1d, jnp.bfloat16),
            jnp.asarray(sc1).reshape(1, Cbp), jnp.asarray(sh1).reshape(1, Cbp),
            jnp.asarray(wdp),
            jnp.asarray(sh4).reshape(1, Cbp),
            jnp.asarray(W5d, jnp.bfloat16),
            jnp.asarray(sc6).reshape(1, Cp), jnp.asarray(sh6).reshape(1, Cp))


def _pick_nb(N, HW, Cp, budget_bytes=4 << 20, nb_cap=8):
    """Largest divisor of N s.t. the bf16-in + f32-out block fits the budget."""
    per_image = HW * Cp * (2 + 4)
    nb_max = max(1, min(nb_cap, budget_bytes // per_image))
    nb = 1
    for d in range(1, N + 1):
        if N % d == 0 and d <= nb_max:
            nb = d
    return nb


def shufflenet_unit_a(x_nchw, p, groups=3):
    N, Cin, H, W = x_nchw.shape
    assert Cin % 4 == 0 and Cin % groups == 0
    Cb = Cin // 4
    assert Cb % groups == 0
    HW = H * W

    Cp = _round_up(Cin, 128)       # lane-dense padded channel counts
    Cbp = _round_up(Cb, 128)

    kp = build_kernel_params(p, groups, Cin, Cb, Cp, Cbp)

    # Multiple images per grid step (bigger DMAs, bigger MXU M dim).
    Nb = _pick_nb(N, HW, Cp)
    assert N % Nb == 0
    M = Nb * HW
    assert M % 8 == 0 or Nb == N, "sublane-aligned block needed"

    # NCHW -> flat (N*H*W, Cp): channels on lanes, zero-padded, bf16 input
    # (halves input HBM traffic; residual add stays f32 inside the kernel).
    x_flat = jnp.transpose(x_nchw, (0, 2, 3, 1)).reshape(N * HW, Cin)
    x_flat = jnp.pad(x_flat, ((0, 0), (0, Cp - Cin))).astype(jnp.bfloat16)

    kern = functools.partial(shufflenet_a_kernel, Nb=Nb, H=H, W=W, C=Cbp)

    in_specs = [
        pl.BlockSpec((M, Cp), lambda n: (n, 0)),           # x: Nb images / step
        pl.BlockSpec((Cp, Cbp), lambda n: (0, 0)),         # W1 (bf16)
        pl.BlockSpec((1, Cbp), lambda n: (0, 0)),          # scale1
        pl.BlockSpec((1, Cbp), lambda n: (0, 0)),          # shift1
        pl.BlockSpec((9, Cbp), lambda n: (0, 0)),          # dw weights (bn4-scaled)
        pl.BlockSpec((1, Cbp), lambda n: (0, 0)),          # shift4
        pl.BlockSpec((Cbp, Cp), lambda n: (0, 0)),         # W5 (bf16)
        pl.BlockSpec((1, Cp), lambda n: (0, 0)),           # scale6
        pl.BlockSpec((1, Cp), lambda n: (0, 0)),           # shift6
    ]

    # Right-sized VMEM request: double-buffered in/out blocks + weights +
    # generous allowance for in-kernel f32 intermediates, clamped to a range
    # that is safe on v5e/v6e (128 MiB) and leaves headroom on v7x (64 MiB).
    in_blk = M * Cp * 2
    out_blk = M * Cp * 4
    w_bytes = sum(int(a.size) * a.dtype.itemsize for a in kp)
    interm = M * Cbp * 4 * 4 + M * Cp * 4 * 2
    vmem_limit = 2 * (in_blk + out_blk) + w_bytes + interm + (8 << 20)
    vmem_limit = int(min(max(vmem_limit, 16 << 20), 32 << 20))

    # Advisory cost estimate so XLA schedules neighboring transpose/pad/slice
    # ops around the kernel.
    flops = int(N * HW * (4 * Cp * Cbp + 18 * Cbp + 6 * Cp + 4 * Cbp))
    bytes_accessed = int(N * HW * Cp * (2 + 4) + w_bytes)
    cost = pl.CostEstimate(flops=flops, transcendentals=0,
                           bytes_accessed=bytes_accessed)

    out_flat = pl.pallas_call(
        kern,
        out_shape=jax.ShapeDtypeStruct((N * HW, Cp), jnp.float32),
        grid=(N // Nb,),
        in_specs=in_specs,
        out_specs=pl.BlockSpec((M, Cp), lambda n: (n, 0)),
        compiler_params=pltpu.CompilerParams(
            dimension_semantics=("parallel",),
            vmem_limit_bytes=vmem_limit),
        cost_estimate=cost,
    )(x_flat, *kp)

    out = out_flat[:, :Cin].reshape(N, H, W, Cin)
    return jnp.transpose(out, (0, 3, 1, 2))


# ----------------------------------------------------------------------------
# Pure-JAX reference (matches the PyTorch forward, eval-mode BN)
# ----------------------------------------------------------------------------
def ref_forward(x, p, groups=3, eps=1e-5):
    dn = ('NCHW', 'OIHW', 'NCHW')
    hp = jax.lax.Precision.HIGHEST

    def bn(t, g, b, m, v):
        s = g / jnp.sqrt(v + eps)
        return t * s[None, :, None, None] + (b - m * s)[None, :, None, None]

    out = jax.lax.conv_general_dilated(
        x, p['w1'], (1, 1), 'VALID', dimension_numbers=dn,
        feature_group_count=groups, precision=hp) + p['b1'][None, :, None, None]
    out = jax.nn.relu(bn(out, *p['bn2']))
    B, C, Hh, Ww = out.shape
    out = out.reshape(B, groups, C // groups, Hh, Ww)
    out = out.transpose(0, 2, 1, 3, 4).reshape(B, C, Hh, Ww)
    out = jax.lax.conv_general_dilated(
        out, p['wd'], (1, 1), ((1, 1), (1, 1)), dimension_numbers=dn,
        feature_group_count=C, precision=hp) + p['bd'][None, :, None, None]
    out = bn(out, *p['bn4'])
    out = jax.lax.conv_general_dilated(
        out, p['w5'], (1, 1), 'VALID', dimension_numbers=dn,
        feature_group_count=groups, precision=hp) + p['b5'][None, :, None, None]
    out = bn(out, *p['bn6'])
    return jax.nn.relu(x + out)


if __name__ == "__main__":
    key = jax.random.PRNGKey(0)
    ks = jax.random.split(key, 16)

    # in_channels == out_channels, divisible by 4 and by groups=3
    N, Cin, H, W = 2, 24, 16, 16
    groups = 3
    Cb = Cin // 4

    x = jax.random.normal(ks[0], (N, Cin, H, W), jnp.float32)

    def bn_params(k, c):
        k1, k2, k3, k4 = jax.random.split(k, 4)
        return (1.0 + 0.1 * jax.random.normal(k1, (c,)),
                0.1 * jax.random.normal(k2, (c,)),
                0.1 * jax.random.normal(k3, (c,)),
                jax.random.uniform(k4, (c,), minval=0.5, maxval=1.5))

    p = {
        'w1': 0.2 * jax.random.normal(ks[1], (Cb, Cin // groups, 1, 1)),
        'b1': 0.1 * jax.random.normal(ks[2], (Cb,)),
        'bn2': bn_params(ks[3], Cb),
        'wd': 0.2 * jax.random.normal(ks[4], (Cb, 1, 3, 3)),
        'bd': 0.1 * jax.random.normal(ks[5], (Cb,)),
        'bn4': bn_params(ks[6], Cb),
        'w5': 0.2 * jax.random.normal(ks[7], (Cin, Cb // groups, 1, 1)),
        'b5': 0.1 * jax.random.normal(ks[8], (Cin,)),
        'bn6': bn_params(ks[9], Cin),
    }
    p = jax.tree_util.tree_map(lambda a: a.astype(jnp.float32), p)

    out = shufflenet_unit_a(x, p, groups=groups)
    out = jax.block_until_ready(out)

    ref = jax.block_until_ready(ref_forward(x, p, groups=groups))
    assert out.shape == ref.shape == (N, Cin, H, W)
    # bf16 activations/weights on the MXU (f32 accumulate) and a bf16 residual
    # read vs. an f32-HIGHEST reference -> relaxed tolerance.
    np.testing.assert_allclose(np.asarray(out), np.asarray(ref),
                               atol=3e-2, rtol=3e-2)
    print("KERNEL_OK")
</pallas_src>

<mosaic_0001>
module attributes {stable_mosaic.version = 11 : i64} {
  func.func @shufflenet_a_kernel(%arg0: i32, %arg1: memref<512x128xbf16, #tpu.memory_space<vmem>>, %arg2: memref<128x128xbf16, #tpu.memory_space<vmem>>, %arg3: memref<1x128xf32, #tpu.memory_space<vmem>>, %arg4: memref<1x128xf32, #tpu.memory_space<vmem>>, %arg5: memref<9x128xf32, #tpu.memory_space<vmem>>, %arg6: memref<1x128xf32, #tpu.memory_space<vmem>>, %arg7: memref<128x128xbf16, #tpu.memory_space<vmem>>, %arg8: memref<1x128xf32, #tpu.memory_space<vmem>>, %arg9: memref<1x128xf32, #tpu.memory_space<vmem>>, %arg10: memref<512x128xf32, #tpu.memory_space<vmem>>) attributes {dimension_semantics = [#tpu.dimension_semantics<parallel>], iteration_bounds = array<i64: 1>, scalar_prefetch = 0 : i64, scratch_operands = 0 : i64, tpu.core_type = #tpu.core_type<tc>, window_params = [{transform_indices = @transform_0, window_bounds = array<i64: 512, 128>}, {pipeline_mode = #tpu.pipeline_mode<synchronous>, transform_indices = @transform_1, window_bounds = array<i64: 128, 128>}, {pipeline_mode = #tpu.pipeline_mode<synchronous>, transform_indices = @transform_2, window_bounds = array<i64: 1, 128>}, {pipeline_mode = #tpu.pipeline_mode<synchronous>, transform_indices = @transform_3, window_bounds = array<i64: 1, 128>}, {pipeline_mode = #tpu.pipeline_mode<synchronous>, transform_indices = @transform_4, window_bounds = array<i64: 9, 128>}, {pipeline_mode = #tpu.pipeline_mode<synchronous>, transform_indices = @transform_5, window_bounds = array<i64: 1, 128>}, {pipeline_mode = #tpu.pipeline_mode<synchronous>, transform_indices = @transform_6, window_bounds = array<i64: 128, 128>}, {pipeline_mode = #tpu.pipeline_mode<synchronous>, transform_indices = @transform_7, window_bounds = array<i64: 1, 128>}, {pipeline_mode = #tpu.pipeline_mode<synchronous>, transform_indices = @transform_8, window_bounds = array<i64: 1, 128>}, {transform_indices = @transform_9, window_bounds = array<i64: 512, 128>}]} {
    %c0 = arith.constant 0 : index
    %c0_0 = arith.constant 0 : index
    %0 = vector.load %arg1[%c0, %c0_0] : memref<512x128xbf16, #tpu.memory_space<vmem>>, vector<512x128xbf16>
    %c0_1 = arith.constant 0 : index
    %c0_2 = arith.constant 0 : index
    %1 = vector.load %arg2[%c0_1, %c0_2] : memref<128x128xbf16, #tpu.memory_space<vmem>>, vector<128x128xbf16>
    %cst = arith.constant dense<0.000000e+00> : vector<512x128xf32>
    %2 = tpu.matmul %0, %1, %cst {dimension_numbers = #tpu.dot_dimension_numbers<[1], [0], [0], [1], [0, 0, 1, 1], [], []>} : vector<512x128xbf16>, vector<128x128xbf16>, vector<512x128xf32> -> vector<512x128xf32>
    %c0_3 = arith.constant 0 : index
    %c0_4 = arith.constant 0 : index
    %3 = vector.load %arg3[%c0_3, %c0_4] : memref<1x128xf32, #tpu.memory_space<vmem>>, vector<1x128xf32>
    %4 = vector.broadcast %3 : vector<1x128xf32> to vector<512x128xf32>
    %5 = arith.mulf %2, %4 : vector<512x128xf32>
    %c0_5 = arith.constant 0 : index
    %c0_6 = arith.constant 0 : index
    %6 = vector.load %arg4[%c0_5, %c0_6] : memref<1x128xf32, #tpu.memory_space<vmem>>, vector<1x128xf32>
    %7 = vector.broadcast %6 : vector<1x128xf32> to vector<512x128xf32>
    %8 = arith.addf %5, %7 : vector<512x128xf32>
    %cst_7 = arith.constant 0.000000e+00 : f32
    %9 = vector.broadcast %cst_7 : f32 to vector<512x128xf32>
    %10 = arith.maximumf %8, %9 : vector<512x128xf32>
    %11 = tpu.iota {dimensions = array<i32: 1>} : vector<2x16x16x128xi32>
    %12 = vector.shape_cast %11 : vector<2x16x16x128xi32> to vector<512x128xi32>
    %13 = tpu.iota {dimensions = array<i32: 2>} : vector<2x16x16x128xi32>
    %14 = vector.shape_cast %13 : vector<2x16x16x128xi32> to vector<512x128xi32>
    %c1_i32 = arith.constant 1 : i32
    %15 = vector.broadcast %c1_i32 : i32 to vector<512x128xi32>
    %16 = arith.cmpi sge, %12, %15 : vector<512x128xi32>
    %c15_i32 = arith.constant 15 : i32
    %17 = vector.broadcast %c15_i32 : i32 to vector<512x128xi32>
    %18 = arith.cmpi slt, %12, %17 : vector<512x128xi32>
    %c1_i32_8 = arith.constant 1 : i32
    %19 = vector.broadcast %c1_i32_8 : i32 to vector<512x128xi32>
    %20 = arith.cmpi sge, %14, %19 : vector<512x128xi32>
    %c15_i32_9 = arith.constant 15 : i32
    %21 = vector.broadcast %c15_i32_9 : i32 to vector<512x128xi32>
    %22 = arith.cmpi slt, %14, %21 : vector<512x128xi32>
    %c17_i32 = arith.constant 17 : i32
    %23 = tpu.dynamic_rotate %10 by %c17_i32 dim 0 : vector<512x128xf32>, i32 -> vector<512x128xf32>
    %24 = arith.andi %16, %20 : vector<512x128xi1>
    %cst_10 = arith.constant 0.000000e+00 : f32
    %25 = vector.broadcast %cst_10 : f32 to vector<512x128xf32>
    %26 = arith.select %24, %23, %25 : vector<512x128xi1>, vector<512x128xf32>
    %c0_11 = arith.constant 0 : index
    %c0_12 = arith.constant 0 : index
    %27 = vector.load %arg5[%c0_11, %c0_12] : memref<9x128xf32, #tpu.memory_space<vmem>>, vector<1x128xf32>
    %28 = vector.broadcast %27 : vector<1x128xf32> to vector<512x128xf32>
    %29 = arith.mulf %26, %28 : vector<512x128xf32>
    %c16_i32 = arith.constant 16 : i32
    %30 = tpu.dynamic_rotate %10 by %c16_i32 dim 0 : vector<512x128xf32>, i32 -> vector<512x128xf32>
    %cst_13 = arith.constant 0.000000e+00 : f32
    %31 = vector.broadcast %cst_13 : f32 to vector<512x128xf32>
    %32 = arith.select %16, %30, %31 : vector<512x128xi1>, vector<512x128xf32>
    %c1 = arith.constant 1 : index
    %c0_14 = arith.constant 0 : index
    %33 = vector.load %arg5[%c1, %c0_14] : memref<9x128xf32, #tpu.memory_space<vmem>>, vector<1x128xf32>
    %34 = vector.broadcast %33 : vector<1x128xf32> to vector<512x128xf32>
    %35 = arith.mulf %32, %34 : vector<512x128xf32>
    %36 = arith.addf %29, %35 : vector<512x128xf32>
    %c15_i32_15 = arith.constant 15 : i32
    %37 = tpu.dynamic_rotate %10 by %c15_i32_15 dim 0 : vector<512x128xf32>, i32 -> vector<512x128xf32>
    %38 = arith.andi %16, %22 : vector<512x128xi1>
    %cst_16 = arith.constant 0.000000e+00 : f32
    %39 = vector.broadcast %cst_16 : f32 to vector<512x128xf32>
    %40 = arith.select %38, %37, %39 : vector<512x128xi1>, vector<512x128xf32>
    %c2 = arith.constant 2 : index
    %c0_17 = arith.constant 0 : index
    %41 = vector.load %arg5[%c2, %c0_17] : memref<9x128xf32, #tpu.memory_space<vmem>>, vector<1x128xf32>
    %42 = vector.broadcast %41 : vector<1x128xf32> to vector<512x128xf32>
    %43 = arith.mulf %40, %42 : vector<512x128xf32>
    %44 = arith.addf %36, %43 : vector<512x128xf32>
    %c1_i32_18 = arith.constant 1 : i32
    %45 = tpu.dynamic_rotate %10 by %c1_i32_18 dim 0 : vector<512x128xf32>, i32 -> vector<512x128xf32>
    %cst_19 = arith.constant 0.000000e+00 : f32
    %46 = vector.broadcast %cst_19 : f32 to vector<512x128xf32>
    %47 = arith.select %20, %45, %46 : vector<512x128xi1>, vector<512x128xf32>
    %c3 = arith.constant 3 : index
    %c0_20 = arith.constant 0 : index
    %48 = vector.load %arg5[%c3, %c0_20] : memref<9x128xf32, #tpu.memory_space<vmem>>, vector<1x128xf32>
    %49 = vector.broadcast %48 : vector<1x128xf32> to vector<512x128xf32>
    %50 = arith.mulf %47, %49 : vector<512x128xf32>
    %51 = arith.addf %44, %50 : vector<512x128xf32>
    %c4 = arith.constant 4 : index
    %c0_21 = arith.constant 0 : index
    %52 = vector.load %arg5[%c4, %c0_21] : memref<9x128xf32, #tpu.memory_space<vmem>>, vector<1x128xf32>
    %53 = vector.broadcast %52 : vector<1x128xf32> to vector<512x128xf32>
    %54 = arith.mulf %10, %53 : vector<512x128xf32>
    %55 = arith.addf %51, %54 : vector<512x128xf32>
    %c511_i32 = arith.constant 511 : i32
    %56 = tpu.dynamic_rotate %10 by %c511_i32 dim 0 : vector<512x128xf32>, i32 -> vector<512x128xf32>
    %cst_22 = arith.constant 0.000000e+00 : f32
    %57 = vector.broadcast %cst_22 : f32 to vector<512x128xf32>
    %58 = arith.select %22, %56, %57 : vector<512x128xi1>, vector<512x128xf32>
    %c5 = arith.constant 5 : index
    %c0_23 = arith.constant 0 : index
    %59 = vector.load %arg5[%c5, %c0_23] : memref<9x128xf32, #tpu.memory_space<vmem>>, vector<1x128xf32>
    %60 = vector.broadcast %59 : vector<1x128xf32> to vector<512x128xf32>
    %61 = arith.mulf %58, %60 : vector<512x128xf32>
    %62 = arith.addf %55, %61 : vector<512x128xf32>
    %c497_i32 = arith.constant 497 : i32
    %63 = tpu.dynamic_rotate %10 by %c497_i32 dim 0 : vector<512x128xf32>, i32 -> vector<512x128xf32>
    %64 = arith.andi %18, %20 : vector<512x128xi1>
    %cst_24 = arith.constant 0.000000e+00 : f32
    %65 = vector.broadcast %cst_24 : f32 to vector<512x128xf32>
    %66 = arith.select %64, %63, %65 : vector<512x128xi1>, vector<512x128xf32>
    %c6 = arith.constant 6 : index
    %c0_25 = arith.constant 0 : index
    %67 = vector.load %arg5[%c6, %c0_25] : memref<9x128xf32, #tpu.memory_space<vmem>>, vector<1x128xf32>
    %68 = vector.broadcast %67 : vector<1x128xf32> to vector<512x128xf32>
    %69 = arith.mulf %66, %68 : vector<512x128xf32>
    %70 = arith.addf %62, %69 : vector<512x128xf32>
    %c496_i32 = arith.constant 496 : i32
    %71 = tpu.dynamic_rotate %10 by %c496_i32 dim 0 : vector<512x128xf32>, i32 -> vector<512x128xf32>
    %cst_26 = arith.constant 0.000000e+00 : f32
    %72 = vector.broadcast %cst_26 : f32 to vector<512x128xf32>
    %73 = arith.select %18, %71, %72 : vector<512x128xi1>, vector<512x128xf32>
    %c7 = arith.constant 7 : index
    %c0_27 = arith.constant 0 : index
    %74 = vector.load %arg5[%c7, %c0_27] : memref<9x128xf32, #tpu.memory_space<vmem>>, vector<1x128xf32>
    %75 = vector.broadcast %74 : vector<1x128xf32> to vector<512x128xf32>
    %76 = arith.mulf %73, %75 : vector<512x128xf32>
    %77 = arith.addf %70, %76 : vector<512x128xf32>
    %c495_i32 = arith.constant 495 : i32
    %78 = tpu.dynamic_rotate %10 by %c495_i32 dim 0 : vector<512x128xf32>, i32 -> vector<512x128xf32>
    %79 = arith.andi %18, %22 : vector<512x128xi1>
    %cst_28 = arith.constant 0.000000e+00 : f32
    %80 = vector.broadcast %cst_28 : f32 to vector<512x128xf32>
    %81 = arith.select %79, %78, %80 : vector<512x128xi1>, vector<512x128xf32>
    %c8 = arith.constant 8 : index
    %c0_29 = arith.constant 0 : index
    %82 = vector.load %arg5[%c8, %c0_29] : memref<9x128xf32, #tpu.memory_space<vmem>>, vector<1x128xf32>
    %83 = vector.broadcast %82 : vector<1x128xf32> to vector<512x128xf32>
    %84 = arith.mulf %81, %83 : vector<512x128xf32>
    %85 = arith.addf %77, %84 : vector<512x128xf32>
    %c0_30 = arith.constant 0 : index
    %c0_31 = arith.constant 0 : index
    %86 = vector.load %arg6[%c0_30, %c0_31] : memref<1x128xf32, #tpu.memory_space<vmem>>, vector<1x128xf32>
    %87 = vector.broadcast %86 : vector<1x128xf32> to vector<512x128xf32>
    %88 = arith.addf %85, %87 : vector<512x128xf32>
    %89 = arith.truncf %88 : vector<512x128xf32> to vector<512x128xbf16>
    %c0_32 = arith.constant 0 : index
    %c0_33 = arith.constant 0 : index
    %90 = vector.load %arg7[%c0_32, %c0_33] : memref<128x128xbf16, #tpu.memory_space<vmem>>, vector<128x128xbf16>
    %cst_34 = arith.constant dense<0.000000e+00> : vector<512x128xf32>
    %91 = tpu.matmul %89, %90, %cst_34 {dimension_numbers = #tpu.dot_dimension_numbers<[1], [0], [0], [1], [0, 0, 1, 1], [], []>} : vector<512x128xbf16>, vector<128x128xbf16>, vector<512x128xf32> -> vector<512x128xf32>
    %c0_35 = arith.constant 0 : index
    %c0_36 = arith.constant 0 : index
    %92 = vector.load %arg8[%c0_35, %c0_36] : memref<1x128xf32, #tpu.memory_space<vmem>>, vector<1x128xf32>
    %93 = vector.broadcast %92 : vector<1x128xf32> to vector<512x128xf32>
    %94 = arith.mulf %91, %93 : vector<512x128xf32>
    %c0_37 = arith.constant 0 : index
    %c0_38 = arith.constant 0 : index
    %95 = vector.load %arg9[%c0_37, %c0_38] : memref<1x128xf32, #tpu.memory_space<vmem>>, vector<1x128xf32>
    %96 = vector.broadcast %95 : vector<1x128xf32> to vector<512x128xf32>
    %97 = arith.addf %94, %96 : vector<512x128xf32>
    %c0_39 = arith.constant 0 : index
    %c0_40 = arith.constant 0 : index
    %98 = vector.load %arg1[%c0_39, %c0_40] : memref<512x128xbf16, #tpu.memory_space<vmem>>, vector<512x128xbf16>
    %99 = arith.extf %98 : vector<512x128xbf16> to vector<512x128xf32>
    %100 = arith.addf %99, %97 : vector<512x128xf32>
    %cst_41 = arith.constant 0.000000e+00 : f32
    %101 = vector.broadcast %cst_41 : f32 to vector<512x128xf32>
    %102 = arith.maximumf %100, %101 : vector<512x128xf32>
    %c0_42 = arith.constant 0 : index
    %c0_43 = arith.constant 0 : index
    %103 = vector.load %arg10[%c0_42, %c0_43] : memref<512x128xf32, #tpu.memory_space<vmem>>, vector<512x128xf32>
    tpu.vector_store %arg10[%c0_42, %c0_43], %102 {strides = array<i32>} : memref<512x128xf32, #tpu.memory_space<vmem>>, vector<512x128xf32>,
    return
  }
  func.func @transform_0(%arg0: i32) -> (i32, i32) {
    %c0_i32 = arith.constant 0 : i32
    %c0_i32_0 = arith.constant 0 : i32
    return %arg0, %c0_i32 : i32, i32
  }
  func.func @transform_1(%arg0: i32) -> (i32, i32) {
    %c0_i32 = arith.constant 0 : i32
    %c0_i32_0 = arith.constant 0 : i32
    %c0_i32_1 = arith.constant 0 : i32
    return %c0_i32, %c0_i32_0 : i32, i32
  }
  func.func @transform_2(%arg0: i32) -> (i32, i32) {
    %c0_i32 = arith.constant 0 : i32
    %c0_i32_0 = arith.constant 0 : i32
    %c0_i32_1 = arith.constant 0 : i32
    return %c0_i32, %c0_i32_0 : i32, i32
  }
  func.func @transform_3(%arg0: i32) -> (i32, i32) {
    %c0_i32 = arith.constant 0 : i32
    %c0_i32_0 = arith.constant 0 : i32
    %c0_i32_1 = arith.constant 0 : i32
    return %c0_i32, %c0_i32_0 : i32, i32
  }
  func.func @transform_4(%arg0: i32) -> (i32, i32) {
    %c0_i32 = arith.constant 0 : i32
    %c0_i32_0 = arith.constant 0 : i32
    %c0_i32_1 = arith.constant 0 : i32
    return %c0_i32, %c0_i32_0 : i32, i32
  }
  func.func @transform_5(%arg0: i32) -> (i32, i32) {
    %c0_i32 = arith.constant 0 : i32
    %c0_i32_0 = arith.constant 0 : i32
    %c0_i32_1 = arith.constant 0 : i32
    return %c0_i32, %c0_i32_0 : i32, i32
  }
  func.func @transform_6(%arg0: i32) -> (i32, i32) {
    %c0_i32 = arith.constant 0 : i32
    %c0_i32_0 = arith.constant 0 : i32
    %c0_i32_1 = arith.constant 0 : i32
    return %c0_i32, %c0_i32_0 : i32, i32
  }
  func.func @transform_7(%arg0: i32) -> (i32, i32) {
    %c0_i32 = arith.constant 0 : i32
    %c0_i32_0 = arith.constant 0 : i32
    %c0_i32_1 = arith.constant 0 : i32
    return %c0_i32, %c0_i32_0 : i32, i32
  }
  func.func @transform_8(%arg0: i32) -> (i32, i32) {
    %c0_i32 = arith.constant 0 : i32
    %c0_i32_0 = arith.constant 0 : i32
    %c0_i32_1 = arith.constant 0 : i32
    return %c0_i32, %c0_i32_0 : i32, i32
  }
  func.func @transform_9(%arg0: i32) -> (i32, i32) {
    %c0_i32 = arith.constant 0 : i32
    %c0_i32_0 = arith.constant 0 : i32
    return %arg0, %c0_i32 : i32, i32
  }
}

</mosaic_0001>

<llo_original>
// kernel: tpu_custom_call.1
$region0: #{tpu_custom_call.1}
  #allocation0 [shape = 'u32[]', space=smem, size = 0x4, offset = 0x4, fixed_abs, tag = 'smem constant byte address 0x4 - core index']
  #allocation1 [shape = 'u32[72,128]{1,0:T(1,128)}', space=vmem, size = 0x9000, scoped, tag = 'internal scratch']
  %s0 = inlined_call_operand.hbm [shape: bf16[512,128], index: 0, kind: input, shape index: {}]
  %s1 = inlined_call_operand.hbm [shape: bf16[128,128], index: 1, kind: input, shape index: {}]
  %s2 = inlined_call_operand.vmem [shape: f32[1,128], index: 2, kind: input, shape index: {}]
  %s3 = inlined_call_operand.vmem [shape: f32[1,128], index: 3, kind: input, shape index: {}]
  %s4 = inlined_call_operand.hbm [shape: f32[9,128], index: 4, kind: input, shape index: {}]
  %s5 = inlined_call_operand.vmem [shape: f32[1,128], index: 5, kind: input, shape index: {}]
  %s6 = inlined_call_operand.hbm [shape: bf16[128,128], index: 6, kind: input, shape index: {}]
  %s7 = inlined_call_operand.vmem [shape: f32[1,128], index: 7, kind: input, shape index: {}]
  %s8 = inlined_call_operand.vmem [shape: f32[1,128], index: 8, kind: input, shape index: {}]
  %s9 = inlined_call_operand.hbm [shape: f32[512,128], index: 9, kind: output, shape index: {}]
  %s10 = sld [smem:[#allocation0]]
  $region62: #{tpu_custom_call.1} parent=0
    _
  %s12 = ssub.s32 1, %s10
  %s13 = scalar_select 0, %s12, %s10
  $region1: #{tpu_custom_call.1} parent=0
    #allocation2 [shape = 'u8[131072]{0}', space=vmem, size = 0x20000, scoped, tag = 'input window, operand 0, single buffered']
    #allocation3 [shape = 's32[1]{0}', space=sflag, size = 0x4, scoped, tag = 'scoped memory for tpu_custom_call.1']
    #allocation4 [shape = 's32[1]{0}', space=sflag, size = 0x4, scoped, tag = 'scoped memory for tpu_custom_call.1']
    #allocation5 [shape = 'u8[32768]{0}', space=vmem, size = 0x8000, scoped, tag = 'input window, operand 1, single buffered']
    #allocation6 [shape = 's32[1]{0}', space=sflag, size = 0x4, scoped, tag = 'scoped memory for tpu_custom_call.1']
    #allocation7 [shape = 'u8[8192]{0}', space=vmem, size = 0x2000, scoped, tag = 'input window, operand 4, single buffered']
    #allocation8 [shape = 'u8[32768]{0}', space=vmem, size = 0x8000, scoped, tag = 'input window, operand 6, single buffered']
    #allocation9 [shape = 's32[1]{0}', space=sflag, size = 0x4, scoped, tag = 'scoped memory for tpu_custom_call.1']
    #allocation10 [shape = 'u8[262144]{0}', space=vmem, size = 0x40000, scoped, tag = 'output window, operand 0, single buffered']
    %14 = vsyncpa [#allocation3], 0
    %15 = vsyncpa [#allocation6], 0
    %16 = vsyncpa [#allocation9], 0
    %17 = vsyncpa [#allocation4], 0
    // Predicated region
    $region2: #{tpu_custom_call.1} parent=1 // pred_check
      _
    $region3: #{tpu_custom_call.1} parent=1 // pred_check_branch
      %19 = sbr.rel (0) target = $region5
    $region4: #{tpu_custom_call.1} parent=1 // pred_region
      %21 = vsyncadd [#allocation3], 0
      %s22 = sshll.u32 %s0, 4
      %s23 = int_to_ptr.hbm [resolvable:$true] %s22
      %s24 = sshll.u32 [#allocation2], 4
      %s25 = int_to_ptr.vmem [resolvable:$true] %s24
      %30 = dma.hbm_to_vmem [thread:$0]  %s23, 4096, %s25, [#allocation3], 64, 64, 4
    $region5: #{tpu_custom_call.1} parent=1 // pred_fallthru
      _
    // Predicated region
    $region6: #{tpu_custom_call.1} parent=1 // pred_check
      _
    $region7: #{tpu_custom_call.1} parent=1 // pred_check_branch
      %32 = sbr.rel (0) target = $region9
    $region8: #{tpu_custom_call.1} parent=1 // pred_region
      %34 = vsyncadd [#allocation6], 0
      %s35 = sshll.u32 %s1, 4
      %s36 = int_to_ptr.hbm [resolvable:$true] %s35
      %s37 = sshll.u32 [#allocation5], 4
      %s38 = int_to_ptr.vmem [resolvable:$true] %s37
      %43 = dma.hbm_to_vmem [thread:$0]  %s36, 1024, %s38, [#allocation6], 64, 64, 4
    $region9: #{tpu_custom_call.1} parent=1 // pred_fallthru
      _
    // Predicated region
    $region10: #{tpu_custom_call.1} parent=1 // pred_check
      _
    $region11: #{tpu_custom_call.1} parent=1 // pred_check_branch
      %45 = sbr.rel (0) target = $region13
    $region12: #{tpu_custom_call.1} parent=1 // pred_region
      _
    $region13: #{tpu_custom_call.1} parent=1 // pred_fallthru
      _
    // Predicated region
    $region14: #{tpu_custom_call.1} parent=1 // pred_check
      _
    $region15: #{tpu_custom_call.1} parent=1 // pred_check_branch
      %47 = sbr.rel (0) target = $region17
    $region16: #{tpu_custom_call.1} parent=1 // pred_region
      _
    $region17: #{tpu_custom_call.1} parent=1 // pred_fallthru
      _
    // Predicated region
    $region18: #{tpu_custom_call.1} parent=1 // pred_check
      _
    $region19: #{tpu_custom_call.1} parent=1 // pred_check_branch
      %49 = sbr.rel (0) target = $region21
    $region20: #{tpu_custom_call.1} parent=1 // pred_region
      %51 = vsyncadd [#allocation6], 0
      %s52 = sshll.u32 %s4, 4
      %s53 = int_to_ptr.hbm [resolvable:$true] %s52
      %s54 = sshll.u32 [#allocation7], 4
      %s55 = int_to_ptr.vmem [resolvable:$true] %s54
      %60 = dma.hbm_to_vmem [thread:$0]  %s53, 256, %s55, [#allocation6], 128, 128, 8
    $region21: #{tpu_custom_call.1} parent=1 // pred_fallthru
      _
    // Predicated region
    $region22: #{tpu_custom_call.1} parent=1 // pred_check
      _
    $region23: #{tpu_custom_call.1} parent=1 // pred_check_branch
      %62 = sbr.rel (0) target = $region25
    $region24: #{tpu_custom_call.1} parent=1 // pred_region
      _
    $region25: #{tpu_custom_call.1} parent=1 // pred_fallthru
      _
    // Predicated region
    $region26: #{tpu_custom_call.1} parent=1 // pred_check
      _
    $region27: #{tpu_custom_call.1} parent=1 // pred_check_branch
      %64 = sbr.rel (0) target = $region29
    $region28: #{tpu_custom_call.1} parent=1 // pred_region
      %66 = vsyncadd [#allocation9], 0
      %s67 = sshll.u32 %s6, 4
      %s68 = int_to_ptr.hbm [resolvable:$true] %s67
      %s69 = sshll.u32 [#allocation8], 4
      %s70 = int_to_ptr.vmem [resolvable:$true] %s69
      %75 = dma.hbm_to_vmem [thread:$0]  %s68, 1024, %s70, [#allocation9], 64, 64, 4
    $region29: #{tpu_custom_call.1} parent=1 // pred_fallthru
      _
    // Predicated region
    $region30: #{tpu_custom_call.1} parent=1 // pred_check
      _
    $region31: #{tpu_custom_call.1} parent=1 // pred_check_branch
      %77 = sbr.rel (0) target = $region33
    $region32: #{tpu_custom_call.1} parent=1 // pred_region
      _
    $region33: #{tpu_custom_call.1} parent=1 // pred_fallthru
      _
    // Predicated region
    $region34: #{tpu_custom_call.1} parent=1 // pred_check
      _
    $region35: #{tpu_custom_call.1} parent=1 // pred_check_branch
      %79 = sbr.rel (0) target = $region37
    $region36: #{tpu_custom_call.1} parent=1 // pred_region
      _
    $region37: #{tpu_custom_call.1} parent=1 // pred_fallthru
      _
    // Predicated region
    $region38: #{tpu_custom_call.1} parent=1 // pred_check
      _
    $region39: #{tpu_custom_call.1} parent=1 // pred_check_branch
      %81 = sbr.rel (0) target = $region41
    $region40: #{tpu_custom_call.1} parent=1 // pred_region
      %83 = dma.done [#allocation3], 4096
    $region41: #{tpu_custom_call.1} parent=1 // pred_fallthru
      _
    // Predicated region
    $region42: #{tpu_custom_call.1} parent=1 // pred_check
      _
    $region43: #{tpu_custom_call.1} parent=1 // pred_check_branch
      %85 = sbr.rel (0) target = $region45
    $region44: #{tpu_custom_call.1} parent=1 // pred_region
      %87 = dma.done [#allocation6], 1024
    $region45: #{tpu_custom_call.1} parent=1 // pred_fallthru
      _
    // Predicated region
    $region46: #{tpu_custom_call.1} parent=1 // pred_check
      _
    $region47: #{tpu_custom_call.1} parent=1 // pred_check_branch
      %89 = sbr.rel (0) target = $region49
    $region48: #{tpu_custom_call.1} parent=1 // pred_region
      %91 = dma.done [#allocation6], 256
    $region49: #{tpu_custom_call.1} parent=1 // pred_fallthru
      _
    // Predicated region
    $region50: #{tpu_custom_call.1} parent=1 // pred_check
      _
    $region51: #{tpu_custom_call.1} parent=1 // pred_check_branch
      %93 = sbr.rel (0) target = $region53
    $region52: #{tpu_custom_call.1} parent=1 // pred_region
      %95 = dma.done [#allocation9], 1024
    $region53: #{tpu_custom_call.1} parent=1 // pred_fallthru
      _
    %v96 = vld [vmem:[#allocation2] sm:$0xf]
    %v97 = vld [vmem:[#allocation2 + $0x4] sm:$0xf]
    %v98 = vld [vmem:[#allocation2 + $0x8] sm:$0xf]
    %v99 = vld [vmem:[#allocation2 + $0xc] sm:$0xf]
    %v100 = vld [vmem:[#allocation2 + $0x10] sm:$0xf]
    %v101 = vld [vmem:[#allocation2 + $0x14] sm:$0xf]
    %v102 = vld [vmem:[#allocation2 + $0x18] sm:$0xf]
    %v103 = vld [vmem:[#allocation2 + $0x1c] sm:$0xf]
    %v104 = vld [vmem:[#allocation2 + $0x20] sm:$0xf]
    %v105 = vld [vmem:[#allocation2 + $0x24] sm:$0xf]
    %v106 = vld [vmem:[#allocation2 + $0x28] sm:$0xf]
    %v107 = vld [vmem:[#allocation2 + $0x2c] sm:$0xf]
    %v108 = vld [vmem:[#allocation2 + $0x30] sm:$0xf]
    %v109 = vld [vmem:[#allocation2 + $0x34] sm:$0xf]
    %v110 = vld [vmem:[#allocation2 + $0x38] sm:$0xf]
    %v111 = vld [vmem:[#allocation2 + $0x3c] sm:$0xf]
    %v112 = vld [vmem:[#allocation2 + $0x40] sm:$0xf]
    %v113 = vld [vmem:[#allocation2 + $0x44] sm:$0xf]
    %v114 = vld [vmem:[#allocation2 + $0x48] sm:$0xf]
    %v115 = vld [vmem:[#allocation2 + $0x4c] sm:$0xf]
    %v116 = vld [vmem:[#allocation2 + $0x50] sm:$0xf]
    %v117 = vld [vmem:[#allocation2 + $0x54] sm:$0xf]
    %v118 = vld [vmem:[#allocation2 + $0x58] sm:$0xf]
    %v119 = vld [vmem:[#allocation2 + $0x5c] sm:$0xf]
    %v120 = vld [vmem:[#allocation2 + $0x60] sm:$0xf]
    %v121 = vld [vmem:[#allocation2 + $0x64] sm:$0xf]
    %v122 = vld [vmem:[#allocation2 + $0x68] sm:$0xf]
    %v123 = vld [vmem:[#allocation2 + $0x6c] sm:$0xf]
    %v124 = vld [vmem:[#allocation2 + $0x70] sm:$0xf]
    %v125 = vld [vmem:[#allocation2 + $0x74] sm:$0xf]
    %v126 = vld [vmem:[#allocation2 + $0x78] sm:$0xf]
    %v127 = vld [vmem:[#allocation2 + $0x7c] sm:$0xf]
    %v128 = vld [vmem:[#allocation2 + $0x80] sm:$0xf]
    %v129 = vld [vmem:[#allocation2 + $0x84] sm:$0xf]
    %v130 = vld [vmem:[#allocation2 + $0x88] sm:$0xf]
    %v131 = vld [vmem:[#allocation2 + $0x8c] sm:$0xf]
    %v132 = vld [vmem:[#allocation2 + $0x90] sm:$0xf]
    %v133 = vld [vmem:[#allocation2 + $0x94] sm:$0xf]
    %v134 = vld [vmem:[#allocation2 + $0x98] sm:$0xf]
    %v135 = vld [vmem:[#allocation2 + $0x9c] sm:$0xf]
    %v136 = vld [vmem:[#allocation2 + $0xa0] sm:$0xf]
    %v137 = vld [vmem:[#allocation2 + $0xa4] sm:$0xf]
    %v138 = vld [vmem:[#allocation2 + $0xa8] sm:$0xf]
    %v139 = vld [vmem:[#allocation2 + $0xac] sm:$0xf]
    %v140 = vld [vmem:[#allocation2 + $0xb0] sm:$0xf]
    %v141 = vld [vmem:[#allocation2 + $0xb4] sm:$0xf]
    %v142 = vld [vmem:[#allocation2 + $0xb8] sm:$0xf]
    %v143 = vld [vmem:[#allocation2 + $0xbc] sm:$0xf]
    %v144 = vld [vmem:[#allocation2 + $0xc0] sm:$0xf]
    %v145 = vld [vmem:[#allocation2 + $0xc4] sm:$0xf]
    %v146 = vld [vmem:[#allocation2 + $0xc8] sm:$0xf]
    %v147 = vld [vmem:[#allocation2 + $0xcc] sm:$0xf]
    %v148 = vld [vmem:[#allocation2 + $0xd0] sm:$0xf]
    %v149 = vld [vmem:[#allocation2 + $0xd4] sm:$0xf]
    %v150 = vld [vmem:[#allocation2 + $0xd8] sm:$0xf]
    %v151 = vld [vmem:[#allocation2 + $0xdc] sm:$0xf]
    %v152 = vld [vmem:[#allocation2 + $0xe0] sm:$0xf]
    %v153 = vld [vmem:[#allocation2 + $0xe4] sm:$0xf]
    %v154 = vld [vmem:[#allocation2 + $0xe8] sm:$0xf]
    %v155 = vld [vmem:[#allocation2 + $0xec] sm:$0xf]
    %v156 = vld [vmem:[#allocation2 + $0xf0] sm:$0xf]
    %v157 = vld [vmem:[#allocation2 + $0xf4] sm:$0xf]
    %v158 = vld [vmem:[#allocation2 + $0xf8] sm:$0xf]
    %v159 = vld [vmem:[#allocation2 + $0xfc] sm:$0xf]
    %v160 = vld [vmem:[#allocation5] sm:$0xf]
    %v161 = vld [vmem:[#allocation5 + $0x4] sm:$0xf]
    %v162 = vld [vmem:[#allocation5 + $0x8] sm:$0xf]
    %v163 = vld [vmem:[#allocation5 + $0xc] sm:$0xf]
    %v164 = vld [vmem:[#allocation5 + $0x10] sm:$0xf]
    %v165 = vld [vmem:[#allocation5 + $0x14] sm:$0xf]
    %v166 = vld [vmem:[#allocation5 + $0x18] sm:$0xf]
    %v167 = vld [vmem:[#allocation5 + $0x1c] sm:$0xf]
    %v168 = vld [vmem:[#allocation5 + $0x20] sm:$0xf]
    %v169 = vld [vmem:[#allocation5 + $0x24] sm:$0xf]
    %v170 = vld [vmem:[#allocation5 + $0x28] sm:$0xf]
    %v171 = vld [vmem:[#allocation5 + $0x2c] sm:$0xf]
    %v172 = vld [vmem:[#allocation5 + $0x30] sm:$0xf]
    %v173 = vld [vmem:[#allocation5 + $0x34] sm:$0xf]
    %v174 = vld [vmem:[#allocation5 + $0x38] sm:$0xf]
    %v175 = vld [vmem:[#allocation5 + $0x3c] sm:$0xf]
    %v240 = vunpack.c.l.b16 %v96
    %v241 = vunpack.c.l.b16 %v97
    %v242 = vunpack.c.l.b16 %v98
    %v243 = vunpack.c.l.b16 %v99
    %v244 = vunpack.c.l.b16 %v100
    %v245 = vunpack.c.l.b16 %v101
    %v246 = vunpack.c.l.b16 %v102
    %v247 = vunpack.c.l.b16 %v103
    %v248 = vunpack.c.l.b16 %v104
    %v249 = vunpack.c.l.b16 %v105
    %v250 = vunpack.c.l.b16 %v106
    %v251 = vunpack.c.l.b16 %v107
    %v252 = vunpack.c.l.b16 %v108
    %v253 = vunpack.c.l.b16 %v109
    %v254 = vunpack.c.l.b16 %v110
    %v255 = vunpack.c.l.b16 %v111
    %v256 = vunpack.c.l.b16 %v112
    %v257 = vunpack.c.l.b16 %v113
    %v258 = vunpack.c.l.b16 %v114
    %v259 = vunpack.c.l.b16 %v115
    %v260 = vunpack.c.l.b16 %v116
    %v261 = vunpack.c.l.b16 %v117
    %v262 = vunpack.c.l.b16 %v118
    %v263 = vunpack.c.l.b16 %v119
    %v264 = vunpack.c.l.b16 %v120
    %v265 = vunpack.c.l.b16 %v121
    %v266 = vunpack.c.l.b16 %v122
    %v267 = vunpack.c.l.b16 %v123
    %v268 = vunpack.c.l.b16 %v124
    %v269 = vunpack.c.l.b16 %v125
    %v270 = vunpack.c.l.b16 %v126
    %v271 = vunpack.c.l.b16 %v127
    %v272 = vunpack.c.l.b16 %v128
    %v273 = vunpack.c.l.b16 %v129
    %v274 = vunpack.c.l.b16 %v130
    %v275 = vunpack.c.l.b16 %v131
    %v276 = vunpack.c.l.b16 %v132
    %v277 = vunpack.c.l.b16 %v133
    %v278 = vunpack.c.l.b16 %v134
    %v279 = vunpack.c.l.b16 %v135
    %v280 = vunpack.c.l.b16 %v136
    %v281 = vunpack.c.l.b16 %v137
    %v282 = vunpack.c.l.b16 %v138
    %v283 = vunpack.c.l.b16 %v139
    %v284 = vunpack.c.l.b16 %v140
    %v285 = vunpack.c.l.b16 %v141
    %v286 = vunpack.c.l.b16 %v142
    %v287 = vunpack.c.l.b16 %v143
    %v288 = vunpack.c.l.b16 %v144
    %v289 = vunpack.c.l.b16 %v145
    %v290 = vunpack.c.l.b16 %v146
    %v291 = vunpack.c.l.b16 %v147
    %v292 = vunpack.c.l.b16 %v148
    %v293 = vunpack.c.l.b16 %v149
    %v294 = vunpack.c.l.b16 %v150
    %v295 = vunpack.c.l.b16 %v151
    %v296 = vunpack.c.l.b16 %v152
    %v297 = vunpack.c.l.b16 %v153
    %v298 = vunpack.c.l.b16 %v154
    %v299 = vunpack.c.l.b16 %v155
    %v300 = vunpack.c.l.b16 %v156
    %v301 = vunpack.c.l.b16 %v157
    %v302 = vunpack.c.l.b16 %v158
    %v303 = vunpack.c.l.b16 %v159
    %v304 = vpack.c.b16 %v241, %v240
    %v305 = vpack.c.b16 %v243, %v242
    %v306 = vpack.c.b16 %v245, %v244
    %v307 = vpack.c.b16 %v247, %v246
    %v308 = vpack.c.b16 %v249, %v248
    %v309 = vpack.c.b16 %v251, %v250
    %v310 = vpack.c.b16 %v253, %v252
    %v311 = vpack.c.b16 %v255, %v254
    %v312 = vpack.c.b16 %v257, %v256
    %v313 = vpack.c.b16 %v259, %v258
    %v314 = vpack.c.b16 %v261, %v260
    %v315 = vpack.c.b16 %v263, %v262
    %v316 = vpack.c.b16 %v265, %v264
    %v317 = vpack.c.b16 %v267, %v266
    %v318 = vpack.c.b16 %v269, %v268
    %v319 = vpack.c.b16 %v271, %v270
    %v320 = vpack.c.b16 %v273, %v272
    %v321 = vpack.c.b16 %v275, %v274
    %v322 = vpack.c.b16 %v277, %v276
    %v323 = vpack.c.b16 %v279, %v278
    %v324 = vpack.c.b16 %v281, %v280
    %v325 = vpack.c.b16 %v283, %v282
    %v326 = vpack.c.b16 %v285, %v284
    %v327 = vpack.c.b16 %v287, %v286
    %v328 = vpack.c.b16 %v289, %v288
    %v329 = vpack.c.b16 %v291, %v290
    %v330 = vpack.c.b16 %v293, %v292
    %v331 = vpack.c.b16 %v295, %v294
    %v332 = vpack.c.b16 %v297, %v296
    %v333 = vpack.c.b16 %v299, %v298
    %v334 = vpack.c.b16 %v301, %v300
    %v335 = vpack.c.b16 %v303, %v302
    %v384 = vunpack.c.l.b16 %v160
    %v385 = vunpack.c.l.b16 %v161
    %v386 = vunpack.c.l.b16 %v162
    %v387 = vunpack.c.l.b16 %v163
    %v388 = vunpack.c.l.b16 %v164
    %v389 = vunpack.c.l.b16 %v165
    %v390 = vunpack.c.l.b16 %v166
    %v391 = vunpack.c.l.b16 %v167
    %v392 = vunpack.c.l.b16 %v168
    %v393 = vunpack.c.l.b16 %v169
    %v394 = vunpack.c.l.b16 %v170
    %v395 = vunpack.c.l.b16 %v171
    %v396 = vunpack.c.l.b16 %v172
    %v397 = vunpack.c.l.b16 %v173
    %v398 = vunpack.c.l.b16 %v174
    %v399 = vunpack.c.l.b16 %v175
    %v400 = vpack.c.b16 %v385, %v384
    %v401 = vpack.c.b16 %v387, %v386
    %v402 = vpack.c.b16 %v389, %v388
    %v403 = vpack.c.b16 %v391, %v390
    %v404 = vpack.c.b16 %v393, %v392
    %v405 = vpack.c.b16 %v395, %v394
    %v406 = vpack.c.b16 %v397, %v396
    %v407 = vpack.c.b16 %v399, %v398
    %416 = vmatpush.bf16.msra.mxu0 %v407
    %417 = vmatpush.bf16.msra.mxu0 %v406
    %418 = vmatpush.bf16.msra.mxu0 %v405
    %419 = vmatpush.bf16.msra.mxu0 %v404
    %420 = vmatpush.bf16.msra.mxu0 %v403
    %421 = vmatpush.bf16.msra.mxu0 %v402
    %422 = vmatpush.bf16.msra.mxu0 %v401
    %423 = vmatpush.bf16.msra.mxu0 %v400
    %424 = vmatmul.bf16.gmra.mxu0 %v304
    %v425 = vpop.f32.mrf.mxu0
    %v426 = vadd.f32 0.0, %v425
    %v427 = vpop.f32.mrf.mxu0
    %v428 = vadd.f32 0.0, %v427
    %429 = vmatmul.bf16.gmra.mxu0 %v305
    %v430 = vpop.f32.mrf.mxu0
    %v431 = vadd.f32 0.0, %v430
    %v432 = vpop.f32.mrf.mxu0
    %v433 = vadd.f32 0.0, %v432
    %434 = vmatmul.bf16.gmra.mxu0 %v306
    %v435 = vpop.f32.mrf.mxu0
    %v436 = vadd.f32 0.0, %v435
    %v437 = vpop.f32.mrf.mxu0
    %v438 = vadd.f32 0.0, %v437
    %439 = vmatmul.bf16.gmra.mxu0 %v307
    %v440 = vpop.f32.mrf.mxu0
    %v441 = vadd.f32 0.0, %v440
    %v442 = vpop.f32.mrf.mxu0
    %v443 = vadd.f32 0.0, %v442
    %444 = vmatmul.bf16.gmra.mxu0 %v308
    %v445 = vpop.f32.mrf.mxu0
    %v446 = vadd.f32 0.0, %v445
    %v447 = vpop.f32.mrf.mxu0
    %v448 = vadd.f32 0.0, %v447
    %449 = vmatmul.bf16.gmra.mxu0 %v309
    %v450 = vpop.f32.mrf.mxu0
    %v451 = vadd.f32 0.0, %v450
    %v452 = vpop.f32.mrf.mxu0
    %v453 = vadd.f32 0.0, %v452
    %454 = vmatmul.bf16.gmra.mxu0 %v310
    %v455 = vpop.f32.mrf.mxu0
    %v456 = vadd.f32 0.0, %v455
    %v457 = vpop.f32.mrf.mxu0
    %v458 = vadd.f32 0.0, %v457
    %459 = vmatmul.bf16.gmra.mxu0 %v311
    %v460 = vpop.f32.mrf.mxu0
    %v461 = vadd.f32 0.0, %v460
    %v462 = vpop.f32.mrf.mxu0
    %v463 = vadd.f32 0.0, %v462
    %464 = vmatmul.bf16.gmra.mxu0 %v312
    %v465 = vpop.f32.mrf.mxu0
    %v466 = vadd.f32 0.0, %v465
    %v467 = vpop.f32.mrf.mxu0
    %v468 = vadd.f32 0.0, %v467
    %469 = vmatmul.bf16.gmra.mxu0 %v313
    %v470 = vpop.f32.mrf.mxu0
    %v471 = vadd.f32 0.0, %v470
    %v472 = vpop.f32.mrf.mxu0
    %v473 = vadd.f32 0.0, %v472
    %474 = vmatmul.bf16.gmra.mxu0 %v314
    %v475 = vpop.f32.mrf.mxu0
    %v476 = vadd.f32 0.0, %v475
    %v477 = vpop.f32.mrf.mxu0
    %v478 = vadd.f32 0.0, %v477
    %479 = vmatmul.bf16.gmra.mxu0 %v315
    %v480 = vpop.f32.mrf.mxu0
    %v481 = vadd.f32 0.0, %v480
    %v482 = vpop.f32.mrf.mxu0
    %v483 = vadd.f32 0.0, %v482
    %484 = vmatmul.bf16.gmra.mxu0 %v316
    %v485 = vpop.f32.mrf.mxu0
    %v486 = vadd.f32 0.0, %v485
    %v487 = vpop.f32.mrf.mxu0
    %v488 = vadd.f32 0.0, %v487
    %489 = vmatmul.bf16.gmra.mxu0 %v317
    %v490 = vpop.f32.mrf.mxu0
    %v491 = vadd.f32 0.0, %v490
    %v492 = vpop.f32.mrf.mxu0
    %v493 = vadd.f32 0.0, %v492
    %494 = vmatmul.bf16.gmra.mxu0 %v318
    %v495 = vpop.f32.mrf.mxu0
    %v496 = vadd.f32 0.0, %v495
    %v497 = vpop.f32.mrf.mxu0
    %v498 = vadd.f32 0.0, %v497
    %499 = vmatmul.bf16.gmra.mxu0 %v319
    %v500 = vpop.f32.mrf.mxu0
    %v501 = vadd.f32 0.0, %v500
    %v502 = vpop.f32.mrf.mxu0
    %v503 = vadd.f32 0.0, %v502
    %504 = vmatmul.bf16.gmra.mxu0 %v320
    %v505 = vpop.f32.mrf.mxu0
    %v506 = vadd.f32 0.0, %v505
    %v507 = vpop.f32.mrf.mxu0
    %v508 = vadd.f32 0.0, %v507
    %509 = vmatmul.bf16.gmra.mxu0 %v321
    %v510 = vpop.f32.mrf.mxu0
    %v511 = vadd.f32 0.0, %v510
    %v512 = vpop.f32.mrf.mxu0
    %v513 = vadd.f32 0.0, %v512
    %514 = vmatmul.bf16.gmra.mxu0 %v322
    %v515 = vpop.f32.mrf.mxu0
    %v516 = vadd.f32 0.0, %v515
    %v517 = vpop.f32.mrf.mxu0
    %v518 = vadd.f32 0.0, %v517
    %519 = vmatmul.bf16.gmra.mxu0 %v323
    %v520 = vpop.f32.mrf.mxu0
    %v521 = vadd.f32 0.0, %v520
    %v522 = vpop.f32.mrf.mxu0
    %v523 = vadd.f32 0.0, %v522
    %524 = vmatmul.bf16.gmra.mxu0 %v324
    %v525 = vpop.f32.mrf.mxu0
    %v526 = vadd.f32 0.0, %v525
    %v527 = vpop.f32.mrf.mxu0
    %v528 = vadd.f32 0.0, %v527
    %529 = vmatmul.bf16.gmra.mxu0 %v325
    %v530 = vpop.f32.mrf.mxu0
    %v531 = vadd.f32 0.0, %v530
    %v532 = vpop.f32.mrf.mxu0
    %v533 = vadd.f32 0.0, %v532
    %534 = vmatmul.bf16.gmra.mxu0 %v326
    %v535 = vpop.f32.mrf.mxu0
    %v536 = vadd.f32 0.0, %v535
    %v537 = vpop.f32.mrf.mxu0
    %v538 = vadd.f32 0.0, %v537
    %539 = vmatmul.bf16.gmra.mxu0 %v327
    %v540 = vpop.f32.mrf.mxu0
    %v541 = vadd.f32 0.0, %v540
    %v542 = vpop.f32.mrf.mxu0
    %v543 = vadd.f32 0.0, %v542
    %544 = vmatmul.bf16.gmra.mxu0 %v328
    %v545 = vpop.f32.mrf.mxu0
    %v546 = vadd.f32 0.0, %v545
    %v547 = vpop.f32.mrf.mxu0
    %v548 = vadd.f32 0.0, %v547
    %549 = vmatmul.bf16.gmra.mxu0 %v329
    %v550 = vpop.f32.mrf.mxu0
    %v551 = vadd.f32 0.0, %v550
    %v552 = vpop.f32.mrf.mxu0
    %v553 = vadd.f32 0.0, %v552
    %554 = vmatmul.bf16.gmra.mxu0 %v330
    %v555 = vpop.f32.mrf.mxu0
    %v556 = vadd.f32 0.0, %v555
    %v557 = vpop.f32.mrf.mxu0
    %v558 = vadd.f32 0.0, %v557
    %559 = vmatmul.bf16.gmra.mxu0 %v331
    %v560 = vpop.f32.mrf.mxu0
    %v561 = vadd.f32 0.0, %v560
    %v562 = vpop.f32.mrf.mxu0
    %v563 = vadd.f32 0.0, %v562
    %564 = vmatmul.bf16.gmra.mxu0 %v332
    %v565 = vpop.f32.mrf.mxu0
    %v566 = vadd.f32 0.0, %v565
    %v567 = vpop.f32.mrf.mxu0
    %v568 = vadd.f32 0.0, %v567
    %569 = vmatmul.bf16.gmra.mxu0 %v333
    %v570 = vpop.f32.mrf.mxu0
    %v571 = vadd.f32 0.0, %v570
    %v572 = vpop.f32.mrf.mxu0
    %v573 = vadd.f32 0.0, %v572
    %574 = vmatmul.bf16.gmra.mxu0 %v334
    %v575 = vpop.f32.mrf.mxu0
    %v576 = vadd.f32 0.0, %v575
    %v577 = vpop.f32.mrf.mxu0
    %v578 = vadd.f32 0.0, %v577
    %579 = vmatmul.bf16.gmra.mxu0 %v335
    %v580 = vpop.f32.mrf.mxu0
    %v581 = vadd.f32 0.0, %v580
    %v582 = vpop.f32.mrf.mxu0
    %v583 = vadd.f32 0.0, %v582
    %584 = vdwg.mxu0
    %v585 = vld [vmem:[%s2] sm:$0x1]
    %v587 = vperm.slane %v585, 0
    %v589 = vmul.f32 %v426, %v587
    %v590 = vmul.f32 %v428, %v587
    %v591 = vmul.f32 %v431, %v587
    %v592 = vmul.f32 %v433, %v587
    %v593 = vmul.f32 %v436, %v587
    %v594 = vmul.f32 %v438, %v587
    %v595 = vmul.f32 %v441, %v587
    %v596 = vmul.f32 %v443, %v587
    %v597 = vmul.f32 %v446, %v587
    %v598 = vmul.f32 %v448, %v587
    %v599 = vmul.f32 %v451, %v587
    %v600 = vmul.f32 %v453, %v587
    %v601 = vmul.f32 %v456, %v587
    %v602 = vmul.f32 %v458, %v587
    %v603 = vmul.f32 %v461, %v587
    %v604 = vmul.f32 %v463, %v587
    %v605 = vmul.f32 %v466, %v587
    %v606 = vmul.f32 %v468, %v587
    %v607 = vmul.f32 %v471, %v587
    %v608 = vmul.f32 %v473, %v587
    %v609 = vmul.f32 %v476, %v587
    %v610 = vmul.f32 %v478, %v587
    %v611 = vmul.f32 %v481, %v587
    %v612 = vmul.f32 %v483, %v587
    %v613 = vmul.f32 %v486, %v587
    %v614 = vmul.f32 %v488, %v587
    %v615 = vmul.f32 %v491, %v587
    %v616 = vmul.f32 %v493, %v587
    %v617 = vmul.f32 %v496, %v587
    %v618 = vmul.f32 %v498, %v587
    %v619 = vmul.f32 %v501, %v587
    %v620 = vmul.f32 %v503, %v587
    %v621 = vmul.f32 %v506, %v587
    %v622 = vmul.f32 %v508, %v587
    %v623 = vmul.f32 %v511, %v587
    %v624 = vmul.f32 %v513, %v587
    %v625 = vmul.f32 %v516, %v587
    %v626 = vmul.f32 %v518, %v587
    %v627 = vmul.f32 %v521, %v587
    %v628 = vmul.f32 %v523, %v587
    %v629 = vmul.f32 %v526, %v587
    %v630 = vmul.f32 %v528, %v587
    %v631 = vmul.f32 %v531, %v587
    %v632 = vmul.f32 %v533, %v587
    %v633 = vmul.f32 %v536, %v587
    %v634 = vmul.f32 %v538, %v587
    %v635 = vmul.f32 %v541, %v587
    %v636 = vmul.f32 %v543, %v587
    %v637 = vmul.f32 %v546, %v587
    %v638 = vmul.f32 %v548, %v587
    %v639 = vmul.f32 %v551, %v587
    %v640 = vmul.f32 %v553, %v587
    %v641 = vmul.f32 %v556, %v587
    %v642 = vmul.f32 %v558, %v587
    %v643 = vmul.f32 %v561, %v587
    %v644 = vmul.f32 %v563, %v587
    %v645 = vmul.f32 %v566, %v587
    %v646 = vmul.f32 %v568, %v587
    %v647 = vmul.f32 %v571, %v587
    %v648 = vmul.f32 %v573, %v587
    %v649 = vmul.f32 %v576, %v587
    %v650 = vmul.f32 %v578, %v587
    %v651 = vmul.f32 %v581, %v587
    %v652 = vmul.f32 %v583, %v587
    %v653 = vld [vmem:[%s3] sm:$0x1]
    %v655 = vperm.slane %v653, 0
    %v657 = vadd.f32 %v589, %v655
    %v658 = vadd.f32 %v590, %v655
    %v659 = vadd.f32 %v591, %v655
    %v660 = vadd.f32 %v592, %v655
    %v661 = vadd.f32 %v593, %v655
    %v662 = vadd.f32 %v594, %v655
    %v663 = vadd.f32 %v595, %v655
    %v664 = vadd.f32 %v596, %v655
    %v665 = vadd.f32 %v597, %v655
    %v666 = vadd.f32 %v598, %v655
    %v667 = vadd.f32 %v599, %v655
    %v668 = vadd.f32 %v600, %v655
    %v669 = vadd.f32 %v601, %v655
    %v670 = vadd.f32 %v602, %v655
    %v671 = vadd.f32 %v603, %v655
    %v672 = vadd.f32 %v604, %v655
    %v673 = vadd.f32 %v605, %v655
    %v674 = vadd.f32 %v606, %v655
    %v675 = vadd.f32 %v607, %v655
    %v676 = vadd.f32 %v608, %v655
    %v677 = vadd.f32 %v609, %v655
    %v678 = vadd.f32 %v610, %v655
    %v679 = vadd.f32 %v611, %v655
    %v680 = vadd.f32 %v612, %v655
    %v681 = vadd.f32 %v613, %v655
    %v682 = vadd.f32 %v614, %v655
    %v683 = vadd.f32 %v615, %v655
    %v684 = vadd.f32 %v616, %v655
    %v685 = vadd.f32 %v617, %v655
    %v686 = vadd.f32 %v618, %v655
    %v687 = vadd.f32 %v619, %v655
    %v688 = vadd.f32 %v620, %v655
    %v689 = vadd.f32 %v621, %v655
    %v690 = vadd.f32 %v622, %v655
    %v691 = vadd.f32 %v623, %v655
    %v692 = vadd.f32 %v624, %v655
    %v693 = vadd.f32 %v625, %v655
    %v694 = vadd.f32 %v626, %v655
    %v695 = vadd.f32 %v627, %v655
    %v696 = vadd.f32 %v628, %v655
    %v697 = vadd.f32 %v629, %v655
    %v698 = vadd.f32 %v630, %v655
    %v699 = vadd.f32 %v631, %v655
    %v700 = vadd.f32 %v632, %v655
    %v701 = vadd.f32 %v633, %v655
    %v702 = vadd.f32 %v634, %v655
    %v703 = vadd.f32 %v635, %v655
    %v704 = vadd.f32 %v636, %v655
    %v705 = vadd.f32 %v637, %v655
    %v706 = vadd.f32 %v638, %v655
    %v707 = vadd.f32 %v639, %v655
    %v708 = vadd.f32 %v640, %v655
    %v709 = vadd.f32 %v641, %v655
    %v710 = vadd.f32 %v642, %v655
    %v711 = vadd.f32 %v643, %v655
    %v712 = vadd.f32 %v644, %v655
    %v713 = vadd.f32 %v645, %v655
    %v714 = vadd.f32 %v646, %v655
    %v715 = vadd.f32 %v647, %v655
    %v716 = vadd.f32 %v648, %v655
    %v717 = vadd.f32 %v649, %v655
    %v718 = vadd.f32 %v650, %v655
    %v719 = vadd.f32 %v651, %v655
    %v720 = vadd.f32 %v652, %v655
    %v721 = vmax.f32 %v657, 0.0
    %v722 = vmax.f32 %v658, 0.0
    %v723 = vmax.f32 %v659, 0.0
    %v724 = vmax.f32 %v660, 0.0
    %v725 = vmax.f32 %v661, 0.0
    %v726 = vmax.f32 %v662, 0.0
    %v727 = vmax.f32 %v663, 0.0
    %v728 = vmax.f32 %v664, 0.0
    %v729 = vmax.f32 %v665, 0.0
    %v730 = vmax.f32 %v666, 0.0
    %v731 = vmax.f32 %v667, 0.0
    %v732 = vmax.f32 %v668, 0.0
    %v733 = vmax.f32 %v669, 0.0
    %v734 = vmax.f32 %v670, 0.0
    %v735 = vmax.f32 %v671, 0.0
    %v736 = vmax.f32 %v672, 0.0
    %v737 = vmax.f32 %v673, 0.0
    %v738 = vmax.f32 %v674, 0.0
    %v739 = vmax.f32 %v675, 0.0
    %v740 = vmax.f32 %v676, 0.0
    %v741 = vmax.f32 %v677, 0.0
    %v742 = vmax.f32 %v678, 0.0
    %v743 = vmax.f32 %v679, 0.0
    %v744 = vmax.f32 %v680, 0.0
    %v745 = vmax.f32 %v681, 0.0
    %v746 = vmax.f32 %v682, 0.0
    %v747 = vmax.f32 %v683, 0.0
    %v748 = vmax.f32 %v684, 0.0
    %v749 = vmax.f32 %v685, 0.0
    %v750 = vmax.f32 %v686, 0.0
    %v751 = vmax.f32 %v687, 0.0
    %v752 = vmax.f32 %v688, 0.0
    %v753 = vmax.f32 %v689, 0.0
    %v754 = vmax.f32 %v690, 0.0
    %v755 = vmax.f32 %v691, 0.0
    %v756 = vmax.f32 %v692, 0.0
    %v757 = vmax.f32 %v693, 0.0
    %v758 = vmax.f32 %v694, 0.0
    %v759 = vmax.f32 %v695, 0.0
    %v760 = vmax.f32 %v696, 0.0
    %v761 = vmax.f32 %v697, 0.0
    %v762 = vmax.f32 %v698, 0.0
    %v763 = vmax.f32 %v699, 0.0
    %v764 = vmax.f32 %v700, 0.0
    %v765 = vmax.f32 %v701, 0.0
    %v766 = vmax.f32 %v702, 0.0
    %v767 = vmax.f32 %v703, 0.0
    %v768 = vmax.f32 %v704, 0.0
    %v769 = vmax.f32 %v705, 0.0
    %v770 = vmax.f32 %v706, 0.0
    %v771 = vmax.f32 %v707, 0.0
    %v772 = vmax.f32 %v708, 0.0
    %v773 = vmax.f32 %v709, 0.0
    %v774 = vmax.f32 %v710, 0.0
    %v775 = vmax.f32 %v711, 0.0
    %v776 = vmax.f32 %v712, 0.0
    %v777 = vmax.f32 %v713, 0.0
    %v778 = vmax.f32 %v714, 0.0
    %v779 = vmax.f32 %v715, 0.0
    %v780 = vmax.f32 %v716, 0.0
    %v781 = vmax.f32 %v717, 0.0
    %v782 = vmax.f32 %v718, 0.0
    %v783 = vmax.f32 %v719, 0.0
    %v784 = vmax.f32 %v720, 0.0
    %v785 = vlaneseq
    %v786 = vshrl.u32 %v785, 7
    %v787 = vadd.s32 %v786, 8
    %vm788 = vcmp.ge.s32.totalorder %v786, 1
    %vm789 = vcmp.ge.s32.totalorder %v787, 1
    %vm790 = vcmp.lt.s32.totalorder %v786, 15
    %vm791 = vcmp.lt.s32.totalorder %v787, 15
    %v792 = vrot.slane %v721, 7
    %v793 = vrot.slane %v722, 7
    %v794 = vrot.slane %v723, 7
    %v795 = vrot.slane %v724, 7
    %v796 = vrot.slane %v725, 7
    %v797 = vrot.slane %v726, 7
    %v798 = vrot.slane %v727, 7
    %v799 = vrot.slane %v728, 7
    %v800 = vrot.slane %v729, 7
    %v801 = vrot.slane %v730, 7
    %v802 = vrot.slane %v731, 7
    %v803 = vrot.slane %v732, 7
    %v804 = vrot.slane %v733, 7
    %v805 = vrot.slane %v734, 7
    %v806 = vrot.slane %v735, 7
    %v807 = vrot.slane %v736, 7
    %v808 = vrot.slane %v737, 7
    %v809 = vrot.slane %v738, 7
    %v810 = vrot.slane %v739, 7
    %v811 = vrot.slane %v740, 7
    %v812 = vrot.slane %v741, 7
    %v813 = vrot.slane %v742, 7
    %v814 = vrot.slane %v743, 7
    %v815 = vrot.slane %v744, 7
    %v816 = vrot.slane %v745, 7
    %v817 = vrot.slane %v746, 7
    %v818 = vrot.slane %v747, 7
    %v819 = vrot.slane %v748, 7
    %v820 = vrot.slane %v749, 7
    %v821 = vrot.slane %v750, 7
    %v822 = vrot.slane %v752, 7
    %v823 = vrot.slane %v753, 7
    %v824 = vrot.slane %v754, 7
    %v825 = vrot.slane %v755, 7
    %v826 = vrot.slane %v756, 7
    %v827 = vrot.slane %v757, 7
    %v828 = vrot.slane %v758, 7
    %v829 = vrot.slane %v759, 7
    %v830 = vrot.slane %v760, 7
    %v831 = vrot.slane %v761, 7
    %v832 = vrot.slane %v762, 7
    %v833 = vrot.slane %v763, 7
    %v834 = vrot.slane %v764, 7
    %v835 = vrot.slane %v765, 7
    %v836 = vrot.slane %v766, 7
    %v837 = vrot.slane %v767, 7
    %v838 = vrot.slane %v768, 7
    %v839 = vrot.slane %v769, 7
    %v840 = vrot.slane %v770, 7
    %v841 = vrot.slane %v771, 7
    %v842 = vrot.slane %v772, 7
    %v843 = vrot.slane %v773, 7
    %v844 = vrot.slane %v774, 7
    %v845 = vrot.slane %v775, 7
    %v846 = vrot.slane %v776, 7
    %v847 = vrot.slane %v777, 7
    %v848 = vrot.slane %v778, 7
    %v849 = vrot.slane %v779, 7
    %v850 = vrot.slane %v780, 7
    %v851 = vrot.slane %v781, 7
    %v852 = vrot.slane %v782, 7
    %v853 = vrot.slane %v784, 7
    %vm854 = vcmp.lt.s32.totalorder %v786, 1
    %v855 = vsel %vm854, %v851, %v852
    %v856 = vsel %vm854, %v850, %v851
    %v857 = vsel %vm854, %v849, %v850
    %v858 = vsel %vm854, %v848, %v849
    %v859 = vsel %vm854, %v847, %v848
    %v860 = vsel %vm854, %v846, %v847
    %v861 = vsel %vm854, %v845, %v846
    %v862 = vsel %vm854, %v844, %v845
    %v863 = vsel %vm854, %v843, %v844
    %v864 = vsel %vm854, %v842, %v843
    %v865 = vsel %vm854, %v841, %v842
    %v866 = vsel %vm854, %v840, %v841
    %v867 = vsel %vm854, %v839, %v840
    %v868 = vsel %vm854, %v838, %v839
    %v869 = vsel %vm854, %v837, %v838
    %v870 = vsel %vm854, %v836, %v837
    %v871 = vsel %vm854, %v835, %v836
    %v872 = vsel %vm854, %v834, %v835
    %v873 = vsel %vm854, %v833, %v834
    %v874 = vsel %vm854, %v832, %v833
    %v875 = vsel %vm854, %v831, %v832
    %v876 = vsel %vm854, %v830, %v831
    %v877 = vsel %vm854, %v829, %v830
    %v878 = vsel %vm854, %v828, %v829
    %v879 = vsel %vm854, %v827, %v828
    %v880 = vsel %vm854, %v826, %v827
    %v881 = vsel %vm854, %v825, %v826
    %v882 = vsel %vm854, %v824, %v825
    %v883 = vsel %vm854, %v823, %v824
    %v884 = vsel %vm854, %v822, %v823
    %v885 = vsel %vm854, %v820, %v821
    %v886 = vsel %vm854, %v819, %v820
    %v887 = vsel %vm854, %v818, %v819
    %v888 = vsel %vm854, %v817, %v818
    %v889 = vsel %vm854, %v816, %v817
    %v890 = vsel %vm854, %v815, %v816
    %v891 = vsel %vm854, %v814, %v815
    %v892 = vsel %vm854, %v813, %v814
    %v893 = vsel %vm854, %v812, %v813
    %v894 = vsel %vm854, %v811, %v812
    %v895 = vsel %vm854, %v810, %v811
    %v896 = vsel %vm854, %v809, %v810
    %v897 = vsel %vm854, %v808, %v809
    %v898 = vsel %vm854, %v807, %v808
    %v899 = vsel %vm854, %v806, %v807
    %v900 = vsel %vm854, %v805, %v806
    %v901 = vsel %vm854, %v804, %v805
    %v902 = vsel %vm854, %v803, %v804
    %v903 = vsel %vm854, %v802, %v803
    %v904 = vsel %vm854, %v801, %v802
    %v905 = vsel %vm854, %v800, %v801
    %v906 = vsel %vm854, %v799, %v800
    %v907 = vsel %vm854, %v798, %v799
    %v908 = vsel %vm854, %v797, %v798
    %v909 = vsel %vm854, %v796, %v797
    %v910 = vsel %vm854, %v795, %v796
    %v911 = vsel %vm854, %v794, %v795
    %v912 = vsel %vm854, %v793, %v794
    %v913 = vsel %vm854, %v792, %v793
    %v914 = vsel %vm854, %v853, %v792
    %v915 = vsel %vm788, %v914, 0.0
    %v916 = vsel %vm789, %v913, 0.0
    %v917 = vsel %vm788, %v912, 0.0
    %v918 = vsel %vm789, %v911, 0.0
    %v919 = vsel %vm788, %v910, 0.0
    %v920 = vsel %vm789, %v909, 0.0
    %v921 = vsel %vm788, %v908, 0.0
    %v922 = vsel %vm789, %v907, 0.0
    %v923 = vsel %vm788, %v906, 0.0
    %v924 = vsel %vm789, %v905, 0.0
    %v925 = vsel %vm788, %v904, 0.0
    %v926 = vsel %vm789, %v903, 0.0
    %v927 = vsel %vm788, %v902, 0.0
    %v928 = vsel %vm789, %v901, 0.0
    %v929 = vsel %vm788, %v900, 0.0
    %v930 = vsel %vm789, %v899, 0.0
    %v931 = vsel %vm788, %v898, 0.0
    %v932 = vsel %vm789, %v897, 0.0
    %v933 = vsel %vm788, %v896, 0.0
    %v934 = vsel %vm789, %v895, 0.0
    %v935 = vsel %vm788, %v894, 0.0
    %v936 = vsel %vm789, %v893, 0.0
    %v937 = vsel %vm788, %v892, 0.0
    %v938 = vsel %vm789, %v891, 0.0
    %v939 = vsel %vm788, %v890, 0.0
    %v940 = vsel %vm789, %v889, 0.0
    %v941 = vsel %vm788, %v888, 0.0
    %v942 = vsel %vm789, %v887, 0.0
    %v943 = vsel %vm788, %v886, 0.0
    %v944 = vsel %vm789, %v885, 0.0
    %v945 = vsel %vm788, %v884, 0.0
    %v946 = vsel %vm789, %v883, 0.0
    %v947 = vsel %vm788, %v882, 0.0
    %v948 = vsel %vm789, %v881, 0.0
    %v949 = vsel %vm788, %v880, 0.0
    %v950 = vsel %vm789, %v879, 0.0
    %v951 = vsel %vm788, %v878, 0.0
    %v952 = vsel %vm789, %v877, 0.0
    %v953 = vsel %vm788, %v876, 0.0
    %v954 = vsel %vm789, %v875, 0.0
    %v955 = vsel %vm788, %v874, 0.0
    %v956 = vsel %vm789, %v873, 0.0
    %v957 = vsel %vm788, %v872, 0.0
    %v958 = vsel %vm789, %v871, 0.0
    %v959 = vsel %vm788, %v870, 0.0
    %v960 = vsel %vm789, %v869, 0.0
    %v961 = vsel %vm788, %v868, 0.0
    %v962 = vsel %vm789, %v867, 0.0
    %v963 = vsel %vm788, %v866, 0.0
    %v964 = vsel %vm789, %v865, 0.0
    %v965 = vsel %vm788, %v864, 0.0
    %v966 = vsel %vm789, %v863, 0.0
    %v967 = vsel %vm788, %v862, 0.0
    %v968 = vsel %vm789, %v861, 0.0
    %v969 = vsel %vm788, %v860, 0.0
    %v970 = vsel %vm789, %v859, 0.0
    %v971 = vsel %vm788, %v858, 0.0
    %v972 = vsel %vm789, %v857, 0.0
    %v973 = vsel %vm788, %v856, 0.0
    %v974 = vsel %vm789, %v855, 0.0
    %v975 = vld [vmem:[#allocation7] sm:$0x1]
    %v976 = vperm.slane %v975, 0
    %v977 = vmul.f32 %v976, 0.0
    %v978 = vmul.f32 %v915, %v976
    %v979 = vmul.f32 %v916, %v976
    %v980 = vmul.f32 %v917, %v976
    %v981 = vmul.f32 %v918, %v976
    %v982 = vmul.f32 %v919, %v976
    %v983 = vmul.f32 %v920, %v976
    %v984 = vmul.f32 %v921, %v976
    %v985 = vmul.f32 %v922, %v976
    %v986 = vmul.f32 %v923, %v976
    %v987 = vmul.f32 %v924, %v976
    %v988 = vmul.f32 %v925, %v976
    %v989 = vmul.f32 %v926, %v976
    %v990 = vmul.f32 %v927, %v976
    %v991 = vmul.f32 %v928, %v976
    %v992 = vmul.f32 %v929, %v976
    %v993 = vmul.f32 %v930, %v976
    %v994 = vmul.f32 %v931, %v976
    %v995 = vmul.f32 %v932, %v976
    %v996 = vmul.f32 %v933, %v976
    %v997 = vmul.f32 %v934, %v976
    %v998 = vmul.f32 %v935, %v976
    %v999 = vmul.f32 %v936, %v976
    %v1000 = vmul.f32 %v937, %v976
    %v1001 = vmul.f32 %v938, %v976
    %v1002 = vmul.f32 %v939, %v976
    %v1003 = vmul.f32 %v940, %v976
    %v1004 = vmul.f32 %v941, %v976
    %v1005 = vmul.f32 %v942, %v976
    %v1006 = vmul.f32 %v943, %v976
    %v1007 = vmul.f32 %v944, %v976
    %v1008 = vmul.f32 %v945, %v976
    %v1009 = vmul.f32 %v946, %v976
    %v1010 = vmul.f32 %v947, %v976
    %v1011 = vmul.f32 %v948, %v976
    %v1012 = vmul.f32 %v949, %v976
    %v1013 = vmul.f32 %v950, %v976
    %v1014 = vmul.f32 %v951, %v976
    %v1015 = vmul.f32 %v952, %v976
    %v1016 = vmul.f32 %v953, %v976
    %v1017 = vmul.f32 %v954, %v976
    %v1018 = vmul.f32 %v955, %v976
    %v1019 = vmul.f32 %v956, %v976
    %v1020 = vmul.f32 %v957, %v976
    %v1021 = vmul.f32 %v958, %v976
    %v1022 = vmul.f32 %v959, %v976
    %v1023 = vmul.f32 %v960, %v976
    %v1024 = vmul.f32 %v961, %v976
    %v1025 = vmul.f32 %v962, %v976
    %v1026 = vmul.f32 %v963, %v976
    %v1027 = vmul.f32 %v964, %v976
    %v1028 = vmul.f32 %v965, %v976
    %v1029 = vmul.f32 %v966, %v976
    %v1030 = vmul.f32 %v967, %v976
    %v1031 = vmul.f32 %v968, %v976
    %v1032 = vmul.f32 %v969, %v976
    %v1033 = vmul.f32 %v970, %v976
    %v1034 = vmul.f32 %v971, %v976
    %v1035 = vmul.f32 %v972, %v976
    %v1036 = vmul.f32 %v973, %v976
    %v1037 = vmul.f32 %v974, %v976
    %v1038 = vld [vmem:[#allocation7 + $0x1] sm:$0x1]
    %v1039 = vperm.slane %v1038, 0
    %v1040 = vmul.f32 %v1039, 0.0
    %v1041 = vmul.f32 %v721, %v1039
    %v1042 = vmul.f32 %v722, %v1039
    %v1043 = vmul.f32 %v723, %v1039
    %v1044 = vmul.f32 %v724, %v1039
    %v1045 = vmul.f32 %v725, %v1039
    %v1046 = vmul.f32 %v726, %v1039
    %v1047 = vmul.f32 %v727, %v1039
    %v1048 = vmul.f32 %v728, %v1039
    %v1049 = vmul.f32 %v729, %v1039
    %v1050 = vmul.f32 %v730, %v1039
    %v1051 = vmul.f32 %v731, %v1039
    %v1052 = vmul.f32 %v732, %v1039
    %v1053 = vmul.f32 %v733, %v1039
    %v1054 = vmul.f32 %v734, %v1039
    %v1055 = vmul.f32 %v735, %v1039
    %v1056 = vmul.f32 %v736, %v1039
    %v1057 = vmul.f32 %v737, %v1039
    %v1058 = vmul.f32 %v738, %v1039
    %v1059 = vmul.f32 %v739, %v1039
    %v1060 = vmul.f32 %v740, %v1039
    %v1061 = vmul.f32 %v741, %v1039
    %v1062 = vmul.f32 %v742, %v1039
    %v1063 = vmul.f32 %v743, %v1039
    %v1064 = vmul.f32 %v744, %v1039
    %v1065 = vmul.f32 %v745, %v1039
    %v1066 = vmul.f32 %v746, %v1039
    %v1067 = vmul.f32 %v747, %v1039
    %v1068 = vmul.f32 %v748, %v1039
    %v1069 = vmul.f32 %v749, %v1039
    %v1070 = vmul.f32 %v750, %v1039
    %v1071 = vmul.f32 %v753, %v1039
    %v1072 = vmul.f32 %v754, %v1039
    %v1073 = vmul.f32 %v755, %v1039
    %v1074 = vmul.f32 %v756, %v1039
    %v1075 = vmul.f32 %v757, %v1039
    %v1076 = vmul.f32 %v758, %v1039
    %v1077 = vmul.f32 %v759, %v1039
    %v1078 = vmul.f32 %v760, %v1039
    %v1079 = vmul.f32 %v761, %v1039
    %v1080 = vmul.f32 %v762, %v1039
    %v1081 = vmul.f32 %v763, %v1039
    %v1082 = vmul.f32 %v764, %v1039
    %v1083 = vmul.f32 %v765, %v1039
    %v1084 = vmul.f32 %v766, %v1039
    %v1085 = vmul.f32 %v767, %v1039
    %v1086 = vmul.f32 %v768, %v1039
    %v1087 = vmul.f32 %v769, %v1039
    %v1088 = vmul.f32 %v770, %v1039
    %v1089 = vmul.f32 %v771, %v1039
    %v1090 = vmul.f32 %v772, %v1039
    %v1091 = vmul.f32 %v773, %v1039
    %v1092 = vmul.f32 %v774, %v1039
    %v1093 = vmul.f32 %v775, %v1039
    %v1094 = vmul.f32 %v776, %v1039
    %v1095 = vmul.f32 %v777, %v1039
    %v1096 = vmul.f32 %v778, %v1039
    %v1097 = vmul.f32 %v779, %v1039
    %v1098 = vmul.f32 %v780, %v1039
    %v1099 = vmul.f32 %v781, %v1039
    %v1100 = vmul.f32 %v782, %v1039
    %v1101 = vadd.f32 %v977, %v1040
    %v1102 = vadd.f32 %v978, %v1041
    %v1103 = vadd.f32 %v979, %v1042
    %v1104 = vadd.f32 %v980, %v1043
    %v1105 = vadd.f32 %v981, %v1044
    %v1106 = vadd.f32 %v982, %v1045
    %v1107 = vadd.f32 %v983, %v1046
    %v1108 = vadd.f32 %v984, %v1047
    %v1109 = vadd.f32 %v985, %v1048
    %v1110 = vadd.f32 %v986, %v1049
    %v1111 = vadd.f32 %v987, %v1050
    %v1112 = vadd.f32 %v988, %v1051
    %v1113 = vadd.f32 %v989, %v1052
    %v1114 = vadd.f32 %v990, %v1053
    %v1115 = vadd.f32 %v991, %v1054
    %v1116 = vadd.f32 %v992, %v1055
    %v1117 = vadd.f32 %v993, %v1056
    %v1118 = vadd.f32 %v994, %v1057
    %v1119 = vadd.f32 %v995, %v1058
    %v1120 = vadd.f32 %v996, %v1059
    %v1121 = vadd.f32 %v997, %v1060
    %v1122 = vadd.f32 %v998, %v1061
    %v1123 = vadd.f32 %v999, %v1062
    %v1124 = vadd.f32 %v1000, %v1063
    %v1125 = vadd.f32 %v1001, %v1064
    %v1126 = vadd.f32 %v1002, %v1065
    %v1127 = vadd.f32 %v1003, %v1066
    %v1128 = vadd.f32 %v1004, %v1067
    %v1129 = vadd.f32 %v1005, %v1068
    %v1130 = vadd.f32 %v1006, %v1069
    %v1131 = vadd.f32 %v1007, %v1070
    %v1132 = vadd.f32 %v1008, %v1071
    %v1133 = vadd.f32 %v1009, %v1072
    %v1134 = vadd.f32 %v1010, %v1073
    %v1135 = vadd.f32 %v1011, %v1074
    %v1136 = vadd.f32 %v1012, %v1075
    %v1137 = vadd.f32 %v1013, %v1076
    %v1138 = vadd.f32 %v1014, %v1077
    %v1139 = vadd.f32 %v1015, %v1078
    %v1140 = vadd.f32 %v1016, %v1079
    %v1141 = vadd.f32 %v1017, %v1080
    %v1142 = vadd.f32 %v1018, %v1081
    %v1143 = vadd.f32 %v1019, %v1082
    %v1144 = vadd.f32 %v1020, %v1083
    %v1145 = vadd.f32 %v1021, %v1084
    %v1146 = vadd.f32 %v1022, %v1085
    %v1147 = vadd.f32 %v1023, %v1086
    %v1148 = vadd.f32 %v1024, %v1087
    %v1149 = vadd.f32 %v1025, %v1088
    %v1150 = vadd.f32 %v1026, %v1089
    %v1151 = vadd.f32 %v1027, %v1090
    %v1152 = vadd.f32 %v1028, %v1091
    %v1153 = vadd.f32 %v1029, %v1092
    %v1154 = vadd.f32 %v1030, %v1093
    %v1155 = vadd.f32 %v1031, %v1094
    %v1156 = vadd.f32 %v1032, %v1095
    %v1157 = vadd.f32 %v1033, %v1096
    %v1158 = vadd.f32 %v1034, %v1097
    %v1159 = vadd.f32 %v1035, %v1098
    %v1160 = vadd.f32 %v1036, %v1099
    %v1161 = vadd.f32 %v1037, %v1100
    %v1162 = vrot.slane %v721, 1
    %v1163 = vrot.slane %v722, 1
    %v1164 = vrot.slane %v723, 1
    %v1165 = vrot.slane %v724, 1
    %v1166 = vrot.slane %v725, 1
    %v1167 = vrot.slane %v726, 1
    %v1168 = vrot.slane %v727, 1
    %v1169 = vrot.slane %v728, 1
    %v1170 = vrot.slane %v729, 1
    %v1171 = vrot.slane %v730, 1
    %v1172 = vrot.slane %v731, 1
    %v1173 = vrot.slane %v732, 1
    %v1174 = vrot.slane %v733, 1
    %v1175 = vrot.slane %v734, 1
    %v1176 = vrot.slane %v735, 1
    %v1177 = vrot.slane %v736, 1
    %v1178 = vrot.slane %v737, 1
    %v1179 = vrot.slane %v738, 1
    %v1180 = vrot.slane %v739, 1
    %v1181 = vrot.slane %v740, 1
    %v1182 = vrot.slane %v741, 1
    %v1183 = vrot.slane %v742, 1
    %v1184 = vrot.slane %v743, 1
    %v1185 = vrot.slane %v744, 1
    %v1186 = vrot.slane %v745, 1
    %v1187 = vrot.slane %v746, 1
    %v1188 = vrot.slane %v747, 1
    %v1189 = vrot.slane %v748, 1
    %v1190 = vrot.slane %v749, 1
    %v1191 = vrot.slane %v750, 1
    %v1192 = vrot.slane %v751, 1
    %v1193 = vrot.slane %v753, 1
    %v1194 = vrot.slane %v754, 1
    %v1195 = vrot.slane %v755, 1
    %v1196 = vrot.slane %v756, 1
    %v1197 = vrot.slane %v757, 1
    %v1198 = vrot.slane %v758, 1
    %v1199 = vrot.slane %v759, 1
    %v1200 = vrot.slane %v760, 1
    %v1201 = vrot.slane %v761, 1
    %v1202 = vrot.slane %v762, 1
    %v1203 = vrot.slane %v763, 1
    %v1204 = vrot.slane %v764, 1
    %v1205 = vrot.slane %v765, 1
    %v1206 = vrot.slane %v766, 1
    %v1207 = vrot.slane %v767, 1
    %v1208 = vrot.slane %v768, 1
    %v1209 = vrot.slane %v769, 1
    %v1210 = vrot.slane %v770, 1
    %v1211 = vrot.slane %v771, 1
    %v1212 = vrot.slane %v772, 1
    %v1213 = vrot.slane %v773, 1
    %v1214 = vrot.slane %v774, 1
    %v1215 = vrot.slane %v775, 1
    %v1216 = vrot.slane %v776, 1
    %v1217 = vrot.slane %v777, 1
    %v1218 = vrot.slane %v778, 1
    %v1219 = vrot.slane %v779, 1
    %v1220 = vrot.slane %v780, 1
    %v1221 = vrot.slane %v781, 1
    %v1222 = vrot.slane %v782, 1
    %v1223 = vrot.slane %v783, 1
    %vm1224 = vcmp.lt.s32.totalorder %v786, 7
    %v1225 = vsel %vm1224, %v1222, %v1223
    %v1226 = vsel %vm1224, %v1221, %v1222
    %v1227 = vsel %vm1224, %v1220, %v1221
    %v1228 = vsel %vm1224, %v1219, %v1220
    %v1229 = vsel %vm1224, %v1218, %v1219
    %v1230 = vsel %vm1224, %v1217, %v1218
    %v1231 = vsel %vm1224, %v1216, %v1217
    %v1232 = vsel %vm1224, %v1215, %v1216
    %v1233 = vsel %vm1224, %v1214, %v1215
    %v1234 = vsel %vm1224, %v1213, %v1214
    %v1235 = vsel %vm1224, %v1212, %v1213
    %v1236 = vsel %vm1224, %v1211, %v1212
    %v1237 = vsel %vm1224, %v1210, %v1211
    %v1238 = vsel %vm1224, %v1209, %v1210
    %v1239 = vsel %vm1224, %v1208, %v1209
    %v1240 = vsel %vm1224, %v1207, %v1208
    %v1241 = vsel %vm1224, %v1206, %v1207
    %v1242 = vsel %vm1224, %v1205, %v1206
    %v1243 = vsel %vm1224, %v1204, %v1205
    %v1244 = vsel %vm1224, %v1203, %v1204
    %v1245 = vsel %vm1224, %v1202, %v1203
    %v1246 = vsel %vm1224, %v1201, %v1202
    %v1247 = vsel %vm1224, %v1200, %v1201
    %v1248 = vsel %vm1224, %v1199, %v1200
    %v1249 = vsel %vm1224, %v1198, %v1199
    %v1250 = vsel %vm1224, %v1197, %v1198
    %v1251 = vsel %vm1224, %v1196, %v1197
    %v1252 = vsel %vm1224, %v1195, %v1196
    %v1253 = vsel %vm1224, %v1194, %v1195
    %v1254 = vsel %vm1224, %v1193, %v1194
    %v1255 = vsel %vm1224, %v1191, %v1192
    %v1256 = vsel %vm1224, %v1190, %v1191
    %v1257 = vsel %vm1224, %v1189, %v1190
    %v1258 = vsel %vm1224, %v1188, %v1189
    %v1259 = vsel %vm1224, %v1187, %v1188
    %v1260 = vsel %vm1224, %v1186, %v1187
    %v1261 = vsel %vm1224, %v1185, %v1186
    %v1262 = vsel %vm1224, %v1184, %v1185
    %v1263 = vsel %vm1224, %v1183, %v1184
    %v1264 = vsel %vm1224, %v1182, %v1183
    %v1265 = vsel %vm1224, %v1181, %v1182
    %v1266 = vsel %vm1224, %v1180, %v1181
    %v1267 = vsel %vm1224, %v1179, %v1180
    %v1268 = vsel %vm1224, %v1178, %v1179
    %v1269 = vsel %vm1224, %v1177, %v1178
    %v1270 = vsel %vm1224, %v1176, %v1177
    %v1271 = vsel %vm1224, %v1175, %v1176
    %v1272 = vsel %vm1224, %v1174, %v1175
    %v1273 = vsel %vm1224, %v1173, %v1174
    %v1274 = vsel %vm1224, %v1172, %v1173
    %v1275 = vsel %vm1224, %v1171, %v1172
    %v1276 = vsel %vm1224, %v1170, %v1171
    %v1277 = vsel %vm1224, %v1169, %v1170
    %v1278 = vsel %vm1224, %v1168, %v1169
    %v1279 = vsel %vm1224, %v1167, %v1168
    %v1280 = vsel %vm1224, %v1166, %v1167
    %v1281 = vsel %vm1224, %v1165, %v1166
    %v1282 = vsel %vm1224, %v1164, %v1165
    %v1283 = vsel %vm1224, %v1163, %v1164
    %v1284 = vsel %vm1224, %v1162, %v1163
    %v1285 = vsel %vm790, %v1284, 0.0
    %v1286 = vsel %vm791, %v1283, 0.0
    %v1287 = vsel %vm790, %v1282, 0.0
    %v1288 = vsel %vm791, %v1281, 0.0
    %v1289 = vsel %vm790, %v1280, 0.0
    %v1290 = vsel %vm791, %v1279, 0.0
    %v1291 = vsel %vm790, %v1278, 0.0
    %v1292 = vsel %vm791, %v1277, 0.0
    %v1293 = vsel %vm790, %v1276, 0.0
    %v1294 = vsel %vm791, %v1275, 0.0
    %v1295 = vsel %vm790, %v1274, 0.0
    %v1296 = vsel %vm791, %v1273, 0.0
    %v1297 = vsel %vm790, %v1272, 0.0
    %v1298 = vsel %vm791, %v1271, 0.0
    %v1299 = vsel %vm790, %v1270, 0.0
    %v1300 = vsel %vm791, %v1269, 0.0
    %v1301 = vsel %vm790, %v1268, 0.0
    %v1302 = vsel %vm791, %v1267, 0.0
    %v1303 = vsel %vm790, %v1266, 0.0
    %v1304 = vsel %vm791, %v1265, 0.0
    %v1305 = vsel %vm790, %v1264, 0.0
    %v1306 = vsel %vm791, %v1263, 0.0
    %v1307 = vsel %vm790, %v1262, 0.0
    %v1308 = vsel %vm791, %v1261, 0.0
    %v1309 = vsel %vm790, %v1260, 0.0
    %v1310 = vsel %vm791, %v1259, 0.0
    %v1311 = vsel %vm790, %v1258, 0.0
    %v1312 = vsel %vm791, %v1257, 0.0
    %v1313 = vsel %vm790, %v1256, 0.0
    %v1314 = vsel %vm791, %v1255, 0.0
    %v1315 = vsel %vm790, %v1254, 0.0
    %v1316 = vsel %vm791, %v1253, 0.0
    %v1317 = vsel %vm790, %v1252, 0.0
    %v1318 = vsel %vm791, %v1251, 0.0
    %v1319 = vsel %vm790, %v1250, 0.0
    %v1320 = vsel %vm791, %v1249, 0.0
    %v1321 = vsel %vm790, %v1248, 0.0
    %v1322 = vsel %vm791, %v1247, 0.0
    %v1323 = vsel %vm790, %v1246, 0.0
    %v1324 = vsel %vm791, %v1245, 0.0
    %v1325 = vsel %vm790, %v1244, 0.0
    %v1326 = vsel %vm791, %v1243, 0.0
    %v1327 = vsel %vm790, %v1242, 0.0
    %v1328 = vsel %vm791, %v1241, 0.0
    %v1329 = vsel %vm790, %v1240, 0.0
    %v1330 = vsel %vm791, %v1239, 0.0
    %v1331 = vsel %vm790, %v1238, 0.0
    %v1332 = vsel %vm791, %v1237, 0.0
    %v1333 = vsel %vm790, %v1236, 0.0
    %v1334 = vsel %vm791, %v1235, 0.0
    %v1335 = vsel %vm790, %v1234, 0.0
    %v1336 = vsel %vm791, %v1233, 0.0
    %v1337 = vsel %vm790, %v1232, 0.0
    %v1338 = vsel %vm791, %v1231, 0.0
    %v1339 = vsel %vm790, %v1230, 0.0
    %v1340 = vsel %vm791, %v1229, 0.0
    %v1341 = vsel %vm790, %v1228, 0.0
    %v1342 = vsel %vm791, %v1227, 0.0
    %v1343 = vsel %vm790, %v1226, 0.0
    %v1344 = vsel %vm791, %v1225, 0.0
    %v1345 = vld [vmem:[#allocation7 + $0x2] sm:$0x1]
    %v1346 = vperm.slane %v1345, 0
    %v1347 = vmul.f32 %v1346, 0.0
    %v1348 = vmul.f32 %v1285, %v1346
    %v1349 = vmul.f32 %v1286, %v1346
    %v1350 = vmul.f32 %v1287, %v1346
    %v1351 = vmul.f32 %v1288, %v1346
    %v1352 = vmul.f32 %v1289, %v1346
    %v1353 = vmul.f32 %v1290, %v1346
    %v1354 = vmul.f32 %v1291, %v1346
    %v1355 = vmul.f32 %v1292, %v1346
    %v1356 = vmul.f32 %v1293, %v1346
    %v1357 = vmul.f32 %v1294, %v1346
    %v1358 = vmul.f32 %v1295, %v1346
    %v1359 = vmul.f32 %v1296, %v1346
    %v1360 = vmul.f32 %v1297, %v1346
    %v1361 = vmul.f32 %v1298, %v1346
    %v1362 = vmul.f32 %v1299, %v1346
    %v1363 = vmul.f32 %v1300, %v1346
    %v1364 = vmul.f32 %v1301, %v1346
    %v1365 = vmul.f32 %v1302, %v1346
    %v1366 = vmul.f32 %v1303, %v1346
    %v1367 = vmul.f32 %v1304, %v1346
    %v1368 = vmul.f32 %v1305, %v1346
    %v1369 = vmul.f32 %v1306, %v1346
    %v1370 = vmul.f32 %v1307, %v1346
    %v1371 = vmul.f32 %v1308, %v1346
    %v1372 = vmul.f32 %v1309, %v1346
    %v1373 = vmul.f32 %v1310, %v1346
    %v1374 = vmul.f32 %v1311, %v1346
    %v1375 = vmul.f32 %v1312, %v1346
    %v1376 = vmul.f32 %v1313, %v1346
    %v1377 = vmul.f32 %v1314, %v1346
    %v1378 = vmul.f32 %v1315, %v1346
    %v1379 = vmul.f32 %v1316, %v1346
    %v1380 = vmul.f32 %v1317, %v1346
    %v1381 = vmul.f32 %v1318, %v1346
    %v1382 = vmul.f32 %v1319, %v1346
    %v1383 = vmul.f32 %v1320, %v1346
    %v1384 = vmul.f32 %v1321, %v1346
    %v1385 = vmul.f32 %v1322, %v1346
    %v1386 = vmul.f32 %v1323, %v1346
    %v1387 = vmul.f32 %v1324, %v1346
    %v1388 = vmul.f32 %v1325, %v1346
    %v1389 = vmul.f32 %v1326, %v1346
    %v1390 = vmul.f32 %v1327, %v1346
    %v1391 = vmul.f32 %v1328, %v1346
    %v1392 = vmul.f32 %v1329, %v1346
    %v1393 = vmul.f32 %v1330, %v1346
    %v1394 = vmul.f32 %v1331, %v1346
    %v1395 = vmul.f32 %v1332, %v1346
    %v1396 = vmul.f32 %v1333, %v1346
    %v1397 = vmul.f32 %v1334, %v1346
    %v1398 = vmul.f32 %v1335, %v1346
    %v1399 = vmul.f32 %v1336, %v1346
    %v1400 = vmul.f32 %v1337, %v1346
    %v1401 = vmul.f32 %v1338, %v1346
    %v1402 = vmul.f32 %v1339, %v1346
    %v1403 = vmul.f32 %v1340, %v1346
    %v1404 = vmul.f32 %v1341, %v1346
    %v1405 = vmul.f32 %v1342, %v1346
    %v1406 = vmul.f32 %v1343, %v1346
    %v1407 = vmul.f32 %v1344, %v1346
    %v1408 = vadd.f32 %v1101, %v1347
    %v1409 = vadd.f32 %v1102, %v1348
    %v1410 = vadd.f32 %v1103, %v1349
    %v1411 = vadd.f32 %v1104, %v1350
    %v1412 = vadd.f32 %v1105, %v1351
    %v1413 = vadd.f32 %v1106, %v1352
    %v1414 = vadd.f32 %v1107, %v1353
    %v1415 = vadd.f32 %v1108, %v1354
    %v1416 = vadd.f32 %v1109, %v1355
    %v1417 = vadd.f32 %v1110, %v1356
    %v1418 = vadd.f32 %v1111, %v1357
    %v1419 = vadd.f32 %v1112, %v1358
    %v1420 = vadd.f32 %v1113, %v1359
    %v1421 = vadd.f32 %v1114, %v1360
    %v1422 = vadd.f32 %v1115, %v1361
    %v1423 = vadd.f32 %v1116, %v1362
    %v1424 = vadd.f32 %v1117, %v1363
    %v1425 = vadd.f32 %v1118, %v1364
    %v1426 = vadd.f32 %v1119, %v1365
    %v1427 = vadd.f32 %v1120, %v1366
    %v1428 = vadd.f32 %v1121, %v1367
    %v1429 = vadd.f32 %v1122, %v1368
    %v1430 = vadd.f32 %v1123, %v1369
    %v1431 = vadd.f32 %v1124, %v1370
    %v1432 = vadd.f32 %v1125, %v1371
    %v1433 = vadd.f32 %v1126, %v1372
    %v1434 = vadd.f32 %v1127, %v1373
    %v1435 = vadd.f32 %v1128, %v1374
    %v1436 = vadd.f32 %v1129, %v1375
    %v1437 = vadd.f32 %v1130, %v1376
    %v1438 = vadd.f32 %v1131, %v1377
    %v1439 = vadd.f32 %v1132, %v1378
    %v1440 = vadd.f32 %v1133, %v1379
    %v1441 = vadd.f32 %v1134, %v1380
    %v1442 = vadd.f32 %v1135, %v1381
    %v1443 = vadd.f32 %v1136, %v1382
    %v1444 = vadd.f32 %v1137, %v1383
    %v1445 = vadd.f32 %v1138, %v1384
    %v1446 = vadd.f32 %v1139, %v1385
    %v1447 = vadd.f32 %v1140, %v1386
    %v1448 = vadd.f32 %v1141, %v1387
    %v1449 = vadd.f32 %v1142, %v1388
    %v1450 = vadd.f32 %v1143, %v1389
    %v1451 = vadd.f32 %v1144, %v1390
    %v1452 = vadd.f32 %v1145, %v1391
    %v1453 = vadd.f32 %v1146, %v1392
    %v1454 = vadd.f32 %v1147, %v1393
    %v1455 = vadd.f32 %v1148, %v1394
    %v1456 = vadd.f32 %v1149, %v1395
    %v1457 = vadd.f32 %v1150, %v1396
    %v1458 = vadd.f32 %v1151, %v1397
    %v1459 = vadd.f32 %v1152, %v1398
    %v1460 = vadd.f32 %v1153, %v1399
    %v1461 = vadd.f32 %v1154, %v1400
    %v1462 = vadd.f32 %v1155, %v1401
    %v1463 = vadd.f32 %v1156, %v1402
    %v1464 = vadd.f32 %v1157, %v1403
    %v1465 = vadd.f32 %v1158, %v1404
    %v1466 = vadd.f32 %v1159, %v1405
    %v1467 = vadd.f32 %v1160, %v1406
    %v1468 = vadd.f32 %v1161, %v1407
    %v1469 = vrot.slane %v751, 7
    %v1470 = vrot.slane %v783, 7
    %v1471 = vsel %vm854, %v1470, %v853
    %v1472 = vsel %vm854, %v852, %v1470
    %v1473 = vsel %vm854, %v1469, %v822
    %v1474 = vsel %vm854, %v821, %v1469
    %v1475 = vsel %vm788, %v1474, 0.0
    %v1476 = vsel %vm789, %v1473, 0.0
    %v1477 = vsel %vm788, %v1472, 0.0
    %v1478 = vsel %vm789, %v1471, 0.0
    %v1479 = vld [vmem:[#allocation7 + $0x3] sm:$0x1]
    %v1480 = vperm.slane %v1479, 0
    %v1481 = vmul.f32 %v915, %v1480
    %v1482 = vmul.f32 %v916, %v1480
    %v1483 = vmul.f32 %v917, %v1480
    %v1484 = vmul.f32 %v918, %v1480
    %v1485 = vmul.f32 %v919, %v1480
    %v1486 = vmul.f32 %v920, %v1480
    %v1487 = vmul.f32 %v921, %v1480
    %v1488 = vmul.f32 %v922, %v1480
    %v1489 = vmul.f32 %v923, %v1480
    %v1490 = vmul.f32 %v924, %v1480
    %v1491 = vmul.f32 %v925, %v1480
    %v1492 = vmul.f32 %v926, %v1480
    %v1493 = vmul.f32 %v927, %v1480
    %v1494 = vmul.f32 %v928, %v1480
    %v1495 = vmul.f32 %v929, %v1480
    %v1496 = vmul.f32 %v930, %v1480
    %v1497 = vmul.f32 %v931, %v1480
    %v1498 = vmul.f32 %v932, %v1480
    %v1499 = vmul.f32 %v933, %v1480
    %v1500 = vmul.f32 %v934, %v1480
    %v1501 = vmul.f32 %v935, %v1480
    %v1502 = vmul.f32 %v936, %v1480
    %v1503 = vmul.f32 %v937, %v1480
    %v1504 = vmul.f32 %v938, %v1480
    %v1505 = vmul.f32 %v939, %v1480
    %v1506 = vmul.f32 %v940, %v1480
    %v1507 = vmul.f32 %v941, %v1480
    %v1508 = vmul.f32 %v942, %v1480
    %v1509 = vmul.f32 %v943, %v1480
    %v1510 = vmul.f32 %v944, %v1480
    %v1511 = vmul.f32 %v1475, %v1480
    %v1512 = vmul.f32 %v1476, %v1480
    %v1513 = vmul.f32 %v945, %v1480
    %v1514 = vmul.f32 %v946, %v1480
    %v1515 = vmul.f32 %v947, %v1480
    %v1516 = vmul.f32 %v948, %v1480
    %v1517 = vmul.f32 %v949, %v1480
    %v1518 = vmul.f32 %v950, %v1480
    %v1519 = vmul.f32 %v951, %v1480
    %v1520 = vmul.f32 %v952, %v1480
    %v1521 = vmul.f32 %v953, %v1480
    %v1522 = vmul.f32 %v954, %v1480
    %v1523 = vmul.f32 %v955, %v1480
    %v1524 = vmul.f32 %v956, %v1480
    %v1525 = vmul.f32 %v957, %v1480
    %v1526 = vmul.f32 %v958, %v1480
    %v1527 = vmul.f32 %v959, %v1480
    %v1528 = vmul.f32 %v960, %v1480
    %v1529 = vmul.f32 %v961, %v1480
    %v1530 = vmul.f32 %v962, %v1480
    %v1531 = vmul.f32 %v963, %v1480
    %v1532 = vmul.f32 %v964, %v1480
    %v1533 = vmul.f32 %v965, %v1480
    %v1534 = vmul.f32 %v966, %v1480
    %v1535 = vmul.f32 %v967, %v1480
    %v1536 = vmul.f32 %v968, %v1480
    %v1537 = vmul.f32 %v969, %v1480
    %v1538 = vmul.f32 %v970, %v1480
    %v1539 = vmul.f32 %v971, %v1480
    %v1540 = vmul.f32 %v972, %v1480
    %v1541 = vmul.f32 %v973, %v1480
    %v1542 = vmul.f32 %v974, %v1480
    %v1543 = vmul.f32 %v1477, %v1480
    %v1544 = vmul.f32 %v1478, %v1480
    %v1545 = vadd.f32 %v1408, %v1481
    %v1546 = vadd.f32 %v1408, %v1482
    %v1547 = vadd.f32 %v1409, %v1483
    %v1548 = vadd.f32 %v1410, %v1484
    %v1549 = vadd.f32 %v1411, %v1485
    %v1550 = vadd.f32 %v1412, %v1486
    %v1551 = vadd.f32 %v1413, %v1487
    %v1552 = vadd.f32 %v1414, %v1488
    %v1553 = vadd.f32 %v1415, %v1489
    %v1554 = vadd.f32 %v1416, %v1490
    %v1555 = vadd.f32 %v1417, %v1491
    %v1556 = vadd.f32 %v1418, %v1492
    %v1557 = vadd.f32 %v1419, %v1493
    %v1558 = vadd.f32 %v1420, %v1494
    %v1559 = vadd.f32 %v1421, %v1495
    %v1560 = vadd.f32 %v1422, %v1496
    %v1561 = vadd.f32 %v1423, %v1497
    %v1562 = vadd.f32 %v1424, %v1498
    %v1563 = vadd.f32 %v1425, %v1499
    %v1564 = vadd.f32 %v1426, %v1500
    %v1565 = vadd.f32 %v1427, %v1501
    %v1566 = vadd.f32 %v1428, %v1502
    %v1567 = vadd.f32 %v1429, %v1503
    %v1568 = vadd.f32 %v1430, %v1504
    %v1569 = vadd.f32 %v1431, %v1505
    %v1570 = vadd.f32 %v1432, %v1506
    %v1571 = vadd.f32 %v1433, %v1507
    %v1572 = vadd.f32 %v1434, %v1508
    %v1573 = vadd.f32 %v1435, %v1509
    %v1574 = vadd.f32 %v1436, %v1510
    %v1575 = vadd.f32 %v1437, %v1511
    %v1576 = vadd.f32 %v1438, %v1512
    %v1577 = vadd.f32 %v1408, %v1513
    %v1578 = vadd.f32 %v1408, %v1514
    %v1579 = vadd.f32 %v1439, %v1515
    %v1580 = vadd.f32 %v1440, %v1516
    %v1581 = vadd.f32 %v1441, %v1517
    %v1582 = vadd.f32 %v1442, %v1518
    %v1583 = vadd.f32 %v1443, %v1519
    %v1584 = vadd.f32 %v1444, %v1520
    %v1585 = vadd.f32 %v1445, %v1521
    %v1586 = vadd.f32 %v1446, %v1522
    %v1587 = vadd.f32 %v1447, %v1523
    %v1588 = vadd.f32 %v1448, %v1524
    %v1589 = vadd.f32 %v1449, %v1525
    %v1590 = vadd.f32 %v1450, %v1526
    %v1591 = vadd.f32 %v1451, %v1527
    %v1592 = vadd.f32 %v1452, %v1528
    %v1593 = vadd.f32 %v1453, %v1529
    %v1594 = vadd.f32 %v1454, %v1530
    %v1595 = vadd.f32 %v1455, %v1531
    %v1596 = vadd.f32 %v1456, %v1532
    %v1597 = vadd.f32 %v1457, %v1533
    %v1598 = vadd.f32 %v1458, %v1534
    %v1599 = vadd.f32 %v1459, %v1535
    %v1600 = vadd.f32 %v1460, %v1536
    %v1601 = vadd.f32 %v1461, %v1537
    %v1602 = vadd.f32 %v1462, %v1538
    %v1603 = vadd.f32 %v1463, %v1539
    %v1604 = vadd.f32 %v1464, %v1540
    %v1605 = vadd.f32 %v1465, %v1541
    %v1606 = vadd.f32 %v1466, %v1542
    %v1607 = vadd.f32 %v1467, %v1543
    %v1608 = vadd.f32 %v1468, %v1544
    %v1609 = vld [vmem:[#allocation7 + $0x4] sm:$0x1]
    %v1610 = vperm.slane %v1609, 0
    %v1611 = vmul.f32 %v721, %v1610
    %v1612 = vmul.f32 %v722, %v1610
    %v1613 = vmul.f32 %v723, %v1610
    %v1614 = vmul.f32 %v724, %v1610
    %v1615 = vmul.f32 %v725, %v1610
    %v1616 = vmul.f32 %v726, %v1610
    %v1617 = vmul.f32 %v727, %v1610
    %v1618 = vmul.f32 %v728, %v1610
    %v1619 = vmul.f32 %v729, %v1610
    %v1620 = vmul.f32 %v730, %v1610
    %v1621 = vmul.f32 %v731, %v1610
    %v1622 = vmul.f32 %v732, %v1610
    %v1623 = vmul.f32 %v733, %v1610
    %v1624 = vmul.f32 %v734, %v1610
    %v1625 = vmul.f32 %v735, %v1610
    %v1626 = vmul.f32 %v736, %v1610
    %v1627 = vmul.f32 %v737, %v1610
    %v1628 = vmul.f32 %v738, %v1610
    %v1629 = vmul.f32 %v739, %v1610
    %v1630 = vmul.f32 %v740, %v1610
    %v1631 = vmul.f32 %v741, %v1610
    %v1632 = vmul.f32 %v742, %v1610
    %v1633 = vmul.f32 %v743, %v1610
    %v1634 = vmul.f32 %v744, %v1610
    %v1635 = vmul.f32 %v745, %v1610
    %v1636 = vmul.f32 %v746, %v1610
    %v1637 = vmul.f32 %v747, %v1610
    %v1638 = vmul.f32 %v748, %v1610
    %v1639 = vmul.f32 %v749, %v1610
    %v1640 = vmul.f32 %v750, %v1610
    %v1641 = vmul.f32 %v751, %v1610
    %v1642 = vmul.f32 %v752, %v1610
    %v1643 = vmul.f32 %v753, %v1610
    %v1644 = vmul.f32 %v754, %v1610
    %v1645 = vmul.f32 %v755, %v1610
    %v1646 = vmul.f32 %v756, %v1610
    %v1647 = vmul.f32 %v757, %v1610
    %v1648 = vmul.f32 %v758, %v1610
    %v1649 = vmul.f32 %v759, %v1610
    %v1650 = vmul.f32 %v760, %v1610
    %v1651 = vmul.f32 %v761, %v1610
    %v1652 = vmul.f32 %v762, %v1610
    %v1653 = vmul.f32 %v763, %v1610
    %v1654 = vmul.f32 %v764, %v1610
    %v1655 = vmul.f32 %v765, %v1610
    %v1656 = vmul.f32 %v766, %v1610
    %v1657 = vmul.f32 %v767, %v1610
    %v1658 = vmul.f32 %v768, %v1610
    %v1659 = vmul.f32 %v769, %v1610
    %v1660 = vmul.f32 %v770, %v1610
    %v1661 = vmul.f32 %v771, %v1610
    %v1662 = vmul.f32 %v772, %v1610
    %v1663 = vmul.f32 %v773, %v1610
    %v1664 = vmul.f32 %v774, %v1610
    %v1665 = vmul.f32 %v775, %v1610
    %v1666 = vmul.f32 %v776, %v1610
    %v1667 = vmul.f32 %v777, %v1610
    %v1668 = vmul.f32 %v778, %v1610
    %v1669 = vmul.f32 %v779, %v1610
    %v1670 = vmul.f32 %v780, %v1610
    %v1671 = vmul.f32 %v781, %v1610
    %v1672 = vmul.f32 %v782, %v1610
    %v1673 = vmul.f32 %v783, %v1610
    %v1674 = vmul.f32 %v784, %v1610
    %v1675 = vadd.f32 %v1545, %v1611
    %v1676 = vadd.f32 %v1546, %v1612
    %v1677 = vadd.f32 %v1547, %v1613
    %v1678 = vadd.f32 %v1548, %v1614
    %v1679 = vadd.f32 %v1549, %v1615
    %v1680 = vadd.f32 %v1550, %v1616
    %v1681 = vadd.f32 %v1551, %v1617
    %v1682 = vadd.f32 %v1552, %v1618
    %v1683 = vadd.f32 %v1553, %v1619
    %v1684 = vadd.f32 %v1554, %v1620
    %v1685 = vadd.f32 %v1555, %v1621
    %v1686 = vadd.f32 %v1556, %v1622
    %v1687 = vadd.f32 %v1557, %v1623
    %v1688 = vadd.f32 %v1558, %v1624
    %v1689 = vadd.f32 %v1559, %v1625
    %v1690 = vadd.f32 %v1560, %v1626
    %v1691 = vadd.f32 %v1561, %v1627
    %v1692 = vadd.f32 %v1562, %v1628
    %v1693 = vadd.f32 %v1563, %v1629
    %v1694 = vadd.f32 %v1564, %v1630
    %v1695 = vadd.f32 %v1565, %v1631
    %v1696 = vadd.f32 %v1566, %v1632
    %v1697 = vadd.f32 %v1567, %v1633
    %v1698 = vadd.f32 %v1568, %v1634
    %v1699 = vadd.f32 %v1569, %v1635
    %v1700 = vadd.f32 %v1570, %v1636
    %v1701 = vadd.f32 %v1571, %v1637
    %v1702 = vadd.f32 %v1572, %v1638
    %v1703 = vadd.f32 %v1573, %v1639
    %v1704 = vadd.f32 %v1574, %v1640
    %v1705 = vadd.f32 %v1575, %v1641
    %v1706 = vadd.f32 %v1576, %v1642
    %v1707 = vadd.f32 %v1577, %v1643
    %v1708 = vadd.f32 %v1578, %v1644
    %v1709 = vadd.f32 %v1579, %v1645
    %v1710 = vadd.f32 %v1580, %v1646
    %v1711 = vadd.f32 %v1581, %v1647
    %v1712 = vadd.f32 %v1582, %v1648
    %v1713 = vadd.f32 %v1583, %v1649
    %v1714 = vadd.f32 %v1584, %v1650
    %v1715 = vadd.f32 %v1585, %v1651
    %v1716 = vadd.f32 %v1586, %v1652
    %v1717 = vadd.f32 %v1587, %v1653
    %v1718 = vadd.f32 %v1588, %v1654
    %v1719 = vadd.f32 %v1589, %v1655
    %v1720 = vadd.f32 %v1590, %v1656
    %v1721 = vadd.f32 %v1591, %v1657
    %v1722 = vadd.f32 %v1592, %v1658
    %v1723 = vadd.f32 %v1593, %v1659
    %v1724 = vadd.f32 %v1594, %v1660
    %v1725 = vadd.f32 %v1595, %v1661
    %v1726 = vadd.f32 %v1596, %v1662
    %v1727 = vadd.f32 %v1597, %v1663
    %v1728 = vadd.f32 %v1598, %v1664
    %v1729 = vadd.f32 %v1599, %v1665
    %v1730 = vadd.f32 %v1600, %v1666
    %v1731 = vadd.f32 %v1601, %v1667
    %v1732 = vadd.f32 %v1602, %v1668
    %v1733 = vadd.f32 %v1603, %v1669
    %v1734 = vadd.f32 %v1604, %v1670
    %v1735 = vadd.f32 %v1605, %v1671
    %v1736 = vadd.f32 %v1606, %v1672
    %v1737 = vadd.f32 %v1607, %v1673
    %v1738 = vadd.f32 %v1608, %v1674
    %v1739 = vrot.slane %v752, 1
    %v1740 = vrot.slane %v784, 1
    %v1741 = vsel %vm1224, %v1223, %v1740
    %v1742 = vsel %vm1224, %v1739, %v1193
    %v1743 = vsel %vm1224, %v1192, %v1739
    %v1744 = vsel %vm1224, %v1740, %v1162
    %v1745 = vsel %vm790, %v1743, 0.0
    %v1746 = vsel %vm791, %v1742, 0.0
    %v1747 = vsel %vm790, %v1741, 0.0
    %v1748 = vsel %vm791, %v1744, 0.0
    %v1749 = vld [vmem:[#allocation7 + $0x5] sm:$0x1]
    %v1750 = vperm.slane %v1749, 0
    %v1751 = vmul.f32 %v1285, %v1750
    %v1752 = vmul.f32 %v1286, %v1750
    %v1753 = vmul.f32 %v1287, %v1750
    %v1754 = vmul.f32 %v1288, %v1750
    %v1755 = vmul.f32 %v1289, %v1750
    %v1756 = vmul.f32 %v1290, %v1750
    %v1757 = vmul.f32 %v1291, %v1750
    %v1758 = vmul.f32 %v1292, %v1750
    %v1759 = vmul.f32 %v1293, %v1750
    %v1760 = vmul.f32 %v1294, %v1750
    %v1761 = vmul.f32 %v1295, %v1750
    %v1762 = vmul.f32 %v1296, %v1750
    %v1763 = vmul.f32 %v1297, %v1750
    %v1764 = vmul.f32 %v1298, %v1750
    %v1765 = vmul.f32 %v1299, %v1750
    %v1766 = vmul.f32 %v1300, %v1750
    %v1767 = vmul.f32 %v1301, %v1750
    %v1768 = vmul.f32 %v1302, %v1750
    %v1769 = vmul.f32 %v1303, %v1750
    %v1770 = vmul.f32 %v1304, %v1750
    %v1771 = vmul.f32 %v1305, %v1750
    %v1772 = vmul.f32 %v1306, %v1750
    %v1773 = vmul.f32 %v1307, %v1750
    %v1774 = vmul.f32 %v1308, %v1750
    %v1775 = vmul.f32 %v1309, %v1750
    %v1776 = vmul.f32 %v1310, %v1750
    %v1777 = vmul.f32 %v1311, %v1750
    %v1778 = vmul.f32 %v1312, %v1750
    %v1779 = vmul.f32 %v1313, %v1750
    %v1780 = vmul.f32 %v1314, %v1750
    %v1781 = vmul.f32 %v1745, %v1750
    %v1782 = vmul.f32 %v1746, %v1750
    %v1783 = vmul.f32 %v1315, %v1750
    %v1784 = vmul.f32 %v1316, %v1750
    %v1785 = vmul.f32 %v1317, %v1750
    %v1786 = vmul.f32 %v1318, %v1750
    %v1787 = vmul.f32 %v1319, %v1750
    %v1788 = vmul.f32 %v1320, %v1750
    %v1789 = vmul.f32 %v1321, %v1750
    %v1790 = vmul.f32 %v1322, %v1750
    %v1791 = vmul.f32 %v1323, %v1750
    %v1792 = vmul.f32 %v1324, %v1750
    %v1793 = vmul.f32 %v1325, %v1750
    %v1794 = vmul.f32 %v1326, %v1750
    %v1795 = vmul.f32 %v1327, %v1750
    %v1796 = vmul.f32 %v1328, %v1750
    %v1797 = vmul.f32 %v1329, %v1750
    %v1798 = vmul.f32 %v1330, %v1750
    %v1799 = vmul.f32 %v1331, %v1750
    %v1800 = vmul.f32 %v1332, %v1750
    %v1801 = vmul.f32 %v1333, %v1750
    %v1802 = vmul.f32 %v1334, %v1750
    %v1803 = vmul.f32 %v1335, %v1750
    %v1804 = vmul.f32 %v1336, %v1750
    %v1805 = vmul.f32 %v1337, %v1750
    %v1806 = vmul.f32 %v1338, %v1750
    %v1807 = vmul.f32 %v1339, %v1750
    %v1808 = vmul.f32 %v1340, %v1750
    %v1809 = vmul.f32 %v1341, %v1750
    %v1810 = vmul.f32 %v1342, %v1750
    %v1811 = vmul.f32 %v1343, %v1750
    %v1812 = vmul.f32 %v1344, %v1750
    %v1813 = vmul.f32 %v1747, %v1750
    %v1814 = vmul.f32 %v1748, %v1750
    %v1815 = vadd.f32 %v1675, %v1751
    %v1816 = vadd.f32 %v1676, %v1752
    %v1817 = vadd.f32 %v1677, %v1753
    %v1818 = vadd.f32 %v1678, %v1754
    %v1819 = vadd.f32 %v1679, %v1755
    %v1820 = vadd.f32 %v1680, %v1756
    %v1821 = vadd.f32 %v1681, %v1757
    %v1822 = vadd.f32 %v1682, %v1758
    %v1823 = vadd.f32 %v1683, %v1759
    %v1824 = vadd.f32 %v1684, %v1760
    %v1825 = vadd.f32 %v1685, %v1761
    %v1826 = vadd.f32 %v1686, %v1762
    %v1827 = vadd.f32 %v1687, %v1763
    %v1828 = vadd.f32 %v1688, %v1764
    %v1829 = vadd.f32 %v1689, %v1765
    %v1830 = vadd.f32 %v1690, %v1766
    %v1831 = vadd.f32 %v1691, %v1767
    %v1832 = vadd.f32 %v1692, %v1768
    %v1833 = vadd.f32 %v1693, %v1769
    %v1834 = vadd.f32 %v1694, %v1770
    %v1835 = vadd.f32 %v1695, %v1771
    %v1836 = vadd.f32 %v1696, %v1772
    %v1837 = vadd.f32 %v1697, %v1773
    %v1838 = vadd.f32 %v1698, %v1774
    %v1839 = vadd.f32 %v1699, %v1775
    %v1840 = vadd.f32 %v1700, %v1776
    %v1841 = vadd.f32 %v1701, %v1777
    %v1842 = vadd.f32 %v1702, %v1778
    %v1843 = vadd.f32 %v1703, %v1779
    %v1844 = vadd.f32 %v1704, %v1780
    %v1845 = vadd.f32 %v1705, %v1781
    %v1846 = vadd.f32 %v1706, %v1782
    %v1847 = vadd.f32 %v1707, %v1783
    %v1848 = vadd.f32 %v1708, %v1784
    %v1849 = vadd.f32 %v1709, %v1785
    %v1850 = vadd.f32 %v1710, %v1786
    %v1851 = vadd.f32 %v1711, %v1787
    %v1852 = vadd.f32 %v1712, %v1788
    %v1853 = vadd.f32 %v1713, %v1789
    %v1854 = vadd.f32 %v1714, %v1790
    %v1855 = vadd.f32 %v1715, %v1791
    %v1856 = vadd.f32 %v1716, %v1792
    %v1857 = vadd.f32 %v1717, %v1793
    %v1858 = vadd.f32 %v1718, %v1794
    %v1859 = vadd.f32 %v1719, %v1795
    %v1860 = vadd.f32 %v1720, %v1796
    %v1861 = vadd.f32 %v1721, %v1797
    %v1862 = vadd.f32 %v1722, %v1798
    %v1863 = vadd.f32 %v1723, %v1799
    %v1864 = vadd.f32 %v1724, %v1800
    %v1865 = vadd.f32 %v1725, %v1801
    %v1866 = vadd.f32 %v1726, %v1802
    %v1867 = vadd.f32 %v1727, %v1803
    %v1868 = vadd.f32 %v1728, %v1804
    %v1869 = vadd.f32 %v1729, %v1805
    %v1870 = vadd.f32 %v1730, %v1806
    %v1871 = vadd.f32 %v1731, %v1807
    %v1872 = vadd.f32 %v1732, %v1808
    %v1873 = vadd.f32 %v1733, %v1809
    %v1874 = vadd.f32 %v1734, %v1810
    %v1875 = vadd.f32 %v1735, %v1811
    %v1876 = vadd.f32 %v1736, %v1812
    %v1877 = vadd.f32 %v1737, %v1813
    %v1878 = vadd.f32 %v1738, %v1814
    %v1879 = vld [vmem:[#allocation7 + $0x6] sm:$0x1]
    %v1880 = vperm.slane %v1879, 0
    %v1881 = vmul.f32 %v917, %v1880
    %v1882 = vmul.f32 %v918, %v1880
    %v1883 = vmul.f32 %v919, %v1880
    %v1884 = vmul.f32 %v920, %v1880
    %v1885 = vmul.f32 %v921, %v1880
    %v1886 = vmul.f32 %v922, %v1880
    %v1887 = vmul.f32 %v923, %v1880
    %v1888 = vmul.f32 %v924, %v1880
    %v1889 = vmul.f32 %v925, %v1880
    %v1890 = vmul.f32 %v926, %v1880
    %v1891 = vmul.f32 %v927, %v1880
    %v1892 = vmul.f32 %v928, %v1880
    %v1893 = vmul.f32 %v929, %v1880
    %v1894 = vmul.f32 %v930, %v1880
    %v1895 = vmul.f32 %v931, %v1880
    %v1896 = vmul.f32 %v932, %v1880
    %v1897 = vmul.f32 %v933, %v1880
    %v1898 = vmul.f32 %v934, %v1880
    %v1899 = vmul.f32 %v935, %v1880
    %v1900 = vmul.f32 %v936, %v1880
    %v1901 = vmul.f32 %v937, %v1880
    %v1902 = vmul.f32 %v938, %v1880
    %v1903 = vmul.f32 %v939, %v1880
    %v1904 = vmul.f32 %v940, %v1880
    %v1905 = vmul.f32 %v941, %v1880
    %v1906 = vmul.f32 %v942, %v1880
    %v1907 = vmul.f32 %v943, %v1880
    %v1908 = vmul.f32 %v944, %v1880
    %v1909 = vmul.f32 %v1475, %v1880
    %v1910 = vmul.f32 %v1476, %v1880
    %v1911 = vmul.f32 %v1880, 0.0
    %v1912 = vmul.f32 %v947, %v1880
    %v1913 = vmul.f32 %v948, %v1880
    %v1914 = vmul.f32 %v949, %v1880
    %v1915 = vmul.f32 %v950, %v1880
    %v1916 = vmul.f32 %v951, %v1880
    %v1917 = vmul.f32 %v952, %v1880
    %v1918 = vmul.f32 %v953, %v1880
    %v1919 = vmul.f32 %v954, %v1880
    %v1920 = vmul.f32 %v955, %v1880
    %v1921 = vmul.f32 %v956, %v1880
    %v1922 = vmul.f32 %v957, %v1880
    %v1923 = vmul.f32 %v958, %v1880
    %v1924 = vmul.f32 %v959, %v1880
    %v1925 = vmul.f32 %v960, %v1880
    %v1926 = vmul.f32 %v961, %v1880
    %v1927 = vmul.f32 %v962, %v1880
    %v1928 = vmul.f32 %v963, %v1880
    %v1929 = vmul.f32 %v964, %v1880
    %v1930 = vmul.f32 %v965, %v1880
    %v1931 = vmul.f32 %v966, %v1880
    %v1932 = vmul.f32 %v967, %v1880
    %v1933 = vmul.f32 %v968, %v1880
    %v1934 = vmul.f32 %v969, %v1880
    %v1935 = vmul.f32 %v970, %v1880
    %v1936 = vmul.f32 %v971, %v1880
    %v1937 = vmul.f32 %v972, %v1880
    %v1938 = vmul.f32 %v973, %v1880
    %v1939 = vmul.f32 %v974, %v1880
    %v1940 = vmul.f32 %v1477, %v1880
    %v1941 = vmul.f32 %v1478, %v1880
    %v1942 = vadd.f32 %v1815, %v1881
    %v1943 = vadd.f32 %v1816, %v1882
    %v1944 = vadd.f32 %v1817, %v1883
    %v1945 = vadd.f32 %v1818, %v1884
    %v1946 = vadd.f32 %v1819, %v1885
    %v1947 = vadd.f32 %v1820, %v1886
    %v1948 = vadd.f32 %v1821, %v1887
    %v1949 = vadd.f32 %v1822, %v1888
    %v1950 = vadd.f32 %v1823, %v1889
    %v1951 = vadd.f32 %v1824, %v1890
    %v1952 = vadd.f32 %v1825, %v1891
    %v1953 = vadd.f32 %v1826, %v1892
    %v1954 = vadd.f32 %v1827, %v1893
    %v1955 = vadd.f32 %v1828, %v1894
    %v1956 = vadd.f32 %v1829, %v1895
    %v1957 = vadd.f32 %v1830, %v1896
    %v1958 = vadd.f32 %v1831, %v1897
    %v1959 = vadd.f32 %v1832, %v1898
    %v1960 = vadd.f32 %v1833, %v1899
    %v1961 = vadd.f32 %v1834, %v1900
    %v1962 = vadd.f32 %v1835, %v1901
    %v1963 = vadd.f32 %v1836, %v1902
    %v1964 = vadd.f32 %v1837, %v1903
    %v1965 = vadd.f32 %v1838, %v1904
    %v1966 = vadd.f32 %v1839, %v1905
    %v1967 = vadd.f32 %v1840, %v1906
    %v1968 = vadd.f32 %v1841, %v1907
    %v1969 = vadd.f32 %v1842, %v1908
    %v1970 = vadd.f32 %v1843, %v1909
    %v1971 = vadd.f32 %v1844, %v1910
    %v1972 = vadd.f32 %v1845, %v1911
    %v1973 = vadd.f32 %v1846, %v1911
    %v1974 = vadd.f32 %v1847, %v1912
    %v1975 = vadd.f32 %v1848, %v1913
    %v1976 = vadd.f32 %v1849, %v1914
    %v1977 = vadd.f32 %v1850, %v1915
    %v1978 = vadd.f32 %v1851, %v1916
    %v1979 = vadd.f32 %v1852, %v1917
    %v1980 = vadd.f32 %v1853, %v1918
    %v1981 = vadd.f32 %v1854, %v1919
    %v1982 = vadd.f32 %v1855, %v1920
    %v1983 = vadd.f32 %v1856, %v1921
    %v1984 = vadd.f32 %v1857, %v1922
    %v1985 = vadd.f32 %v1858, %v1923
    %v1986 = vadd.f32 %v1859, %v1924
    %v1987 = vadd.f32 %v1860, %v1925
    %v1988 = vadd.f32 %v1861, %v1926
    %v1989 = vadd.f32 %v1862, %v1927
    %v1990 = vadd.f32 %v1863, %v1928
    %v1991 = vadd.f32 %v1864, %v1929
    %v1992 = vadd.f32 %v1865, %v1930
    %v1993 = vadd.f32 %v1866, %v1931
    %v1994 = vadd.f32 %v1867, %v1932
    %v1995 = vadd.f32 %v1868, %v1933
    %v1996 = vadd.f32 %v1869, %v1934
    %v1997 = vadd.f32 %v1870, %v1935
    %v1998 = vadd.f32 %v1871, %v1936
    %v1999 = vadd.f32 %v1872, %v1937
    %v2000 = vadd.f32 %v1873, %v1938
    %v2001 = vadd.f32 %v1874, %v1939
    %v2002 = vadd.f32 %v1875, %v1940
    %v2003 = vadd.f32 %v1876, %v1941
    %v2004 = vadd.f32 %v1877, %v1911
    %v2005 = vadd.f32 %v1878, %v1911
    %v2006 = vld [vmem:[#allocation7 + $0x7] sm:$0x1]
    %v2007 = vperm.slane %v2006, 0
    %v2008 = vmul.f32 %v723, %v2007
    %v2009 = vmul.f32 %v724, %v2007
    %v2010 = vmul.f32 %v725, %v2007
    %v2011 = vmul.f32 %v726, %v2007
    %v2012 = vmul.f32 %v727, %v2007
    %v2013 = vmul.f32 %v728, %v2007
    %v2014 = vmul.f32 %v729, %v2007
    %v2015 = vmul.f32 %v730, %v2007
    %v2016 = vmul.f32 %v731, %v2007
    %v2017 = vmul.f32 %v732, %v2007
    %v2018 = vmul.f32 %v733, %v2007
    %v2019 = vmul.f32 %v734, %v2007
    %v2020 = vmul.f32 %v735, %v2007
    %v2021 = vmul.f32 %v736, %v2007
    %v2022 = vmul.f32 %v737, %v2007
    %v2023 = vmul.f32 %v738, %v2007
    %v2024 = vmul.f32 %v739, %v2007
    %v2025 = vmul.f32 %v740, %v2007
    %v2026 = vmul.f32 %v741, %v2007
    %v2027 = vmul.f32 %v742, %v2007
    %v2028 = vmul.f32 %v743, %v2007
    %v2029 = vmul.f32 %v744, %v2007
    %v2030 = vmul.f32 %v745, %v2007
    %v2031 = vmul.f32 %v746, %v2007
    %v2032 = vmul.f32 %v747, %v2007
    %v2033 = vmul.f32 %v748, %v2007
    %v2034 = vmul.f32 %v749, %v2007
    %v2035 = vmul.f32 %v750, %v2007
    %v2036 = vmul.f32 %v751, %v2007
    %v2037 = vmul.f32 %v752, %v2007
    %v2038 = vmul.f32 %v2007, 0.0
    %v2039 = vmul.f32 %v755, %v2007
    %v2040 = vmul.f32 %v756, %v2007
    %v2041 = vmul.f32 %v757, %v2007
    %v2042 = vmul.f32 %v758, %v2007
    %v2043 = vmul.f32 %v759, %v2007
    %v2044 = vmul.f32 %v760, %v2007
    %v2045 = vmul.f32 %v761, %v2007
    %v2046 = vmul.f32 %v762, %v2007
    %v2047 = vmul.f32 %v763, %v2007
    %v2048 = vmul.f32 %v764, %v2007
    %v2049 = vmul.f32 %v765, %v2007
    %v2050 = vmul.f32 %v766, %v2007
    %v2051 = vmul.f32 %v767, %v2007
    %v2052 = vmul.f32 %v768, %v2007
    %v2053 = vmul.f32 %v769, %v2007
    %v2054 = vmul.f32 %v770, %v2007
    %v2055 = vmul.f32 %v771, %v2007
    %v2056 = vmul.f32 %v772, %v2007
    %v2057 = vmul.f32 %v773, %v2007
    %v2058 = vmul.f32 %v774, %v2007
    %v2059 = vmul.f32 %v775, %v2007
    %v2060 = vmul.f32 %v776, %v2007
    %v2061 = vmul.f32 %v777, %v2007
    %v2062 = vmul.f32 %v778, %v2007
    %v2063 = vmul.f32 %v779, %v2007
    %v2064 = vmul.f32 %v780, %v2007
    %v2065 = vmul.f32 %v781, %v2007
    %v2066 = vmul.f32 %v782, %v2007
    %v2067 = vmul.f32 %v783, %v2007
    %v2068 = vmul.f32 %v784, %v2007
    %v2069 = vadd.f32 %v1942, %v2008
    %v2070 = vadd.f32 %v1943, %v2009
    %v2071 = vadd.f32 %v1944, %v2010
    %v2072 = vadd.f32 %v1945, %v2011
    %v2073 = vadd.f32 %v1946, %v2012
    %v2074 = vadd.f32 %v1947, %v2013
    %v2075 = vadd.f32 %v1948, %v2014
    %v2076 = vadd.f32 %v1949, %v2015
    %v2077 = vadd.f32 %v1950, %v2016
    %v2078 = vadd.f32 %v1951, %v2017
    %v2079 = vadd.f32 %v1952, %v2018
    %v2080 = vadd.f32 %v1953, %v2019
    %v2081 = vadd.f32 %v1954, %v2020
    %v2082 = vadd.f32 %v1955, %v2021
    %v2083 = vadd.f32 %v1956, %v2022
    %v2084 = vadd.f32 %v1957, %v2023
    %v2085 = vadd.f32 %v1958, %v2024
    %v2086 = vadd.f32 %v1959, %v2025
    %v2087 = vadd.f32 %v1960, %v2026
    %v2088 = vadd.f32 %v1961, %v2027
    %v2089 = vadd.f32 %v1962, %v2028
    %v2090 = vadd.f32 %v1963, %v2029
    %v2091 = vadd.f32 %v1964, %v2030
    %v2092 = vadd.f32 %v1965, %v2031
    %v2093 = vadd.f32 %v1966, %v2032
    %v2094 = vadd.f32 %v1967, %v2033
    %v2095 = vadd.f32 %v1968, %v2034
    %v2096 = vadd.f32 %v1969, %v2035
    %v2097 = vadd.f32 %v1970, %v2036
    %v2098 = vadd.f32 %v1971, %v2037
    %v2099 = vadd.f32 %v1972, %v2038
    %v2100 = vadd.f32 %v1973, %v2038
    %v2101 = vadd.f32 %v1974, %v2039
    %v2102 = vadd.f32 %v1975, %v2040
    %v2103 = vadd.f32 %v1976, %v2041
    %v2104 = vadd.f32 %v1977, %v2042
    %v2105 = vadd.f32 %v1978, %v2043
    %v2106 = vadd.f32 %v1979, %v2044
    %v2107 = vadd.f32 %v1980, %v2045
    %v2108 = vadd.f32 %v1981, %v2046
    %v2109 = vadd.f32 %v1982, %v2047
    %v2110 = vadd.f32 %v1983, %v2048
    %v2111 = vadd.f32 %v1984, %v2049
    %v2112 = vadd.f32 %v1985, %v2050
    %v2113 = vadd.f32 %v1986, %v2051
    %v2114 = vadd.f32 %v1987, %v2052
    %v2115 = vadd.f32 %v1988, %v2053
    %v2116 = vadd.f32 %v1989, %v2054
    %v2117 = vadd.f32 %v1990, %v2055
    %v2118 = vadd.f32 %v1991, %v2056
    %v2119 = vadd.f32 %v1992, %v2057
    %v2120 = vadd.f32 %v1993, %v2058
    %v2121 = vadd.f32 %v1994, %v2059
    %v2122 = vadd.f32 %v1995, %v2060
    %v2123 = vadd.f32 %v1996, %v2061
    %v2124 = vadd.f32 %v1997, %v2062
    %v2125 = vadd.f32 %v1998, %v2063
    %v2126 = vadd.f32 %v1999, %v2064
    %v2127 = vadd.f32 %v2000, %v2065
    %v2128 = vadd.f32 %v2001, %v2066
    %v2129 = vadd.f32 %v2002, %v2067
    %v2130 = vadd.f32 %v2003, %v2068
    %v2131 = vadd.f32 %v2004, %v2038
    %v2132 = vadd.f32 %v2005, %v2038
    %v2133 = vld [vmem:[#allocation7 + $0x8] sm:$0x1]
    %v2134 = vperm.slane %v2133, 0
    %v2135 = vmul.f32 %v1287, %v2134
    %v2136 = vmul.f32 %v1288, %v2134
    %v2137 = vmul.f32 %v1289, %v2134
    %v2138 = vmul.f32 %v1290, %v2134
    %v2139 = vmul.f32 %v1291, %v2134
    %v2140 = vmul.f32 %v1292, %v2134
    %v2141 = vmul.f32 %v1293, %v2134
    %v2142 = vmul.f32 %v1294, %v2134
    %v2143 = vmul.f32 %v1295, %v2134
    %v2144 = vmul.f32 %v1296, %v2134
    %v2145 = vmul.f32 %v1297, %v2134
    %v2146 = vmul.f32 %v1298, %v2134
    %v2147 = vmul.f32 %v1299, %v2134
    %v2148 = vmul.f32 %v1300, %v2134
    %v2149 = vmul.f32 %v1301, %v2134
    %v2150 = vmul.f32 %v1302, %v2134
    %v2151 = vmul.f32 %v1303, %v2134
    %v2152 = vmul.f32 %v1304, %v2134
    %v2153 = vmul.f32 %v1305, %v2134
    %v2154 = vmul.f32 %v1306, %v2134
    %v2155 = vmul.f32 %v1307, %v2134
    %v2156 = vmul.f32 %v1308, %v2134
    %v2157 = vmul.f32 %v1309, %v2134
    %v2158 = vmul.f32 %v1310, %v2134
    %v2159 = vmul.f32 %v1311, %v2134
    %v2160 = vmul.f32 %v1312, %v2134
    %v2161 = vmul.f32 %v1313, %v2134
    %v2162 = vmul.f32 %v1314, %v2134
    %v2163 = vmul.f32 %v1745, %v2134
    %v2164 = vmul.f32 %v1746, %v2134
    %v2165 = vmul.f32 %v2134, 0.0
    %v2166 = vmul.f32 %v1317, %v2134
    %v2167 = vmul.f32 %v1318, %v2134
    %v2168 = vmul.f32 %v1319, %v2134
    %v2169 = vmul.f32 %v1320, %v2134
    %v2170 = vmul.f32 %v1321, %v2134
    %v2171 = vmul.f32 %v1322, %v2134
    %v2172 = vmul.f32 %v1323, %v2134
    %v2173 = vmul.f32 %v1324, %v2134
    %v2174 = vmul.f32 %v1325, %v2134
    %v2175 = vmul.f32 %v1326, %v2134
    %v2176 = vmul.f32 %v1327, %v2134
    %v2177 = vmul.f32 %v1328, %v2134
    %v2178 = vmul.f32 %v1329, %v2134
    %v2179 = vmul.f32 %v1330, %v2134
    %v2180 = vmul.f32 %v1331, %v2134
    %v2181 = vmul.f32 %v1332, %v2134
    %v2182 = vmul.f32 %v1333, %v2134
    %v2183 = vmul.f32 %v1334, %v2134
    %v2184 = vmul.f32 %v1335, %v2134
    %v2185 = vmul.f32 %v1336, %v2134
    %v2186 = vmul.f32 %v1337, %v2134
    %v2187 = vmul.f32 %v1338, %v2134
    %v2188 = vmul.f32 %v1339, %v2134
    %v2189 = vmul.f32 %v1340, %v2134
    %v2190 = vmul.f32 %v1341, %v2134
    %v2191 = vmul.f32 %v1342, %v2134
    %v2192 = vmul.f32 %v1343, %v2134
    %v2193 = vmul.f32 %v1344, %v2134
    %v2194 = vmul.f32 %v1747, %v2134
    %v2195 = vmul.f32 %v1748, %v2134
    %v2196 = vadd.f32 %v2069, %v2135
    %v2197 = vadd.f32 %v2070, %v2136
    %v2198 = vadd.f32 %v2071, %v2137
    %v2199 = vadd.f32 %v2072, %v2138
    %v2200 = vadd.f32 %v2073, %v2139
    %v2201 = vadd.f32 %v2074, %v2140
    %v2202 = vadd.f32 %v2075, %v2141
    %v2203 = vadd.f32 %v2076, %v2142
    %v2204 = vadd.f32 %v2077, %v2143
    %v2205 = vadd.f32 %v2078, %v2144
    %v2206 = vadd.f32 %v2079, %v2145
    %v2207 = vadd.f32 %v2080, %v2146
    %v2208 = vadd.f32 %v2081, %v2147
    %v2209 = vadd.f32 %v2082, %v2148
    %v2210 = vadd.f32 %v2083, %v2149
    %v2211 = vadd.f32 %v2084, %v2150
    %v2212 = vadd.f32 %v2085, %v2151
    %v2213 = vadd.f32 %v2086, %v2152
    %v2214 = vadd.f32 %v2087, %v2153
    %v2215 = vadd.f32 %v2088, %v2154
    %v2216 = vadd.f32 %v2089, %v2155
    %v2217 = vadd.f32 %v2090, %v2156
    %v2218 = vadd.f32 %v2091, %v2157
    %v2219 = vadd.f32 %v2092, %v2158
    %v2220 = vadd.f32 %v2093, %v2159
    %v2221 = vadd.f32 %v2094, %v2160
    %v2222 = vadd.f32 %v2095, %v2161
    %v2223 = vadd.f32 %v2096, %v2162
    %v2224 = vadd.f32 %v2097, %v2163
    %v2225 = vadd.f32 %v2098, %v2164
    %v2226 = vadd.f32 %v2099, %v2165
    %v2227 = vadd.f32 %v2100, %v2165
    %v2228 = vadd.f32 %v2101, %v2166
    %v2229 = vadd.f32 %v2102, %v2167
    %v2230 = vadd.f32 %v2103, %v2168
    %v2231 = vadd.f32 %v2104, %v2169
    %v2232 = vadd.f32 %v2105, %v2170
    %v2233 = vadd.f32 %v2106, %v2171
    %v2234 = vadd.f32 %v2107, %v2172
    %v2235 = vadd.f32 %v2108, %v2173
    %v2236 = vadd.f32 %v2109, %v2174
    %v2237 = vadd.f32 %v2110, %v2175
    %v2238 = vadd.f32 %v2111, %v2176
    %v2239 = vadd.f32 %v2112, %v2177
    %v2240 = vadd.f32 %v2113, %v2178
    %v2241 = vadd.f32 %v2114, %v2179
    %v2242 = vadd.f32 %v2115, %v2180
    %v2243 = vadd.f32 %v2116, %v2181
    %v2244 = vadd.f32 %v2117, %v2182
    %v2245 = vadd.f32 %v2118, %v2183
    %v2246 = vadd.f32 %v2119, %v2184
    %v2247 = vadd.f32 %v2120, %v2185
    %v2248 = vadd.f32 %v2121, %v2186
    %v2249 = vadd.f32 %v2122, %v2187
    %v2250 = vadd.f32 %v2123, %v2188
    %v2251 = vadd.f32 %v2124, %v2189
    %v2252 = vadd.f32 %v2125, %v2190
    %v2253 = vadd.f32 %v2126, %v2191
    %v2254 = vadd.f32 %v2127, %v2192
    %v2255 = vadd.f32 %v2128, %v2193
    %v2256 = vadd.f32 %v2129, %v2194
    %v2257 = vadd.f32 %v2130, %v2195
    %v2258 = vadd.f32 %v2131, %v2165
    %v2259 = vadd.f32 %v2132, %v2165
    %v2260 = vld [vmem:[%s5] sm:$0x1]
    %v2262 = vperm.slane %v2260, 0
    %v2264 = vadd.f32 %v2196, %v2262
    %v2265 = vadd.f32 %v2197, %v2262
    %v2266 = vadd.f32 %v2198, %v2262
    %v2267 = vadd.f32 %v2199, %v2262
    %v2268 = vadd.f32 %v2200, %v2262
    %v2269 = vadd.f32 %v2201, %v2262
    %v2270 = vadd.f32 %v2202, %v2262
    %v2271 = vadd.f32 %v2203, %v2262
    %v2272 = vadd.f32 %v2204, %v2262
    %v2273 = vadd.f32 %v2205, %v2262
    %v2274 = vadd.f32 %v2206, %v2262
    %v2275 = vadd.f32 %v2207, %v2262
    %v2276 = vadd.f32 %v2208, %v2262
    %v2277 = vadd.f32 %v2209, %v2262
    %v2278 = vadd.f32 %v2210, %v2262
    %v2279 = vadd.f32 %v2211, %v2262
    %v2280 = vadd.f32 %v2212, %v2262
    %v2281 = vadd.f32 %v2213, %v2262
    %v2282 = vadd.f32 %v2214, %v2262
    %v2283 = vadd.f32 %v2215, %v2262
    %v2284 = vadd.f32 %v2216, %v2262
    %v2285 = vadd.f32 %v2217, %v2262
    %v2286 = vadd.f32 %v2218, %v2262
    %v2287 = vadd.f32 %v2219, %v2262
    %v2288 = vadd.f32 %v2220, %v2262
    %v2289 = vadd.f32 %v2221, %v2262
    %v2290 = vadd.f32 %v2222, %v2262
    %v2291 = vadd.f32 %v2223, %v2262
    %v2292 = vadd.f32 %v2224, %v2262
    %v2293 = vadd.f32 %v2225, %v2262
    %v2294 = vadd.f32 %v2226, %v2262
    %v2295 = vadd.f32 %v2227, %v2262
    %v2296 = vadd.f32 %v2228, %v2262
    %v2297 = vadd.f32 %v2229, %v2262
    %v2298 = vadd.f32 %v2230, %v2262
    %v2299 = vadd.f32 %v2231, %v2262
    %v2300 = vadd.f32 %v2232, %v2262
    %v2301 = vadd.f32 %v2233, %v2262
    %v2302 = vadd.f32 %v2234, %v2262
    %v2303 = vadd.f32 %v2235, %v2262
    %v2304 = vadd.f32 %v2236, %v2262
    %v2305 = vadd.f32 %v2237, %v2262
    %v2306 = vadd.f32 %v2238, %v2262
    %v2307 = vadd.f32 %v2239, %v2262
    %v2308 = vadd.f32 %v2240, %v2262
    %v2309 = vadd.f32 %v2241, %v2262
    %v2310 = vadd.f32 %v2242, %v2262
    %v2311 = vadd.f32 %v2243, %v2262
    %v2312 = vadd.f32 %v2244, %v2262
    %v2313 = vadd.f32 %v2245, %v2262
    %v2314 = vadd.f32 %v2246, %v2262
    %v2315 = vadd.f32 %v2247, %v2262
    %v2316 = vadd.f32 %v2248, %v2262
    %v2317 = vadd.f32 %v2249, %v2262
    %v2318 = vadd.f32 %v2250, %v2262
    %v2319 = vadd.f32 %v2251, %v2262
    %v2320 = vadd.f32 %v2252, %v2262
    %v2321 = vadd.f32 %v2253, %v2262
    %v2322 = vadd.f32 %v2254, %v2262
    %v2323 = vadd.f32 %v2255, %v2262
    %v2324 = vadd.f32 %v2256, %v2262
    %v2325 = vadd.f32 %v2257, %v2262
    %v2326 = vadd.f32 %v2258, %v2262
    %v2327 = vadd.f32 %v2259, %v2262
    %v2328 = vpack.c.bf16 %v2265, %v2264
    %v2329 = vpack.c.bf16 %v2267, %v2266
    %v2330 = vpack.c.bf16 %v2269, %v2268
    %v2331 = vpack.c.bf16 %v2271, %v2270
    %v2332 = vpack.c.bf16 %v2273, %v2272
    %v2333 = vpack.c.bf16 %v2275, %v2274
    %v2334 = vpack.c.bf16 %v2277, %v2276
    %v2335 = vpack.c.bf16 %v2279, %v2278
    %v2336 = vpack.c.bf16 %v2281, %v2280
    %v2337 = vpack.c.bf16 %v2283, %v2282
    %v2338 = vpack.c.bf16 %v2285, %v2284
    %v2339 = vpack.c.bf16 %v2287, %v2286
    %v2340 = vpack.c.bf16 %v2289, %v2288
    %v2341 = vpack.c.bf16 %v2291, %v2290
    %v2342 = vpack.c.bf16 %v2293, %v2292
    %v2343 = vpack.c.bf16 %v2295, %v2294
    %v2344 = vpack.c.bf16 %v2297, %v2296
    %v2345 = vpack.c.bf16 %v2299, %v2298
    %v2346 = vpack.c.bf16 %v2301, %v2300
    %v2347 = vpack.c.bf16 %v2303, %v2302
    %v2348 = vpack.c.bf16 %v2305, %v2304
    %v2349 = vpack.c.bf16 %v2307, %v2306
    %v2350 = vpack.c.bf16 %v2309, %v2308
    %v2351 = vpack.c.bf16 %v2311, %v2310
    %v2352 = vpack.c.bf16 %v2313, %v2312
    %v2353 = vpack.c.bf16 %v2315, %v2314
    %v2354 = vpack.c.bf16 %v2317, %v2316
    %v2355 = vpack.c.bf16 %v2319, %v2318
    %v2356 = vpack.c.bf16 %v2321, %v2320
    %v2357 = vpack.c.bf16 %v2323, %v2322
    %v2358 = vpack.c.bf16 %v2325, %v2324
    %v2359 = vpack.c.bf16 %v2327, %v2326
    %v2360 = vld [vmem:[#allocation8] sm:$0xf]
    %v2361 = vld [vmem:[#allocation8 + $0x4] sm:$0xf]
    %v2362 = vld [vmem:[#allocation8 + $0x8] sm:$0xf]
    %v2363 = vld [vmem:[#allocation8 + $0xc] sm:$0xf]
    %v2364 = vld [vmem:[#allocation8 + $0x10] sm:$0xf]
    %v2365 = vld [vmem:[#allocation8 + $0x14] sm:$0xf]
    %v2366 = vld [vmem:[#allocation8 + $0x18] sm:$0xf]
    %v2367 = vld [vmem:[#allocation8 + $0x1c] sm:$0xf]
    %v2368 = vld [vmem:[#allocation8 + $0x20] sm:$0xf]
    %v2369 = vld [vmem:[#allocation8 + $0x24] sm:$0xf]
    %v2370 = vld [vmem:[#allocation8 + $0x28] sm:$0xf]
    %v2371 = vld [vmem:[#allocation8 + $0x2c] sm:$0xf]
    %v2372 = vld [vmem:[#allocation8 + $0x30] sm:$0xf]
    %v2373 = vld [vmem:[#allocation8 + $0x34] sm:$0xf]
    %v2374 = vld [vmem:[#allocation8 + $0x38] sm:$0xf]
    %v2375 = vld [vmem:[#allocation8 + $0x3c] sm:$0xf]
    %v2392 = vunpack.c.l.b16 %v2360
    %v2393 = vunpack.c.l.b16 %v2361
    %v2394 = vunpack.c.l.b16 %v2362
    %v2395 = vunpack.c.l.b16 %v2363
    %v2396 = vunpack.c.l.b16 %v2364
    %v2397 = vunpack.c.l.b16 %v2365
    %v2398 = vunpack.c.l.b16 %v2366
    %v2399 = vunpack.c.l.b16 %v2367
    %v2400 = vunpack.c.l.b16 %v2368
    %v2401 = vunpack.c.l.b16 %v2369
    %v2402 = vunpack.c.l.b16 %v2370
    %v2403 = vunpack.c.l.b16 %v2371
    %v2404 = vunpack.c.l.b16 %v2372
    %v2405 = vunpack.c.l.b16 %v2373
    %v2406 = vunpack.c.l.b16 %v2374
    %v2407 = vunpack.c.l.b16 %v2375
    %v2408 = vpack.c.b16 %v2393, %v2392
    %v2409 = vpack.c.b16 %v2395, %v2394
    %v2410 = vpack.c.b16 %v2397, %v2396
    %v2411 = vpack.c.b16 %v2399, %v2398
    %v2412 = vpack.c.b16 %v2401, %v2400
    %v2413 = vpack.c.b16 %v2403, %v2402
    %v2414 = vpack.c.b16 %v2405, %v2404
    %v2415 = vpack.c.b16 %v2407, %v2406
    %2424 = vmatpush.bf16.msra.mxu0 %v2415
    %2425 = vmatpush.bf16.msra.mxu0 %v2414
    %2426 = vmatpush.bf16.msra.mxu0 %v2413
    %2427 = vmatpush.bf16.msra.mxu0 %v2412
    %2428 = vmatpush.bf16.msra.mxu0 %v2411
    %2429 = vmatpush.bf16.msra.mxu0 %v2410
    %2430 = vmatpush.bf16.msra.mxu0 %v2409
    %2431 = vmatpush.bf16.msra.mxu0 %v2408
    %2432 = vmatmul.bf16.gmra.mxu0 %v2328
    %v2433 = vpop.f32.mrf.mxu0
    %v2434 = vadd.f32 0.0, %v2433
    %v2435 = vpop.f32.mrf.mxu0
    %v2436 = vadd.f32 0.0, %v2435
    %2437 = vmatmul.bf16.gmra.mxu0 %v2329
    %v2438 = vpop.f32.mrf.mxu0
    %v2439 = vadd.f32 0.0, %v2438
    %v2440 = vpop.f32.mrf.mxu0
    %v2441 = vadd.f32 0.0, %v2440
    %2442 = vmatmul.bf16.gmra.mxu0 %v2330
    %v2443 = vpop.f32.mrf.mxu0
    %v2444 = vadd.f32 0.0, %v2443
    %v2445 = vpop.f32.mrf.mxu0
    %v2446 = vadd.f32 0.0, %v2445
    %2447 = vmatmul.bf16.gmra.mxu0 %v2331
    %v2448 = vpop.f32.mrf.mxu0
    %v2449 = vadd.f32 0.0, %v2448
    %v2450 = vpop.f32.mrf.mxu0
    %v2451 = vadd.f32 0.0, %v2450
    %2452 = vmatmul.bf16.gmra.mxu0 %v2332
    %v2453 = vpop.f32.mrf.mxu0
    %v2454 = vadd.f32 0.0, %v2453
    %v2455 = vpop.f32.mrf.mxu0
    %v2456 = vadd.f32 0.0, %v2455
    %2457 = vmatmul.bf16.gmra.mxu0 %v2333
    %v2458 = vpop.f32.mrf.mxu0
    %v2459 = vadd.f32 0.0, %v2458
    %v2460 = vpop.f32.mrf.mxu0
    %v2461 = vadd.f32 0.0, %v2460
    %2462 = vmatmul.bf16.gmra.mxu0 %v2334
    %v2463 = vpop.f32.mrf.mxu0
    %v2464 = vadd.f32 0.0, %v2463
    %v2465 = vpop.f32.mrf.mxu0
    %v2466 = vadd.f32 0.0, %v2465
    %2467 = vmatmul.bf16.gmra.mxu0 %v2335
    %v2468 = vpop.f32.mrf.mxu0
    %v2469 = vadd.f32 0.0, %v2468
    %v2470 = vpop.f32.mrf.mxu0
    %v2471 = vadd.f32 0.0, %v2470
    %2472 = vmatmul.bf16.gmra.mxu0 %v2336
    %v2473 = vpop.f32.mrf.mxu0
    %v2474 = vadd.f32 0.0, %v2473
    %v2475 = vpop.f32.mrf.mxu0
    %v2476 = vadd.f32 0.0, %v2475
    %2477 = vmatmul.bf16.gmra.mxu0 %v2337
    %v2478 = vpop.f32.mrf.mxu0
    %v2479 = vadd.f32 0.0, %v2478
    %v2480 = vpop.f32.mrf.mxu0
    %v2481 = vadd.f32 0.0, %v2480
    %2482 = vmatmul.bf16.gmra.mxu0 %v2338
    %v2483 = vpop.f32.mrf.mxu0
    %v2484 = vadd.f32 0.0, %v2483
    %v2485 = vpop.f32.mrf.mxu0
    %v2486 = vadd.f32 0.0, %v2485
    %2487 = vmatmul.bf16.gmra.mxu0 %v2339
    %v2488 = vpop.f32.mrf.mxu0
    %v2489 = vadd.f32 0.0, %v2488
    %v2490 = vpop.f32.mrf.mxu0
    %v2491 = vadd.f32 0.0, %v2490
    %2492 = vmatmul.bf16.gmra.mxu0 %v2340
    %v2493 = vpop.f32.mrf.mxu0
    %v2494 = vadd.f32 0.0, %v2493
    %v2495 = vpop.f32.mrf.mxu0
    %v2496 = vadd.f32 0.0, %v2495
    %2497 = vmatmul.bf16.gmra.mxu0 %v2341
    %v2498 = vpop.f32.mrf.mxu0
    %v2499 = vadd.f32 0.0, %v2498
    %v2500 = vpop.f32.mrf.mxu0
    %v2501 = vadd.f32 0.0, %v2500
    %2502 = vmatmul.bf16.gmra.mxu0 %v2342
    %v2503 = vpop.f32.mrf.mxu0
    %v2504 = vadd.f32 0.0, %v2503
    %v2505 = vpop.f32.mrf.mxu0
    %v2506 = vadd.f32 0.0, %v2505
    %2507 = vmatmul.bf16.gmra.mxu0 %v2343
    %v2508 = vpop.f32.mrf.mxu0
    %v2509 = vadd.f32 0.0, %v2508
    %v2510 = vpop.f32.mrf.mxu0
    %v2511 = vadd.f32 0.0, %v2510
    %2512 = vmatmul.bf16.gmra.mxu0 %v2344
    %v2513 = vpop.f32.mrf.mxu0
    %v2514 = vadd.f32 0.0, %v2513
    %v2515 = vpop.f32.mrf.mxu0
    %v2516 = vadd.f32 0.0, %v2515
    %2517 = vmatmul.bf16.gmra.mxu0 %v2345
    %v2518 = vpop.f32.mrf.mxu0
    %v2519 = vadd.f32 0.0, %v2518
    %v2520 = vpop.f32.mrf.mxu0
    %v2521 = vadd.f32 0.0, %v2520
    %2522 = vmatmul.bf16.gmra.mxu0 %v2346
    %v2523 = vpop.f32.mrf.mxu0
    %v2524 = vadd.f32 0.0, %v2523
    %v2525 = vpop.f32.mrf.mxu0
    %v2526 = vadd.f32 0.0, %v2525
    %2527 = vmatmul.bf16.gmra.mxu0 %v2347
    %v2528 = vpop.f32.mrf.mxu0
    %v2529 = vadd.f32 0.0, %v2528
    %v2530 = vpop.f32.mrf.mxu0
    %v2531 = vadd.f32 0.0, %v2530
    %2532 = vmatmul.bf16.gmra.mxu0 %v2348
    %v2533 = vpop.f32.mrf.mxu0
    %v2534 = vadd.f32 0.0, %v2533
    %v2535 = vpop.f32.mrf.mxu0
    %v2536 = vadd.f32 0.0, %v2535
    %2537 = vmatmul.bf16.gmra.mxu0 %v2349
    %v2538 = vpop.f32.mrf.mxu0
    %v2539 = vadd.f32 0.0, %v2538
    %v2540 = vpop.f32.mrf.mxu0
    %v2541 = vadd.f32 0.0, %v2540
    %2542 = vmatmul.bf16.gmra.mxu0 %v2350
    %v2543 = vpop.f32.mrf.mxu0
    %v2544 = vadd.f32 0.0, %v2543
    %v2545 = vpop.f32.mrf.mxu0
    %v2546 = vadd.f32 0.0, %v2545
    %2547 = vmatmul.bf16.gmra.mxu0 %v2351
    %v2548 = vpop.f32.mrf.mxu0
    %v2549 = vadd.f32 0.0, %v2548
    %v2550 = vpop.f32.mrf.mxu0
    %v2551 = vadd.f32 0.0, %v2550
    %2552 = vmatmul.bf16.gmra.mxu0 %v2352
    %v2553 = vpop.f32.mrf.mxu0
    %v2554 = vadd.f32 0.0, %v2553
    %v2555 = vpop.f32.mrf.mxu0
    %v2556 = vadd.f32 0.0, %v2555
    %2557 = vmatmul.bf16.gmra.mxu0 %v2353
    %v2558 = vpop.f32.mrf.mxu0
    %v2559 = vadd.f32 0.0, %v2558
    %v2560 = vpop.f32.mrf.mxu0
    %v2561 = vadd.f32 0.0, %v2560
    %2562 = vmatmul.bf16.gmra.mxu0 %v2354
    %v2563 = vpop.f32.mrf.mxu0
    %v2564 = vadd.f32 0.0, %v2563
    %v2565 = vpop.f32.mrf.mxu0
    %v2566 = vadd.f32 0.0, %v2565
    %2567 = vmatmul.bf16.gmra.mxu0 %v2355
    %v2568 = vpop.f32.mrf.mxu0
    %v2569 = vadd.f32 0.0, %v2568
    %v2570 = vpop.f32.mrf.mxu0
    %v2571 = vadd.f32 0.0, %v2570
    %2572 = vmatmul.bf16.gmra.mxu0 %v2356
    %v2573 = vpop.f32.mrf.mxu0
    %v2574 = vadd.f32 0.0, %v2573
    %v2575 = vpop.f32.mrf.mxu0
    %v2576 = vadd.f32 0.0, %v2575
    %2577 = vmatmul.bf16.gmra.mxu0 %v2357
    %v2578 = vpop.f32.mrf.mxu0
    %v2579 = vadd.f32 0.0, %v2578
    %v2580 = vpop.f32.mrf.mxu0
    %v2581 = vadd.f32 0.0, %v2580
    %2582 = vmatmul.bf16.gmra.mxu0 %v2358
    %v2583 = vpop.f32.mrf.mxu0
    %v2584 = vadd.f32 0.0, %v2583
    %v2585 = vpop.f32.mrf.mxu0
    %v2586 = vadd.f32 0.0, %v2585
    %2587 = vmatmul.bf16.gmra.mxu0 %v2359
    %v2588 = vpop.f32.mrf.mxu0
    %v2589 = vadd.f32 0.0, %v2588
    %v2590 = vpop.f32.mrf.mxu0
    %v2591 = vadd.f32 0.0, %v2590
    %2592 = vdwg.mxu0
    %v2593 = vld [vmem:[%s7] sm:$0x1]
    %v2595 = vperm.slane %v2593, 0
    %v2597 = vmul.f32 %v2434, %v2595
    %v2598 = vmul.f32 %v2436, %v2595
    %v2599 = vmul.f32 %v2439, %v2595
    %v2600 = vmul.f32 %v2441, %v2595
    %v2601 = vmul.f32 %v2444, %v2595
    %v2602 = vmul.f32 %v2446, %v2595
    %v2603 = vmul.f32 %v2449, %v2595
    %v2604 = vmul.f32 %v2451, %v2595
    %v2605 = vmul.f32 %v2454, %v2595
    %v2606 = vmul.f32 %v2456, %v2595
    %v2607 = vmul.f32 %v2459, %v2595
    %v2608 = vmul.f32 %v2461, %v2595
    %v2609 = vmul.f32 %v2464, %v2595
    %v2610 = vmul.f32 %v2466, %v2595
    %v2611 = vmul.f32 %v2469, %v2595
    %v2612 = vmul.f32 %v2471, %v2595
    %v2613 = vmul.f32 %v2474, %v2595
    %v2614 = vmul.f32 %v2476, %v2595
    %v2615 = vmul.f32 %v2479, %v2595
    %v2616 = vmul.f32 %v2481, %v2595
    %v2617 = vmul.f32 %v2484, %v2595
    %v2618 = vmul.f32 %v2486, %v2595
    %v2619 = vmul.f32 %v2489, %v2595
    %v2620 = vmul.f32 %v2491, %v2595
    %v2621 = vmul.f32 %v2494, %v2595
    %v2622 = vmul.f32 %v2496, %v2595
    %v2623 = vmul.f32 %v2499, %v2595
    %v2624 = vmul.f32 %v2501, %v2595
    %v2625 = vmul.f32 %v2504, %v2595
    %v2626 = vmul.f32 %v2506, %v2595
    %v2627 = vmul.f32 %v2509, %v2595
    %v2628 = vmul.f32 %v2511, %v2595
    %v2629 = vmul.f32 %v2514, %v2595
    %v2630 = vmul.f32 %v2516, %v2595
    %v2631 = vmul.f32 %v2519, %v2595
    %v2632 = vmul.f32 %v2521, %v2595
    %v2633 = vmul.f32 %v2524, %v2595
    %v2634 = vmul.f32 %v2526, %v2595
    %v2635 = vmul.f32 %v2529, %v2595
    %v2636 = vmul.f32 %v2531, %v2595
    %v2637 = vmul.f32 %v2534, %v2595
    %v2638 = vmul.f32 %v2536, %v2595
    %v2639 = vmul.f32 %v2539, %v2595
    %v2640 = vmul.f32 %v2541, %v2595
    %v2641 = vmul.f32 %v2544, %v2595
    %v2642 = vmul.f32 %v2546, %v2595
    %v2643 = vmul.f32 %v2549, %v2595
    %v2644 = vmul.f32 %v2551, %v2595
    %v2645 = vmul.f32 %v2554, %v2595
    %v2646 = vmul.f32 %v2556, %v2595
    %v2647 = vmul.f32 %v2559, %v2595
    %v2648 = vmul.f32 %v2561, %v2595
    %v2649 = vmul.f32 %v2564, %v2595
    %v2650 = vmul.f32 %v2566, %v2595
    %v2651 = vmul.f32 %v2569, %v2595
    %v2652 = vmul.f32 %v2571, %v2595
    %v2653 = vmul.f32 %v2574, %v2595
    %v2654 = vmul.f32 %v2576, %v2595
    %v2655 = vmul.f32 %v2579, %v2595
    %v2656 = vmul.f32 %v2581, %v2595
    %v2657 = vmul.f32 %v2584, %v2595
    %v2658 = vmul.f32 %v2586, %v2595
    %v2659 = vmul.f32 %v2589, %v2595
    %v2660 = vmul.f32 %v2591, %v2595
    %v2661 = vld [vmem:[%s8] sm:$0x1]
    %v2663 = vperm.slane %v2661, 0
    %v2665 = vadd.f32 %v2597, %v2663
    %v2666 = vadd.f32 %v2598, %v2663
    %v2667 = vadd.f32 %v2599, %v2663
    %v2668 = vadd.f32 %v2600, %v2663
    %v2669 = vadd.f32 %v2601, %v2663
    %v2670 = vadd.f32 %v2602, %v2663
    %v2671 = vadd.f32 %v2603, %v2663
    %v2672 = vadd.f32 %v2604, %v2663
    %v2673 = vadd.f32 %v2605, %v2663
    %v2674 = vadd.f32 %v2606, %v2663
    %v2675 = vadd.f32 %v2607, %v2663
    %v2676 = vadd.f32 %v2608, %v2663
    %v2677 = vadd.f32 %v2609, %v2663
    %v2678 = vadd.f32 %v2610, %v2663
    %v2679 = vadd.f32 %v2611, %v2663
    %v2680 = vadd.f32 %v2612, %v2663
    %v2681 = vadd.f32 %v2613, %v2663
    %v2682 = vadd.f32 %v2614, %v2663
    %v2683 = vadd.f32 %v2615, %v2663
    %v2684 = vadd.f32 %v2616, %v2663
    %v2685 = vadd.f32 %v2617, %v2663
    %v2686 = vadd.f32 %v2618, %v2663
    %v2687 = vadd.f32 %v2619, %v2663
    %v2688 = vadd.f32 %v2620, %v2663
    %v2689 = vadd.f32 %v2621, %v2663
    %v2690 = vadd.f32 %v2622, %v2663
    %v2691 = vadd.f32 %v2623, %v2663
    %v2692 = vadd.f32 %v2624, %v2663
    %v2693 = vadd.f32 %v2625, %v2663
    %v2694 = vadd.f32 %v2626, %v2663
    %v2695 = vadd.f32 %v2627, %v2663
    %v2696 = vadd.f32 %v2628, %v2663
    %v2697 = vadd.f32 %v2629, %v2663
    %v2698 = vadd.f32 %v2630, %v2663
    %v2699 = vadd.f32 %v2631, %v2663
    %v2700 = vadd.f32 %v2632, %v2663
    %v2701 = vadd.f32 %v2633, %v2663
    %v2702 = vadd.f32 %v2634, %v2663
    %v2703 = vadd.f32 %v2635, %v2663
    %v2704 = vadd.f32 %v2636, %v2663
    %v2705 = vadd.f32 %v2637, %v2663
    %v2706 = vadd.f32 %v2638, %v2663
    %v2707 = vadd.f32 %v2639, %v2663
    %v2708 = vadd.f32 %v2640, %v2663
    %v2709 = vadd.f32 %v2641, %v2663
    %v2710 = vadd.f32 %v2642, %v2663
    %v2711 = vadd.f32 %v2643, %v2663
    %v2712 = vadd.f32 %v2644, %v2663
    %v2713 = vadd.f32 %v2645, %v2663
    %v2714 = vadd.f32 %v2646, %v2663
    %v2715 = vadd.f32 %v2647, %v2663
    %v2716 = vadd.f32 %v2648, %v2663
    %v2717 = vadd.f32 %v2649, %v2663
    %v2718 = vadd.f32 %v2650, %v2663
    %v2719 = vadd.f32 %v2651, %v2663
    %v2720 = vadd.f32 %v2652, %v2663
    %v2721 = vadd.f32 %v2653, %v2663
    %v2722 = vadd.f32 %v2654, %v2663
    %v2723 = vadd.f32 %v2655, %v2663
    %v2724 = vadd.f32 %v2656, %v2663
    %v2725 = vadd.f32 %v2657, %v2663
    %v2726 = vadd.f32 %v2658, %v2663
    %v2727 = vadd.f32 %v2659, %v2663
    %v2728 = vadd.f32 %v2660, %v2663
    %v2729 = vunpack.c.l.bf16 %v96
    %v2730 = vunpack.c.l.bf16 %v97
    %v2731 = vunpack.c.l.bf16 %v98
    %v2732 = vunpack.c.l.bf16 %v99
    %v2733 = vunpack.c.l.bf16 %v100
    %v2734 = vunpack.c.l.bf16 %v101
    %v2735 = vunpack.c.l.bf16 %v102
    %v2736 = vunpack.c.l.bf16 %v103
    %v2737 = vunpack.c.l.bf16 %v104
    %v2738 = vunpack.c.l.bf16 %v105
    %v2739 = vunpack.c.l.bf16 %v106
    %v2740 = vunpack.c.l.bf16 %v107
    %v2741 = vunpack.c.l.bf16 %v108
    %v2742 = vunpack.c.l.bf16 %v109
    %v2743 = vunpack.c.l.bf16 %v110
    %v2744 = vunpack.c.l.bf16 %v111
    %v2745 = vunpack.c.l.bf16 %v112
    %v2746 = vunpack.c.l.bf16 %v113
    %v2747 = vunpack.c.l.bf16 %v114
    %v2748 = vunpack.c.l.bf16 %v115
    %v2749 = vunpack.c.l.bf16 %v116
    %v2750 = vunpack.c.l.bf16 %v117
    %v2751 = vunpack.c.l.bf16 %v118
    %v2752 = vunpack.c.l.bf16 %v119
    %v2753 = vunpack.c.l.bf16 %v120
    %v2754 = vunpack.c.l.bf16 %v121
    %v2755 = vunpack.c.l.bf16 %v122
    %v2756 = vunpack.c.l.bf16 %v123
    %v2757 = vunpack.c.l.bf16 %v124
    %v2758 = vunpack.c.l.bf16 %v125
    %v2759 = vunpack.c.l.bf16 %v126
    %v2760 = vunpack.c.l.bf16 %v127
    %v2761 = vunpack.c.l.bf16 %v128
    %v2762 = vunpack.c.l.bf16 %v129
    %v2763 = vunpack.c.l.bf16 %v130
    %v2764 = vunpack.c.l.bf16 %v131
    %v2765 = vunpack.c.l.bf16 %v132
    %v2766 = vunpack.c.l.bf16 %v133
    %v2767 = vunpack.c.l.bf16 %v134
    %v2768 = vunpack.c.l.bf16 %v135
    %v2769 = vunpack.c.l.bf16 %v136
    %v2770 = vunpack.c.l.bf16 %v137
    %v2771 = vunpack.c.l.bf16 %v138
    %v2772 = vunpack.c.l.bf16 %v139
    %v2773 = vunpack.c.l.bf16 %v140
    %v2774 = vunpack.c.l.bf16 %v141
    %v2775 = vunpack.c.l.bf16 %v142
    %v2776 = vunpack.c.l.bf16 %v143
    %v2777 = vunpack.c.l.bf16 %v144
    %v2778 = vunpack.c.l.bf16 %v145
    %v2779 = vunpack.c.l.bf16 %v146
    %v2780 = vunpack.c.l.bf16 %v147
    %v2781 = vunpack.c.l.bf16 %v148
    %v2782 = vunpack.c.l.bf16 %v149
    %v2783 = vunpack.c.l.bf16 %v150
    %v2784 = vunpack.c.l.bf16 %v151
    %v2785 = vunpack.c.l.bf16 %v152
    %v2786 = vunpack.c.l.bf16 %v153
    %v2787 = vunpack.c.l.bf16 %v154
    %v2788 = vunpack.c.l.bf16 %v155
    %v2789 = vunpack.c.l.bf16 %v156
    %v2790 = vunpack.c.l.bf16 %v157
    %v2791 = vunpack.c.l.bf16 %v158
    %v2792 = vunpack.c.l.bf16 %v159
    %v2793 = vadd.f32 %v2729, %v2665
    %v2794 = vadd.f32 %v2730, %v2666
    %v2795 = vadd.f32 %v2731, %v2667
    %v2796 = vadd.f32 %v2732, %v2668
    %v2797 = vadd.f32 %v2733, %v2669
    %v2798 = vadd.f32 %v2734, %v2670
    %v2799 = vadd.f32 %v2735, %v2671
    %v2800 = vadd.f32 %v2736, %v2672
    %v2801 = vadd.f32 %v2737, %v2673
    %v2802 = vadd.f32 %v2738, %v2674
    %v2803 = vadd.f32 %v2739, %v2675
    %v2804 = vadd.f32 %v2740, %v2676
    %v2805 = vadd.f32 %v2741, %v2677
    %v2806 = vadd.f32 %v2742, %v2678
    %v2807 = vadd.f32 %v2743, %v2679
    %v2808 = vadd.f32 %v2744, %v2680
    %v2809 = vadd.f32 %v2745, %v2681
    %v2810 = vadd.f32 %v2746, %v2682
    %v2811 = vadd.f32 %v2747, %v2683
    %v2812 = vadd.f32 %v2748, %v2684
    %v2813 = vadd.f32 %v2749, %v2685
    %v2814 = vadd.f32 %v2750, %v2686
    %v2815 = vadd.f32 %v2751, %v2687
    %v2816 = vadd.f32 %v2752, %v2688
    %v2817 = vadd.f32 %v2753, %v2689
    %v2818 = vadd.f32 %v2754, %v2690
    %v2819 = vadd.f32 %v2755, %v2691
    %v2820 = vadd.f32 %v2756, %v2692
    %v2821 = vadd.f32 %v2757, %v2693
    %v2822 = vadd.f32 %v2758, %v2694
    %v2823 = vadd.f32 %v2759, %v2695
    %v2824 = vadd.f32 %v2760, %v2696
    %v2825 = vadd.f32 %v2761, %v2697
    %v2826 = vadd.f32 %v2762, %v2698
    %v2827 = vadd.f32 %v2763, %v2699
    %v2828 = vadd.f32 %v2764, %v2700
    %v2829 = vadd.f32 %v2765, %v2701
    %v2830 = vadd.f32 %v2766, %v2702
    %v2831 = vadd.f32 %v2767, %v2703
    %v2832 = vadd.f32 %v2768, %v2704
    %v2833 = vadd.f32 %v2769, %v2705
    %v2834 = vadd.f32 %v2770, %v2706
    %v2835 = vadd.f32 %v2771, %v2707
    %v2836 = vadd.f32 %v2772, %v2708
    %v2837 = vadd.f32 %v2773, %v2709
    %v2838 = vadd.f32 %v2774, %v2710
    %v2839 = vadd.f32 %v2775, %v2711
    %v2840 = vadd.f32 %v2776, %v2712
    %v2841 = vadd.f32 %v2777, %v2713
    %v2842 = vadd.f32 %v2778, %v2714
    %v2843 = vadd.f32 %v2779, %v2715
    %v2844 = vadd.f32 %v2780, %v2716
    %v2845 = vadd.f32 %v2781, %v2717
    %v2846 = vadd.f32 %v2782, %v2718
    %v2847 = vadd.f32 %v2783, %v2719
    %v2848 = vadd.f32 %v2784, %v2720
    %v2849 = vadd.f32 %v2785, %v2721
    %v2850 = vadd.f32 %v2786, %v2722
    %v2851 = vadd.f32 %v2787, %v2723
    %v2852 = vadd.f32 %v2788, %v2724
    %v2853 = vadd.f32 %v2789, %v2725
    %v2854 = vadd.f32 %v2790, %v2726
    %v2855 = vadd.f32 %v2791, %v2727
    %v2856 = vadd.f32 %v2792, %v2728
    %v2857 = vmax.f32 %v2793, 0.0
    %v2858 = vmax.f32 %v2794, 0.0
    %v2859 = vmax.f32 %v2795, 0.0
    %v2860 = vmax.f32 %v2796, 0.0
    %v2861 = vmax.f32 %v2797, 0.0
    %v2862 = vmax.f32 %v2798, 0.0
    %v2863 = vmax.f32 %v2799, 0.0
    %v2864 = vmax.f32 %v2800, 0.0
    %v2865 = vmax.f32 %v2801, 0.0
    %v2866 = vmax.f32 %v2802, 0.0
    %v2867 = vmax.f32 %v2803, 0.0
    %v2868 = vmax.f32 %v2804, 0.0
    %v2869 = vmax.f32 %v2805, 0.0
    %v2870 = vmax.f32 %v2806, 0.0
    %v2871 = vmax.f32 %v2807, 0.0
    %v2872 = vmax.f32 %v2808, 0.0
    %v2873 = vmax.f32 %v2809, 0.0
    %v2874 = vmax.f32 %v2810, 0.0
    %v2875 = vmax.f32 %v2811, 0.0
    %v2876 = vmax.f32 %v2812, 0.0
    %v2877 = vmax.f32 %v2813, 0.0
    %v2878 = vmax.f32 %v2814, 0.0
    %v2879 = vmax.f32 %v2815, 0.0
    %v2880 = vmax.f32 %v2816, 0.0
    %v2881 = vmax.f32 %v2817, 0.0
    %v2882 = vmax.f32 %v2818, 0.0
    %v2883 = vmax.f32 %v2819, 0.0
    %v2884 = vmax.f32 %v2820, 0.0
    %v2885 = vmax.f32 %v2821, 0.0
    %v2886 = vmax.f32 %v2822, 0.0
    %v2887 = vmax.f32 %v2823, 0.0
    %v2888 = vmax.f32 %v2824, 0.0
    %v2889 = vmax.f32 %v2825, 0.0
    %v2890 = vmax.f32 %v2826, 0.0
    %v2891 = vmax.f32 %v2827, 0.0
    %v2892 = vmax.f32 %v2828, 0.0
    %v2893 = vmax.f32 %v2829, 0.0
    %v2894 = vmax.f32 %v2830, 0.0
    %v2895 = vmax.f32 %v2831, 0.0
    %v2896 = vmax.f32 %v2832, 0.0
    %v2897 = vmax.f32 %v2833, 0.0
    %v2898 = vmax.f32 %v2834, 0.0
    %v2899 = vmax.f32 %v2835, 0.0
    %v2900 = vmax.f32 %v2836, 0.0
    %v2901 = vmax.f32 %v2837, 0.0
    %v2902 = vmax.f32 %v2838, 0.0
    %v2903 = vmax.f32 %v2839, 0.0
    %v2904 = vmax.f32 %v2840, 0.0
    %v2905 = vmax.f32 %v2841, 0.0
    %v2906 = vmax.f32 %v2842, 0.0
    %v2907 = vmax.f32 %v2843, 0.0
    %v2908 = vmax.f32 %v2844, 0.0
    %v2909 = vmax.f32 %v2845, 0.0
    %v2910 = vmax.f32 %v2846, 0.0
    %v2911 = vmax.f32 %v2847, 0.0
    %v2912 = vmax.f32 %v2848, 0.0
    %v2913 = vmax.f32 %v2849, 0.0
    %v2914 = vmax.f32 %v2850, 0.0
    %v2915 = vmax.f32 %v2851, 0.0
    %v2916 = vmax.f32 %v2852, 0.0
    %v2917 = vmax.f32 %v2853, 0.0
    %v2918 = vmax.f32 %v2854, 0.0
    %v2919 = vmax.f32 %v2855, 0.0
    %v2920 = vmax.f32 %v2856, 0.0
    %2921 = vst [vmem:[#allocation10] sm:$0xff] %v2857
    %2922 = vst [vmem:[#allocation10 + $0x8] sm:$0xff] %v2858
    %2923 = vst [vmem:[#allocation10 + $0x10] sm:$0xff] %v2859
    %2924 = vst [vmem:[#allocation10 + $0x18] sm:$0xff] %v2860
    %2925 = vst [vmem:[#allocation10 + $0x20] sm:$0xff] %v2861
    %2926 = vst [vmem:[#allocation10 + $0x28] sm:$0xff] %v2862
    %2927 = vst [vmem:[#allocation10 + $0x30] sm:$0xff] %v2863
    %2928 = vst [vmem:[#allocation10 + $0x38] sm:$0xff] %v2864
    %2929 = vst [vmem:[#allocation10 + $0x40] sm:$0xff] %v2865
    %2930 = vst [vmem:[#allocation10 + $0x48] sm:$0xff] %v2866
    %2931 = vst [vmem:[#allocation10 + $0x50] sm:$0xff] %v2867
    %2932 = vst [vmem:[#allocation10 + $0x58] sm:$0xff] %v2868
    %2933 = vst [vmem:[#allocation10 + $0x60] sm:$0xff] %v2869
    %2934 = vst [vmem:[#allocation10 + $0x68] sm:$0xff] %v2870
    %2935 = vst [vmem:[#allocation10 + $0x70] sm:$0xff] %v2871
    %2936 = vst [vmem:[#allocation10 + $0x78] sm:$0xff] %v2872
    %2937 = vst [vmem:[#allocation10 + $0x80] sm:$0xff] %v2873
    %2938 = vst [vmem:[#allocation10 + $0x88] sm:$0xff] %v2874
    %2939 = vst [vmem:[#allocation10 + $0x90] sm:$0xff] %v2875
    %2940 = vst [vmem:[#allocation10 + $0x98] sm:$0xff] %v2876
    %2941 = vst [vmem:[#allocation10 + $0xa0] sm:$0xff] %v2877
    %2942 = vst [vmem:[#allocation10 + $0xa8] sm:$0xff] %v2878
    %2943 = vst [vmem:[#allocation10 + $0xb0] sm:$0xff] %v2879
    %2944 = vst [vmem:[#allocation10 + $0xb8] sm:$0xff] %v2880
    %2945 = vst [vmem:[#allocation10 + $0xc0] sm:$0xff] %v2881
    %2946 = vst [vmem:[#allocation10 + $0xc8] sm:$0xff] %v2882
    %2947 = vst [vmem:[#allocation10 + $0xd0] sm:$0xff] %v2883
    %2948 = vst [vmem:[#allocation10 + $0xd8] sm:$0xff] %v2884
    %2949 = vst [vmem:[#allocation10 + $0xe0] sm:$0xff] %v2885
    %2950 = vst [vmem:[#allocation10 + $0xe8] sm:$0xff] %v2886
    %2951 = vst [vmem:[#allocation10 + $0xf0] sm:$0xff] %v2887
    %2952 = vst [vmem:[#allocation10 + $0xf8] sm:$0xff] %v2888
    %2953 = vst [vmem:[#allocation10 + $0x100] sm:$0xff] %v2889
    %2954 = vst [vmem:[#allocation10 + $0x108] sm:$0xff] %v2890
    %2955 = vst [vmem:[#allocation10 + $0x110] sm:$0xff] %v2891
    %2956 = vst [vmem:[#allocation10 + $0x118] sm:$0xff] %v2892
    %2957 = vst [vmem:[#allocation10 + $0x120] sm:$0xff] %v2893
    %2958 = vst [vmem:[#allocation10 + $0x128] sm:$0xff] %v2894
    %2959 = vst [vmem:[#allocation10 + $0x130] sm:$0xff] %v2895
    %2960 = vst [vmem:[#allocation10 + $0x138] sm:$0xff] %v2896
    %2961 = vst [vmem:[#allocation10 + $0x140] sm:$0xff] %v2897
    %2962 = vst [vmem:[#allocation10 + $0x148] sm:$0xff] %v2898
    %2963 = vst [vmem:[#allocation10 + $0x150] sm:$0xff] %v2899
    %2964 = vst [vmem:[#allocation10 + $0x158] sm:$0xff] %v2900
    %2965 = vst [vmem:[#allocation10 + $0x160] sm:$0xff] %v2901
    %2966 = vst [vmem:[#allocation10 + $0x168] sm:$0xff] %v2902
    %2967 = vst [vmem:[#allocation10 + $0x170] sm:$0xff] %v2903
    %2968 = vst [vmem:[#allocation10 + $0x178] sm:$0xff] %v2904
    %2969 = vst [vmem:[#allocation10 + $0x180] sm:$0xff] %v2905
    %2970 = vst [vmem:[#allocation10 + $0x188] sm:$0xff] %v2906
    %2971 = vst [vmem:[#allocation10 + $0x190] sm:$0xff] %v2907
    %2972 = vst [vmem:[#allocation10 + $0x198] sm:$0xff] %v2908
    %2973 = vst [vmem:[#allocation10 + $0x1a0] sm:$0xff] %v2909
    %2974 = vst [vmem:[#allocation10 + $0x1a8] sm:$0xff] %v2910
    %2975 = vst [vmem:[#allocation10 + $0x1b0] sm:$0xff] %v2911
    %2976 = vst [vmem:[#allocation10 + $0x1b8] sm:$0xff] %v2912
    %2977 = vst [vmem:[#allocation10 + $0x1c0] sm:$0xff] %v2913
    %2978 = vst [vmem:[#allocation10 + $0x1c8] sm:$0xff] %v2914
    %2979 = vst [vmem:[#allocation10 + $0x1d0] sm:$0xff] %v2915
    %2980 = vst [vmem:[#allocation10 + $0x1d8] sm:$0xff] %v2916
    %2981 = vst [vmem:[#allocation10 + $0x1e0] sm:$0xff] %v2917
    %2982 = vst [vmem:[#allocation10 + $0x1e8] sm:$0xff] %v2918
    %2983 = vst [vmem:[#allocation10 + $0x1f0] sm:$0xff] %v2919
    %2984 = vst [vmem:[#allocation10 + $0x1f8] sm:$0xff] %v2920
    // Predicated region
    $region54: #{tpu_custom_call.1} parent=1 // pred_check
      _
    $region55: #{tpu_custom_call.1} parent=1 // pred_check_branch
      %2986 = sbr.rel (0) target = $region57
    $region56: #{tpu_custom_call.1} parent=1 // pred_region
      %2988 = vsyncadd [#allocation4], 0
      %s2989 = sshll.u32 [#allocation10], 4
      %s2990 = int_to_ptr.vmem [resolvable:$true] %s2989
      %s2991 = sshll.u32 %s9, 4
      %s2992 = int_to_ptr.hbm [resolvable:$true] %s2991
      %2997 = dma.vmem_to_hbm [thread:$0]  %s2990, 8192, %s2992, [#allocation4], 128, 128, 8
    $region57: #{tpu_custom_call.1} parent=1 // pred_fallthru
      _
    // Predicated region
    $region58: #{tpu_custom_call.1} parent=1 // pred_check
      _
    $region59: #{tpu_custom_call.1} parent=1 // pred_check_branch
      %2999 = sbr.rel (0) target = $region61
    $region60: #{tpu_custom_call.1} parent=1 // pred_region
      %3001 = dma.done [#allocation4], 8192
    $region61: #{tpu_custom_call.1} parent=1 // pred_fallthru
      _
    %3002 = vsyncpa [#allocation3], 1
    %3003 = vsyncpa [#allocation6], 1
    %3004 = vsyncpa [#allocation9], 1
    %3005 = vsyncpa [#allocation4], 1

</llo_original>
